<compile_context>
chip_gen: v5e
topology: v5e:2x2
jax: 0.10.0
libtpu: 0.0.40
codegen_flags: <defaults>
</compile_context>

<pallas_src>
import functools

import jax
import jax.numpy as jnp
import numpy as np
from jax import lax
from jax.experimental import pallas as pl
from jax.experimental.pallas import tpu as pltpu

EPS = 1e-5  # torch.nn.GroupNorm default


def _round_up(n, m):
    return ((n + m - 1) // m) * m


def _device_kind():
    try:
        return jax.devices()[0].device_kind.lower()
    except Exception:
        return ""


def _vmem_cap_bytes():
    try:
        cap = getattr(pltpu.get_tpu_info(), "vmem_capacity_bytes", None)
        if cap:
            return int(cap)
    except Exception:
        pass
    return (64 << 20) if "v7" in _device_kind() else (128 << 20)


# ------------------------------ in-kernel helpers ---------------------------
def _make_taps(x, shift_masks, *, K, dilation):
    """K dilated/shifted views of x [C, Tp] for a 'same'-padded Conv1d.

    Shifts run on the XLU (pltpu.roll); edge masking on the VPU.  The center
    tap (shift 0) is left unmasked: garbage in padded time columns only reaches
    padded destination columns, which are excluded from the GroupNorm stats and
    stripped by the wrapper.
    """
    Tp = x.shape[-1]
    left = (dilation * (K - 1)) // 2
    zero = jnp.zeros_like(x)
    taps = []
    for k in range(K):
        s = k * dilation - left                       # source column offset
        rolled = x if s % Tp == 0 else pltpu.roll(x, (-s) % Tp, 1)
        mask = shift_masks[s]
        taps.append(rolled if mask is None else jnp.where(mask, rolled, zero))
    return taps


def _conv_same(w_get, b, taps, *, split):
    """'same' Conv1d (f32 accumulation): one deep-contraction MXU matmul
    (concat path, v5e/v6e) or K accumulating matmuls (split path, v7x MRB)."""
    if split:
        acc = jnp.dot(w_get(0), taps[0], preferred_element_type=jnp.float32)
        for k in range(1, len(taps)):
            acc = acc + jnp.dot(w_get(k), taps[k],
                                preferred_element_type=jnp.float32)
    else:
        acc = jnp.dot(w_get(None), jnp.concatenate(taps, axis=0),
                      preferred_element_type=jnp.float32)
    return acc + b


def _groupnorm1(h, gamma, beta, tmask_row, inv_n, act_dtype):
    """GroupNorm(num_groups=1) on the f32 conv output h [C_pad, T_pad].

    Single-pass f32 stats over the TRUE (C, T) region: padded channel rows are
    exactly zero (zero-padded weights/bias/gamma/beta -- do not break that
    invariant), padded time columns are dropped from the [1, Tp] column sums,
    so no full-array mask multiplies are needed.  Normalize+affine is folded to
    a single per-channel scale/shift in act_dtype.
    """
    col_s1 = jnp.sum(h, axis=0, keepdims=True)         # [1, Tp]
    col_s2 = jnp.sum(h * h, axis=0, keepdims=True)     # [1, Tp]
    s1 = jnp.sum(col_s1 * tmask_row)
    s2 = jnp.sum(col_s2 * tmask_row)
    mean = s1 * inv_n
    var = jnp.maximum(s2 * inv_n - mean * mean, 0.0)
    inv = lax.rsqrt(var + EPS)
    scale = (gamma * inv).astype(act_dtype)             # [C_pad, 1], pad rows 0
    shift = (beta - (mean * inv) * gamma).astype(act_dtype)
    return h.astype(act_dtype) * scale + shift


# ----------------------------------- kernel ---------------------------------
def encoder_kernel(x_ref, w0_ref, b0_ref, g0_ref, be0_ref,
                   rw1_ref, rb1_ref, rg1_ref, rbe1_ref,
                   rw2_ref, rb2_ref, rg2_ref, rbe2_ref,
                   out_ref, *, K, dilations, T_true, H_true,
                   split, act_dtype, transpose_out):
    cdt = x_ref.dtype                                  # matmul operand dtype
    Tp = x_ref.shape[2]
    tcol = lax.broadcasted_iota(jnp.int32, (1, Tp), 1)
    tmask_row = (tcol < T_true).astype(jnp.float32)    # [1, Tp]
    inv_n = 1.0 / float(H_true * T_true)

    L = rw1_ref.shape[0]
    # Hoist per-shift edge masks: shared by the front conv and every layer with
    # the same dilation (JAX would not CSE them if rebuilt inside the loop).
    used_dil = {1} | {dilations[l % len(dilations)] for l in range(L)}
    shifts = set()
    for d in used_dil:
        left = (d * (K - 1)) // 2
        for k in range(K):
            shifts.add(k * d - left)
    shift_masks = {
        s: None if s == 0
        else jnp.logical_and(tcol + s >= 0, tcol + s < T_true)
        for s in shifts
    }

    # ---- front conv (E -> H) + GroupNorm(1) + ReLU (+ dropout: eval identity)
    x = x_ref[0]                                       # [E_pad, T_pad], cdt
    taps = _make_taps(x, shift_masks, K=K, dilation=1)
    w0_get = (lambda k: w0_ref[k]) if split else (lambda _u: w0_ref[...])
    h = _conv_same(w0_get, b0_ref[...], taps, split=split)
    h = jnp.maximum(_groupnorm1(h, g0_ref[...], be0_ref[...],
                                tmask_row, inv_n, act_dtype), 0)

    # ---- residual blocks: dilated conv->GN->ReLU->(drop)->conv->GN->+res->ReLU
    for l in range(L):
        d = dilations[l % len(dilations)]
        resid = h
        xin = h if h.dtype == cdt else h.astype(cdt)
        taps = _make_taps(xin, shift_masks, K=K, dilation=d)
        w_get = ((lambda k, _l=l: rw1_ref[_l, k]) if split
                 else (lambda _u, _l=l: rw1_ref[_l]))
        a = _conv_same(w_get, rb1_ref[l], taps, split=split)
        a = jnp.maximum(_groupnorm1(a, rg1_ref[l], rbe1_ref[l],
                                    tmask_row, inv_n, act_dtype), 0)
        # dropout: eval-mode identity
        ain = a if a.dtype == cdt else a.astype(cdt)
        taps = _make_taps(ain, shift_masks, K=K, dilation=1)
        w_get = ((lambda k, _l=l: rw2_ref[_l, k]) if split
                 else (lambda _u, _l=l: rw2_ref[_l]))
        c = _conv_same(w_get, rb2_ref[l], taps, split=split)
        c = _groupnorm1(c, rg2_ref[l], rbe2_ref[l], tmask_row, inv_n, act_dtype)
        h = jnp.maximum(c + resid, 0)

    # final dropout: eval-mode identity
    if transpose_out:
        out_ref[0] = jnp.transpose(h).astype(out_ref.dtype)   # [Tp, Hp]
    else:
        out_ref[0] = h.astype(out_ref.dtype)                  # [Hp, Tp]


# -------------------------------- host wrapper ------------------------------
def _pack_conv_w(w, out_pad, in_pad, dtype, split):
    # torch Conv1d weight [C_out, C_in, K].  ZERO padding of the extra output
    # rows / input cols is what keeps padded channels exactly 0 through the
    # whole stack -- do not change it to anything non-zero.
    c_out, c_in, k = w.shape
    wt = jnp.transpose(w, (0, 2, 1))                           # [C_out, K, C_in]
    wt = jnp.pad(wt, ((0, out_pad - c_out), (0, 0), (0, in_pad - c_in)))
    if split:
        return jnp.transpose(wt, (1, 0, 2)).astype(dtype)      # [K, out, in]
    return wt.reshape(out_pad, k * in_pad).astype(dtype)       # [out, K*in]


def _pack_vec(v, out_pad):
    # zero padding keeps padded channel rows exactly 0 after bias/affine.
    return jnp.pad(v, (0, out_pad - v.shape[0])).reshape(out_pad, 1).astype(jnp.float32)


def phoneme_encoder(phoneme_ids, params, *, kernel_size, dilation_rates,
                    compute_dtype=jnp.bfloat16, act_dtype=None,
                    split_taps=None, midi_notes=None):
    # midi_notes accepted for API parity; the reference module warns and ignores it.
    del midi_notes
    emb, w0, b0, g0, be0, res_params = params
    K = kernel_size
    B, T = phoneme_ids.shape
    _, E = emb.shape
    H = w0.shape[0]
    L = len(res_params)

    kind = _device_kind()
    cdt = jnp.dtype(compute_dtype)
    if act_dtype is None:
        # bf16 activations double packed VALU throughput on v6e/v7x and halve
        # live VMEM; v5e has no bf16 VPU, so activations stay f32 there.
        is_v5e = ("v5 lite" in kind) or ("v5e" in kind)
        act_dtype = jnp.float32 if (is_v5e or cdt.itemsize == 4) else cdt
    act_dtype = jnp.dtype(act_dtype)
    if split_taps is None:
        # v7x's MRB accumulates matmuls in place -> split matmuls beat the
        # im2col concat there; v5e/v6e keep the single deep contraction.
        split_taps = "v7" in kind

    c_mult = 16 if cdt.itemsize == 2 else 8
    Ep = _round_up(E, c_mult)
    Hp = _round_up(H, c_mult)
    Tp = _round_up(T, 128)
    transpose_out = (Hp % 128 == 0)      # lane-dense stores only if Hp % 128 == 0

    # Embedding lookup + NCL layout, zero-padded to lane/sublane aligned tiles.
    x = jnp.take(emb, phoneme_ids, axis=0)              # [B, T, E]
    x = jnp.transpose(x, (0, 2, 1))                     # [B, E, T]
    x = jnp.pad(x, ((0, 0), (0, Ep - E), (0, Tp - T))).astype(cdt)

    w0_p = _pack_conv_w(w0, Hp, Ep, cdt, split_taps)
    b0_p, g0_p, be0_p = _pack_vec(b0, Hp), _pack_vec(g0, Hp), _pack_vec(be0, Hp)
    rw1 = jnp.stack([_pack_conv_w(p[0], Hp, Hp, cdt, split_taps) for p in res_params])
    rb1 = jnp.stack([_pack_vec(p[1], Hp) for p in res_params])
    rg1 = jnp.stack([_pack_vec(p[2], Hp) for p in res_params])
    rbe1 = jnp.stack([_pack_vec(p[3], Hp) for p in res_params])
    rw2 = jnp.stack([_pack_conv_w(p[4], Hp, Hp, cdt, split_taps) for p in res_params])
    rb2 = jnp.stack([_pack_vec(p[5], Hp) for p in res_params])
    rg2 = jnp.stack([_pack_vec(p[6], Hp) for p in res_params])
    rbe2 = jnp.stack([_pack_vec(p[7], Hp) for p in res_params])
    consts = (w0_p, b0_p, g0_p, be0_p, rw1, rb1, rg1, rbe1, rw2, rb2, rg2, rbe2)

    kernel = functools.partial(
        encoder_kernel, K=K, dilations=tuple(dilation_rates),
        T_true=T, H_true=H, split=split_taps,
        act_dtype=act_dtype, transpose_out=transpose_out)

    out_shape = (B, Tp, Hp) if transpose_out else (B, Hp, Tp)
    out_block = (1, Tp, Hp) if transpose_out else (1, Hp, Tp)

    # VMEM residency: pipelined in/out tiles + resident packed params + live
    # in-kernel intermediates (tap stacks, f32 conv outputs, activations).
    cs, act_s = cdt.itemsize, act_dtype.itemsize
    w_bytes = Hp * K * Ep * cs + 2 * L * Hp * K * Hp * cs
    vec_bytes = (3 + 6 * L) * Hp * 4
    live = K * max(Ep, Hp) * Tp * cs + 2 * Hp * Tp * 4 + 4 * Hp * Tp * act_s
    vmem_cap = int(0.85 * _vmem_cap_bytes())   # ~54 MiB on v7x, ~110 MiB v5e/v6e

    def _run(buffered_consts):
        def _const_spec(shape):
            zeros = (0,) * len(shape)
            if buffered_consts:
                # Constants are revisited with the same block index every grid
                # step -> single buffer halves their resident VMEM.
                return pl.BlockSpec(shape, lambda b, _z=zeros: _z,
                                    pipeline_mode=pl.Buffered(1))
            return pl.BlockSpec(shape, lambda b, _z=zeros: _z)

        cmult = 1 if buffered_consts else 2
        needed = (2 * (Ep * Tp * cs + Tp * Hp * act_s)
                  + cmult * (w_bytes + vec_bytes) + live + (6 << 20))
        vmem_limit = int(min(max(needed, 32 << 20), vmem_cap))

        return pl.pallas_call(
            kernel,
            out_shape=jax.ShapeDtypeStruct(out_shape, act_dtype),
            grid_spec=pltpu.PrefetchScalarGridSpec(
                num_scalar_prefetch=0,
                # One sample per grid step; "parallel" lets v7x shard the batch
                # across its 2 TensorCores (needs B >= 2 to use both).
                grid=(B,),
                in_specs=[pl.BlockSpec((1, Ep, Tp), lambda b: (b, 0, 0))]
                         + [_const_spec(c.shape) for c in consts],
                out_specs=pl.BlockSpec(out_block, lambda b: (b, 0, 0)),
            ),
            compiler_params=pltpu.CompilerParams(
                dimension_semantics=("parallel",),
                vmem_limit_bytes=vmem_limit,
            ),
        )(x, *consts)

    try:
        out = _run(True)
    except Exception:
        # pipeline_mode=pl.Buffered(1) not supported on this jax/Mosaic build:
        # fall back to default double-buffered constant blocks.
        out = _run(False)

    # Strip padding; return [B, T, H] like the PyTorch module (in act_dtype).
    if transpose_out:
        return out[:, :T, :H]
    return jnp.transpose(out[:, :H, :T], (0, 2, 1))


# ---------------- pure-JAX reference (for correctness check) ----------------
def phoneme_encoder_ref(phoneme_ids, params, *, kernel_size, dilation_rates):
    emb, w0, b0, g0, be0, res_params = params
    x = jnp.transpose(jnp.take(emb, phoneme_ids, axis=0), (0, 2, 1))   # [B, E, T]

    def conv1d_same(x, w, b, d):
        k = w.shape[-1]
        total = d * (k - 1)
        lo = total // 2
        y = lax.conv_general_dilated(
            x, w, window_strides=(1,), padding=[(lo, total - lo)],
            rhs_dilation=(d,), dimension_numbers=("NCH", "OIH", "NCH"))
        return y + b[None, :, None]

    def gn1(h, g, be):
        mean = jnp.mean(h, axis=(1, 2), keepdims=True)
        var = jnp.mean((h - mean) ** 2, axis=(1, 2), keepdims=True)
        return (h - mean) / jnp.sqrt(var + EPS) * g[None, :, None] + be[None, :, None]

    h = jnp.maximum(gn1(conv1d_same(x, w0, b0, 1), g0, be0), 0.0)
    for l, (w1, b1, g1, be1, w2, b2, g2, be2) in enumerate(res_params):
        d = dilation_rates[l % len(dilation_rates)]
        r = h
        a = jnp.maximum(gn1(conv1d_same(h, w1, b1, d), g1, be1), 0.0)
        c = gn1(conv1d_same(a, w2, b2, 1), g2, be2)
        h = jnp.maximum(c + r, 0.0)
    return jnp.transpose(h, (0, 2, 1))                                  # [B, T, H]


if __name__ == "__main__":
    def make_params(key, num_phonemes, E, H, K, n_layers):
        keys = iter(jax.random.split(key, 8 + 8 * n_layers))
        nk = lambda: next(keys)
        normal = lambda shape: jax.random.normal(nk(), shape, jnp.float32)
        emb = normal((num_phonemes, E))
        w0 = 0.2 * normal((H, E, K))
        b0 = 0.1 * normal((H,))
        g0 = 1.0 + 0.1 * normal((H,))
        be0 = 0.1 * normal((H,))
        res = []
        for _ in range(n_layers):
            res.append((0.2 * normal((H, H, K)), 0.1 * normal((H,)),
                        1.0 + 0.1 * normal((H,)), 0.1 * normal((H,)),
                        0.2 * normal((H, H, K)), 0.1 * normal((H,)),
                        1.0 + 0.1 * normal((H,)), 0.1 * normal((H,))))
        return (emb, w0, b0, g0, be0, tuple(res))

    K = 3
    dil = (1, 3, 9)
    k_ids, k_par, k_ids2, k_par2 = jax.random.split(jax.random.PRNGKey(0), 4)

    # ---- config A: small, non-128-aligned H (channel-major output path) ----
    B, T, NP, E, H, L = 2, 16, 40, 16, 32, 3
    ids = jax.random.randint(k_ids, (B, T), 0, NP)
    params = make_params(k_par, NP, E, H, K, L)
    ref = phoneme_encoder_ref(ids, params, kernel_size=K, dilation_rates=dil)

    # f32 matmuls, deep-contraction (concat) conv path: algorithmic check.
    out = phoneme_encoder(ids, params, kernel_size=K, dilation_rates=dil,
                          compute_dtype=jnp.float32, split_taps=False)
    np.testing.assert_allclose(np.asarray(jax.block_until_ready(out)),
                               np.asarray(ref), rtol=2e-2, atol=2e-2)

    # f32 matmuls, split-tap (v7x MRB) conv path: algorithmic check.
    out = phoneme_encoder(ids, params, kernel_size=K, dilation_rates=dil,
                          compute_dtype=jnp.float32, split_taps=True)
    np.testing.assert_allclose(np.asarray(jax.block_until_ready(out)),
                               np.asarray(ref), rtol=2e-2, atol=2e-2)

    # bf16 matmuls with auto activation/split/output choices: loose check.
    out = phoneme_encoder(ids, params, kernel_size=K, dilation_rates=dil,
                          compute_dtype=jnp.bfloat16)
    out = np.asarray(jax.block_until_ready(out).astype(jnp.float32))
    np.testing.assert_allclose(out, np.asarray(ref), rtol=2.5e-1, atol=2.5e-1)

    # ---- config B: Hp % 128 == 0 -> in-kernel transposed lane-dense output --
    B2, T2, NP2, E2, H2, L2 = 2, 20, 50, 32, 128, 3
    ids2 = jax.random.randint(k_ids2, (B2, T2), 0, NP2)
    params2 = make_params(k_par2, NP2, E2, H2, K, L2)
    ref2 = phoneme_encoder_ref(ids2, params2, kernel_size=K, dilation_rates=dil)
    out2 = phoneme_encoder(ids2, params2, kernel_size=K, dilation_rates=dil,
                           compute_dtype=jnp.bfloat16)
    out2 = np.asarray(jax.block_until_ready(out2).astype(jnp.float32))
    np.testing.assert_allclose(out2, np.asarray(ref2), rtol=2.5e-1, atol=2.5e-1)

    print("KERNEL_OK")
</pallas_src>

<mosaic_0001>
module attributes {stable_mosaic.version = 11 : i64} {
  func.func @encoder_kernel(%arg0: i32, %arg1: memref<1x16x128xf32, #tpu.memory_space<vmem>>, %arg2: memref<32x48xf32, #tpu.memory_space<vmem>>, %arg3: memref<32x1xf32, #tpu.memory_space<vmem>>, %arg4: memref<32x1xf32, #tpu.memory_space<vmem>>, %arg5: memref<32x1xf32, #tpu.memory_space<vmem>>, %arg6: memref<3x32x96xf32, #tpu.memory_space<vmem>>, %arg7: memref<3x32x1xf32, #tpu.memory_space<vmem>>, %arg8: memref<3x32x1xf32, #tpu.memory_space<vmem>>, %arg9: memref<3x32x1xf32, #tpu.memory_space<vmem>>, %arg10: memref<3x32x96xf32, #tpu.memory_space<vmem>>, %arg11: memref<3x32x1xf32, #tpu.memory_space<vmem>>, %arg12: memref<3x32x1xf32, #tpu.memory_space<vmem>>, %arg13: memref<3x32x1xf32, #tpu.memory_space<vmem>>, %arg14: memref<1x32x128xf32, #tpu.memory_space<vmem>>) attributes {dimension_semantics = [#tpu.dimension_semantics<parallel>], iteration_bounds = array<i64: 2>, scalar_prefetch = 0 : i64, scratch_operands = 0 : i64, tpu.core_type = #tpu.core_type<tc>, window_params = [{transform_indices = @transform_0, window_bounds = array<i64: 1, 16, 128>}, {pipeline_mode = #tpu.pipeline_mode<synchronous>, transform_indices = @transform_1, window_bounds = array<i64: 32, 48>}, {pipeline_mode = #tpu.pipeline_mode<synchronous>, transform_indices = @transform_2, window_bounds = array<i64: 32, 1>}, {pipeline_mode = #tpu.pipeline_mode<synchronous>, transform_indices = @transform_3, window_bounds = array<i64: 32, 1>}, {pipeline_mode = #tpu.pipeline_mode<synchronous>, transform_indices = @transform_4, window_bounds = array<i64: 32, 1>}, {pipeline_mode = #tpu.pipeline_mode<synchronous>, transform_indices = @transform_5, window_bounds = array<i64: 3, 32, 96>}, {pipeline_mode = #tpu.pipeline_mode<synchronous>, transform_indices = @transform_6, window_bounds = array<i64: 3, 32, 1>}, {pipeline_mode = #tpu.pipeline_mode<synchronous>, transform_indices = @transform_7, window_bounds = array<i64: 3, 32, 1>}, {pipeline_mode = #tpu.pipeline_mode<synchronous>, transform_indices = @transform_8, window_bounds = array<i64: 3, 32, 1>}, {pipeline_mode = #tpu.pipeline_mode<synchronous>, transform_indices = @transform_9, window_bounds = array<i64: 3, 32, 96>}, {pipeline_mode = #tpu.pipeline_mode<synchronous>, transform_indices = @transform_10, window_bounds = array<i64: 3, 32, 1>}, {pipeline_mode = #tpu.pipeline_mode<synchronous>, transform_indices = @transform_11, window_bounds = array<i64: 3, 32, 1>}, {pipeline_mode = #tpu.pipeline_mode<synchronous>, transform_indices = @transform_12, window_bounds = array<i64: 3, 32, 1>}, {transform_indices = @transform_13, window_bounds = array<i64: 1, 32, 128>}]} {
    %0 = tpu.iota {dimensions = array<i32: 1>} : vector<1x128xi32>
    %c16_i32 = arith.constant 16 : i32
    %1 = vector.broadcast %c16_i32 : i32 to vector<1x128xi32>
    %2 = arith.cmpi slt, %0, %1 : vector<1x128xi32>
    %3 = arith.extui %2 : vector<1x128xi1> to vector<1x128xi32>
    %4 = arith.sitofp %3 : vector<1x128xi32> to vector<1x128xf32>
    %c1_i32 = arith.constant 1 : i32
    %5 = vector.broadcast %c1_i32 : i32 to vector<1x128xi32>
    %6 = arith.addi %0, %5 : vector<1x128xi32>
    %c0_i32 = arith.constant 0 : i32
    %7 = vector.broadcast %c0_i32 : i32 to vector<1x128xi32>
    %8 = arith.cmpi sge, %6, %7 : vector<1x128xi32>
    %c1_i32_0 = arith.constant 1 : i32
    %9 = vector.broadcast %c1_i32_0 : i32 to vector<1x128xi32>
    %10 = arith.addi %0, %9 : vector<1x128xi32>
    %c16_i32_1 = arith.constant 16 : i32
    %11 = vector.broadcast %c16_i32_1 : i32 to vector<1x128xi32>
    %12 = arith.cmpi slt, %10, %11 : vector<1x128xi32>
    %13 = arith.andi %8, %12 : vector<1x128xi1>
    %c3_i32 = arith.constant 3 : i32
    %14 = vector.broadcast %c3_i32 : i32 to vector<1x128xi32>
    %15 = arith.addi %0, %14 : vector<1x128xi32>
    %c0_i32_2 = arith.constant 0 : i32
    %16 = vector.broadcast %c0_i32_2 : i32 to vector<1x128xi32>
    %17 = arith.cmpi sge, %15, %16 : vector<1x128xi32>
    %c3_i32_3 = arith.constant 3 : i32
    %18 = vector.broadcast %c3_i32_3 : i32 to vector<1x128xi32>
    %19 = arith.addi %0, %18 : vector<1x128xi32>
    %c16_i32_4 = arith.constant 16 : i32
    %20 = vector.broadcast %c16_i32_4 : i32 to vector<1x128xi32>
    %21 = arith.cmpi slt, %19, %20 : vector<1x128xi32>
    %22 = arith.andi %17, %21 : vector<1x128xi1>
    %c9_i32 = arith.constant 9 : i32
    %23 = vector.broadcast %c9_i32 : i32 to vector<1x128xi32>
    %24 = arith.addi %0, %23 : vector<1x128xi32>
    %c0_i32_5 = arith.constant 0 : i32
    %25 = vector.broadcast %c0_i32_5 : i32 to vector<1x128xi32>
    %26 = arith.cmpi sge, %24, %25 : vector<1x128xi32>
    %c9_i32_6 = arith.constant 9 : i32
    %27 = vector.broadcast %c9_i32_6 : i32 to vector<1x128xi32>
    %28 = arith.addi %0, %27 : vector<1x128xi32>
    %c16_i32_7 = arith.constant 16 : i32
    %29 = vector.broadcast %c16_i32_7 : i32 to vector<1x128xi32>
    %30 = arith.cmpi slt, %28, %29 : vector<1x128xi32>
    %31 = arith.andi %26, %30 : vector<1x128xi1>
    %c-9_i32 = arith.constant -9 : i32
    %32 = vector.broadcast %c-9_i32 : i32 to vector<1x128xi32>
    %33 = arith.addi %0, %32 : vector<1x128xi32>
    %c0_i32_8 = arith.constant 0 : i32
    %34 = vector.broadcast %c0_i32_8 : i32 to vector<1x128xi32>
    %35 = arith.cmpi sge, %33, %34 : vector<1x128xi32>
    %c-9_i32_9 = arith.constant -9 : i32
    %36 = vector.broadcast %c-9_i32_9 : i32 to vector<1x128xi32>
    %37 = arith.addi %0, %36 : vector<1x128xi32>
    %c16_i32_10 = arith.constant 16 : i32
    %38 = vector.broadcast %c16_i32_10 : i32 to vector<1x128xi32>
    %39 = arith.cmpi slt, %37, %38 : vector<1x128xi32>
    %40 = arith.andi %35, %39 : vector<1x128xi1>
    %c-3_i32 = arith.constant -3 : i32
    %41 = vector.broadcast %c-3_i32 : i32 to vector<1x128xi32>
    %42 = arith.addi %0, %41 : vector<1x128xi32>
    %c0_i32_11 = arith.constant 0 : i32
    %43 = vector.broadcast %c0_i32_11 : i32 to vector<1x128xi32>
    %44 = arith.cmpi sge, %42, %43 : vector<1x128xi32>
    %c-3_i32_12 = arith.constant -3 : i32
    %45 = vector.broadcast %c-3_i32_12 : i32 to vector<1x128xi32>
    %46 = arith.addi %0, %45 : vector<1x128xi32>
    %c16_i32_13 = arith.constant 16 : i32
    %47 = vector.broadcast %c16_i32_13 : i32 to vector<1x128xi32>
    %48 = arith.cmpi slt, %46, %47 : vector<1x128xi32>
    %49 = arith.andi %44, %48 : vector<1x128xi1>
    %c-1_i32 = arith.constant -1 : i32
    %50 = vector.broadcast %c-1_i32 : i32 to vector<1x128xi32>
    %51 = arith.addi %0, %50 : vector<1x128xi32>
    %c0_i32_14 = arith.constant 0 : i32
    %52 = vector.broadcast %c0_i32_14 : i32 to vector<1x128xi32>
    %53 = arith.cmpi sge, %51, %52 : vector<1x128xi32>
    %c-1_i32_15 = arith.constant -1 : i32
    %54 = vector.broadcast %c-1_i32_15 : i32 to vector<1x128xi32>
    %55 = arith.addi %0, %54 : vector<1x128xi32>
    %c16_i32_16 = arith.constant 16 : i32
    %56 = vector.broadcast %c16_i32_16 : i32 to vector<1x128xi32>
    %57 = arith.cmpi slt, %55, %56 : vector<1x128xi32>
    %58 = arith.andi %53, %57 : vector<1x128xi1>
    %c0 = arith.constant 0 : index
    %c0_17 = arith.constant 0 : index
    %c0_18 = arith.constant 0 : index
    %59 = vector.load %arg1[%c0, %c0_17, %c0_18] : memref<1x16x128xf32, #tpu.memory_space<vmem>>, vector<1x16x128xf32>
    %60 = vector.shape_cast %59 : vector<1x16x128xf32> to vector<16x128xf32>
    %cst = arith.constant 0.000000e+00 : f32
    %61 = vector.broadcast %cst : f32 to vector<16x128xf32>
    %c1_i32_19 = arith.constant 1 : i32
    %62 = tpu.dynamic_rotate %60 by %c1_i32_19 dim 1 : vector<16x128xf32>, i32 -> vector<16x128xf32>
    %63 = vector.shape_cast %58 : vector<1x128xi1> to vector<1x128xi1>
    %64 = vector.broadcast %63 : vector<1x128xi1> to vector<16x128xi1>
    %65 = arith.select %64, %62, %61 : vector<16x128xi1>, vector<16x128xf32>
    %c127_i32 = arith.constant 127 : i32
    %66 = tpu.dynamic_rotate %60 by %c127_i32 dim 1 : vector<16x128xf32>, i32 -> vector<16x128xf32>
    %67 = vector.shape_cast %13 : vector<1x128xi1> to vector<1x128xi1>
    %68 = vector.broadcast %67 : vector<1x128xi1> to vector<16x128xi1>
    %69 = arith.select %68, %66, %61 : vector<16x128xi1>, vector<16x128xf32>
    %c0_20 = arith.constant 0 : index
    %c0_21 = arith.constant 0 : index
    %70 = vector.load %arg3[%c0_20, %c0_21] : memref<32x1xf32, #tpu.memory_space<vmem>>, vector<32x1xf32>
    %c0_22 = arith.constant 0 : index
    %c0_23 = arith.constant 0 : index
    %71 = vector.load %arg2[%c0_22, %c0_23] : memref<32x48xf32, #tpu.memory_space<vmem>>, vector<32x48xf32>
    %72 = tpu.concatenate %65, %60, %69 in 0 : vector<16x128xf32>, vector<16x128xf32>, vector<16x128xf32> -> vector<48x128xf32>
    %cst_24 = arith.constant dense<0.000000e+00> : vector<32x128xf32>
    %73 = tpu.matmul %71, %72, %cst_24 {dimension_numbers = #tpu.dot_dimension_numbers<[1], [0], [0], [1], [0, 0, 1, 1], [], []>} : vector<32x48xf32>, vector<48x128xf32>, vector<32x128xf32> -> vector<32x128xf32>
    %74 = vector.broadcast %70 : vector<32x1xf32> to vector<32x128xf32>
    %75 = arith.addf %73, %74 : vector<32x128xf32>
    %c0_25 = arith.constant 0 : index
    %c0_26 = arith.constant 0 : index
    %76 = vector.load %arg4[%c0_25, %c0_26] : memref<32x1xf32, #tpu.memory_space<vmem>>, vector<32x1xf32>
    %c0_27 = arith.constant 0 : index
    %c0_28 = arith.constant 0 : index
    %77 = vector.load %arg5[%c0_27, %c0_28] : memref<32x1xf32, #tpu.memory_space<vmem>>, vector<32x1xf32>
    %cst_29 = arith.constant dense<0.000000e+00> : vector<128xf32>
    %78 = vector.multi_reduction <add>, %75, %cst_29 [0] : vector<32x128xf32> to vector<128xf32>
    %79 = vector.shape_cast %78 : vector<128xf32> to vector<1x128xf32>
    %80 = arith.mulf %75, %75 : vector<32x128xf32>
    %cst_30 = arith.constant dense<0.000000e+00> : vector<128xf32>
    %81 = vector.multi_reduction <add>, %80, %cst_30 [0] : vector<32x128xf32> to vector<128xf32>
    %82 = vector.shape_cast %81 : vector<128xf32> to vector<1x128xf32>
    %83 = arith.mulf %79, %4 : vector<1x128xf32>
    %84 = vector.shape_cast %83 : vector<1x128xf32> to vector<1x1x128xf32>
    %cst_31 = arith.constant dense<0.000000e+00> : vector<1xf32>
    %85 = vector.multi_reduction <add>, %84, %cst_31 [1, 2] : vector<1x1x128xf32> to vector<1xf32>
    %86 = vector.shape_cast %85 : vector<1xf32> to vector<1x1x1xf32>
    %87 = vector.extract %86[0, 0, 0] : f32 from vector<1x1x1xf32>
    %88 = arith.mulf %82, %4 : vector<1x128xf32>
    %89 = vector.shape_cast %88 : vector<1x128xf32> to vector<1x1x128xf32>
    %cst_32 = arith.constant dense<0.000000e+00> : vector<1xf32>
    %90 = vector.multi_reduction <add>, %89, %cst_32 [1, 2] : vector<1x1x128xf32> to vector<1xf32>
    %91 = vector.shape_cast %90 : vector<1xf32> to vector<1x1x1xf32>
    %92 = vector.extract %91[0, 0, 0] : f32 from vector<1x1x1xf32>
    %cst_33 = arith.constant 0.001953125 : f32
    %93 = arith.mulf %87, %cst_33 : f32
    %cst_34 = arith.constant 0.001953125 : f32
    %94 = arith.mulf %92, %cst_34 : f32
    %95 = arith.mulf %93, %93 : f32
    %96 = arith.subf %94, %95 : f32
    %cst_35 = arith.constant 0.000000e+00 : f32
    %97 = arith.maximumf %96, %cst_35 : f32
    %cst_36 = arith.constant 9.99999974E-6 : f32
    %98 = arith.addf %97, %cst_36 : f32
    %99 = math.rsqrt %98 : f32
    %100 = vector.broadcast %99 : f32 to vector<32x1xf32>
    %101 = arith.mulf %76, %100 : vector<32x1xf32>
    %102 = arith.mulf %93, %99 : f32
    %103 = vector.broadcast %102 : f32 to vector<32x1xf32>
    %104 = arith.mulf %103, %76 : vector<32x1xf32>
    %105 = arith.subf %77, %104 : vector<32x1xf32>
    %106 = vector.broadcast %101 : vector<32x1xf32> to vector<32x128xf32>
    %107 = arith.mulf %75, %106 : vector<32x128xf32>
    %108 = vector.broadcast %105 : vector<32x1xf32> to vector<32x128xf32>
    %109 = arith.addf %107, %108 : vector<32x128xf32>
    %cst_37 = arith.constant 0.000000e+00 : f32
    %110 = vector.broadcast %cst_37 : f32 to vector<32x128xf32>
    %111 = arith.maximumf %109, %110 : vector<32x128xf32>
    %cst_38 = arith.constant 0.000000e+00 : f32
    %112 = vector.broadcast %cst_38 : f32 to vector<32x128xf32>
    %c1_i32_39 = arith.constant 1 : i32
    %113 = tpu.dynamic_rotate %111 by %c1_i32_39 dim 1 : vector<32x128xf32>, i32 -> vector<32x128xf32>
    %114 = vector.shape_cast %58 : vector<1x128xi1> to vector<1x128xi1>
    %115 = vector.broadcast %114 : vector<1x128xi1> to vector<32x128xi1>
    %116 = arith.select %115, %113, %112 : vector<32x128xi1>, vector<32x128xf32>
    %c127_i32_40 = arith.constant 127 : i32
    %117 = tpu.dynamic_rotate %111 by %c127_i32_40 dim 1 : vector<32x128xf32>, i32 -> vector<32x128xf32>
    %118 = vector.shape_cast %13 : vector<1x128xi1> to vector<1x128xi1>
    %119 = vector.broadcast %118 : vector<1x128xi1> to vector<32x128xi1>
    %120 = arith.select %119, %117, %112 : vector<32x128xi1>, vector<32x128xf32>
    %c0_41 = arith.constant 0 : index
    %c0_42 = arith.constant 0 : index
    %c0_43 = arith.constant 0 : index
    %121 = vector.load %arg7[%c0_41, %c0_42, %c0_43] : memref<3x32x1xf32, #tpu.memory_space<vmem>>, vector<1x32x1xf32>
    %122 = vector.shape_cast %121 : vector<1x32x1xf32> to vector<32x1xf32>
    %c0_44 = arith.constant 0 : index
    %c0_45 = arith.constant 0 : index
    %c0_46 = arith.constant 0 : index
    %123 = vector.load %arg6[%c0_44, %c0_45, %c0_46] : memref<3x32x96xf32, #tpu.memory_space<vmem>>, vector<1x32x96xf32>
    %124 = vector.shape_cast %123 : vector<1x32x96xf32> to vector<32x96xf32>
    %125 = tpu.concatenate %116, %111, %120 in 0 : vector<32x128xf32>, vector<32x128xf32>, vector<32x128xf32> -> vector<96x128xf32>
    %cst_47 = arith.constant dense<0.000000e+00> : vector<32x128xf32>
    %126 = tpu.matmul %124, %125, %cst_47 {dimension_numbers = #tpu.dot_dimension_numbers<[1], [0], [0], [1], [0, 0, 1, 1], [], []>} : vector<32x96xf32>, vector<96x128xf32>, vector<32x128xf32> -> vector<32x128xf32>
    %127 = vector.broadcast %122 : vector<32x1xf32> to vector<32x128xf32>
    %128 = arith.addf %126, %127 : vector<32x128xf32>
    %c0_48 = arith.constant 0 : index
    %c0_49 = arith.constant 0 : index
    %c0_50 = arith.constant 0 : index
    %129 = vector.load %arg8[%c0_48, %c0_49, %c0_50] : memref<3x32x1xf32, #tpu.memory_space<vmem>>, vector<1x32x1xf32>
    %130 = vector.shape_cast %129 : vector<1x32x1xf32> to vector<32x1xf32>
    %c0_51 = arith.constant 0 : index
    %c0_52 = arith.constant 0 : index
    %c0_53 = arith.constant 0 : index
    %131 = vector.load %arg9[%c0_51, %c0_52, %c0_53] : memref<3x32x1xf32, #tpu.memory_space<vmem>>, vector<1x32x1xf32>
    %132 = vector.shape_cast %131 : vector<1x32x1xf32> to vector<32x1xf32>
    %cst_54 = arith.constant dense<0.000000e+00> : vector<128xf32>
    %133 = vector.multi_reduction <add>, %128, %cst_54 [0] : vector<32x128xf32> to vector<128xf32>
    %134 = vector.shape_cast %133 : vector<128xf32> to vector<1x128xf32>
    %135 = arith.mulf %128, %128 : vector<32x128xf32>
    %cst_55 = arith.constant dense<0.000000e+00> : vector<128xf32>
    %136 = vector.multi_reduction <add>, %135, %cst_55 [0] : vector<32x128xf32> to vector<128xf32>
    %137 = vector.shape_cast %136 : vector<128xf32> to vector<1x128xf32>
    %138 = arith.mulf %134, %4 : vector<1x128xf32>
    %139 = vector.shape_cast %138 : vector<1x128xf32> to vector<1x1x128xf32>
    %cst_56 = arith.constant dense<0.000000e+00> : vector<1xf32>
    %140 = vector.multi_reduction <add>, %139, %cst_56 [1, 2] : vector<1x1x128xf32> to vector<1xf32>
    %141 = vector.shape_cast %140 : vector<1xf32> to vector<1x1x1xf32>
    %142 = vector.extract %141[0, 0, 0] : f32 from vector<1x1x1xf32>
    %143 = arith.mulf %137, %4 : vector<1x128xf32>
    %144 = vector.shape_cast %143 : vector<1x128xf32> to vector<1x1x128xf32>
    %cst_57 = arith.constant dense<0.000000e+00> : vector<1xf32>
    %145 = vector.multi_reduction <add>, %144, %cst_57 [1, 2] : vector<1x1x128xf32> to vector<1xf32>
    %146 = vector.shape_cast %145 : vector<1xf32> to vector<1x1x1xf32>
    %147 = vector.extract %146[0, 0, 0] : f32 from vector<1x1x1xf32>
    %cst_58 = arith.constant 0.001953125 : f32
    %148 = arith.mulf %142, %cst_58 : f32
    %cst_59 = arith.constant 0.001953125 : f32
    %149 = arith.mulf %147, %cst_59 : f32
    %150 = arith.mulf %148, %148 : f32
    %151 = arith.subf %149, %150 : f32
    %cst_60 = arith.constant 0.000000e+00 : f32
    %152 = arith.maximumf %151, %cst_60 : f32
    %cst_61 = arith.constant 9.99999974E-6 : f32
    %153 = arith.addf %152, %cst_61 : f32
    %154 = math.rsqrt %153 : f32
    %155 = vector.broadcast %154 : f32 to vector<32x1xf32>
    %156 = arith.mulf %130, %155 : vector<32x1xf32>
    %157 = arith.mulf %148, %154 : f32
    %158 = vector.broadcast %157 : f32 to vector<32x1xf32>
    %159 = arith.mulf %158, %130 : vector<32x1xf32>
    %160 = arith.subf %132, %159 : vector<32x1xf32>
    %161 = vector.broadcast %156 : vector<32x1xf32> to vector<32x128xf32>
    %162 = arith.mulf %128, %161 : vector<32x128xf32>
    %163 = vector.broadcast %160 : vector<32x1xf32> to vector<32x128xf32>
    %164 = arith.addf %162, %163 : vector<32x128xf32>
    %cst_62 = arith.constant 0.000000e+00 : f32
    %165 = vector.broadcast %cst_62 : f32 to vector<32x128xf32>
    %166 = arith.maximumf %164, %165 : vector<32x128xf32>
    %cst_63 = arith.constant 0.000000e+00 : f32
    %167 = vector.broadcast %cst_63 : f32 to vector<32x128xf32>
    %c1_i32_64 = arith.constant 1 : i32
    %168 = tpu.dynamic_rotate %166 by %c1_i32_64 dim 1 : vector<32x128xf32>, i32 -> vector<32x128xf32>
    %169 = vector.shape_cast %58 : vector<1x128xi1> to vector<1x128xi1>
    %170 = vector.broadcast %169 : vector<1x128xi1> to vector<32x128xi1>
    %171 = arith.select %170, %168, %167 : vector<32x128xi1>, vector<32x128xf32>
    %c127_i32_65 = arith.constant 127 : i32
    %172 = tpu.dynamic_rotate %166 by %c127_i32_65 dim 1 : vector<32x128xf32>, i32 -> vector<32x128xf32>
    %173 = vector.shape_cast %13 : vector<1x128xi1> to vector<1x128xi1>
    %174 = vector.broadcast %173 : vector<1x128xi1> to vector<32x128xi1>
    %175 = arith.select %174, %172, %167 : vector<32x128xi1>, vector<32x128xf32>
    %c0_66 = arith.constant 0 : index
    %c0_67 = arith.constant 0 : index
    %c0_68 = arith.constant 0 : index
    %176 = vector.load %arg11[%c0_66, %c0_67, %c0_68] : memref<3x32x1xf32, #tpu.memory_space<vmem>>, vector<1x32x1xf32>
    %177 = vector.shape_cast %176 : vector<1x32x1xf32> to vector<32x1xf32>
    %c0_69 = arith.constant 0 : index
    %c0_70 = arith.constant 0 : index
    %c0_71 = arith.constant 0 : index
    %178 = vector.load %arg10[%c0_69, %c0_70, %c0_71] : memref<3x32x96xf32, #tpu.memory_space<vmem>>, vector<1x32x96xf32>
    %179 = vector.shape_cast %178 : vector<1x32x96xf32> to vector<32x96xf32>
    %180 = tpu.concatenate %171, %166, %175 in 0 : vector<32x128xf32>, vector<32x128xf32>, vector<32x128xf32> -> vector<96x128xf32>
    %cst_72 = arith.constant dense<0.000000e+00> : vector<32x128xf32>
    %181 = tpu.matmul %179, %180, %cst_72 {dimension_numbers = #tpu.dot_dimension_numbers<[1], [0], [0], [1], [0, 0, 1, 1], [], []>} : vector<32x96xf32>, vector<96x128xf32>, vector<32x128xf32> -> vector<32x128xf32>
    %182 = vector.broadcast %177 : vector<32x1xf32> to vector<32x128xf32>
    %183 = arith.addf %181, %182 : vector<32x128xf32>
    %c0_73 = arith.constant 0 : index
    %c0_74 = arith.constant 0 : index
    %c0_75 = arith.constant 0 : index
    %184 = vector.load %arg12[%c0_73, %c0_74, %c0_75] : memref<3x32x1xf32, #tpu.memory_space<vmem>>, vector<1x32x1xf32>
    %185 = vector.shape_cast %184 : vector<1x32x1xf32> to vector<32x1xf32>
    %c0_76 = arith.constant 0 : index
    %c0_77 = arith.constant 0 : index
    %c0_78 = arith.constant 0 : index
    %186 = vector.load %arg13[%c0_76, %c0_77, %c0_78] : memref<3x32x1xf32, #tpu.memory_space<vmem>>, vector<1x32x1xf32>
    %187 = vector.shape_cast %186 : vector<1x32x1xf32> to vector<32x1xf32>
    %cst_79 = arith.constant dense<0.000000e+00> : vector<128xf32>
    %188 = vector.multi_reduction <add>, %183, %cst_79 [0] : vector<32x128xf32> to vector<128xf32>
    %189 = vector.shape_cast %188 : vector<128xf32> to vector<1x128xf32>
    %190 = arith.mulf %183, %183 : vector<32x128xf32>
    %cst_80 = arith.constant dense<0.000000e+00> : vector<128xf32>
    %191 = vector.multi_reduction <add>, %190, %cst_80 [0] : vector<32x128xf32> to vector<128xf32>
    %192 = vector.shape_cast %191 : vector<128xf32> to vector<1x128xf32>
    %193 = arith.mulf %189, %4 : vector<1x128xf32>
    %194 = vector.shape_cast %193 : vector<1x128xf32> to vector<1x1x128xf32>
    %cst_81 = arith.constant dense<0.000000e+00> : vector<1xf32>
    %195 = vector.multi_reduction <add>, %194, %cst_81 [1, 2] : vector<1x1x128xf32> to vector<1xf32>
    %196 = vector.shape_cast %195 : vector<1xf32> to vector<1x1x1xf32>
    %197 = vector.extract %196[0, 0, 0] : f32 from vector<1x1x1xf32>
    %198 = arith.mulf %192, %4 : vector<1x128xf32>
    %199 = vector.shape_cast %198 : vector<1x128xf32> to vector<1x1x128xf32>
    %cst_82 = arith.constant dense<0.000000e+00> : vector<1xf32>
    %200 = vector.multi_reduction <add>, %199, %cst_82 [1, 2] : vector<1x1x128xf32> to vector<1xf32>
    %201 = vector.shape_cast %200 : vector<1xf32> to vector<1x1x1xf32>
    %202 = vector.extract %201[0, 0, 0] : f32 from vector<1x1x1xf32>
    %cst_83 = arith.constant 0.001953125 : f32
    %203 = arith.mulf %197, %cst_83 : f32
    %cst_84 = arith.constant 0.001953125 : f32
    %204 = arith.mulf %202, %cst_84 : f32
    %205 = arith.mulf %203, %203 : f32
    %206 = arith.subf %204, %205 : f32
    %cst_85 = arith.constant 0.000000e+00 : f32
    %207 = arith.maximumf %206, %cst_85 : f32
    %cst_86 = arith.constant 9.99999974E-6 : f32
    %208 = arith.addf %207, %cst_86 : f32
    %209 = math.rsqrt %208 : f32
    %210 = vector.broadcast %209 : f32 to vector<32x1xf32>
    %211 = arith.mulf %185, %210 : vector<32x1xf32>
    %212 = arith.mulf %203, %209 : f32
    %213 = vector.broadcast %212 : f32 to vector<32x1xf32>
    %214 = arith.mulf %213, %185 : vector<32x1xf32>
    %215 = arith.subf %187, %214 : vector<32x1xf32>
    %216 = vector.broadcast %211 : vector<32x1xf32> to vector<32x128xf32>
    %217 = arith.mulf %183, %216 : vector<32x128xf32>
    %218 = vector.broadcast %215 : vector<32x1xf32> to vector<32x128xf32>
    %219 = arith.addf %217, %218 : vector<32x128xf32>
    %220 = arith.addf %219, %111 : vector<32x128xf32>
    %cst_87 = arith.constant 0.000000e+00 : f32
    %221 = vector.broadcast %cst_87 : f32 to vector<32x128xf32>
    %222 = arith.maximumf %220, %221 : vector<32x128xf32>
    %cst_88 = arith.constant 0.000000e+00 : f32
    %223 = vector.broadcast %cst_88 : f32 to vector<32x128xf32>
    %c3_i32_89 = arith.constant 3 : i32
    %224 = tpu.dynamic_rotate %222 by %c3_i32_89 dim 1 : vector<32x128xf32>, i32 -> vector<32x128xf32>
    %225 = vector.shape_cast %49 : vector<1x128xi1> to vector<1x128xi1>
    %226 = vector.broadcast %225 : vector<1x128xi1> to vector<32x128xi1>
    %227 = arith.select %226, %224, %223 : vector<32x128xi1>, vector<32x128xf32>
    %c125_i32 = arith.constant 125 : i32
    %228 = tpu.dynamic_rotate %222 by %c125_i32 dim 1 : vector<32x128xf32>, i32 -> vector<32x128xf32>
    %229 = vector.shape_cast %22 : vector<1x128xi1> to vector<1x128xi1>
    %230 = vector.broadcast %229 : vector<1x128xi1> to vector<32x128xi1>
    %231 = arith.select %230, %228, %223 : vector<32x128xi1>, vector<32x128xf32>
    %c1 = arith.constant 1 : index
    %c0_90 = arith.constant 0 : index
    %c0_91 = arith.constant 0 : index
    %232 = vector.load %arg7[%c1, %c0_90, %c0_91] : memref<3x32x1xf32, #tpu.memory_space<vmem>>, vector<1x32x1xf32>
    %233 = vector.shape_cast %232 : vector<1x32x1xf32> to vector<32x1xf32>
    %c1_92 = arith.constant 1 : index
    %c0_93 = arith.constant 0 : index
    %c0_94 = arith.constant 0 : index
    %234 = vector.load %arg6[%c1_92, %c0_93, %c0_94] : memref<3x32x96xf32, #tpu.memory_space<vmem>>, vector<1x32x96xf32>
    %235 = vector.shape_cast %234 : vector<1x32x96xf32> to vector<32x96xf32>
    %236 = tpu.concatenate %227, %222, %231 in 0 : vector<32x128xf32>, vector<32x128xf32>, vector<32x128xf32> -> vector<96x128xf32>
    %cst_95 = arith.constant dense<0.000000e+00> : vector<32x128xf32>
    %237 = tpu.matmul %235, %236, %cst_95 {dimension_numbers = #tpu.dot_dimension_numbers<[1], [0], [0], [1], [0, 0, 1, 1], [], []>} : vector<32x96xf32>, vector<96x128xf32>, vector<32x128xf32> -> vector<32x128xf32>
    %238 = vector.broadcast %233 : vector<32x1xf32> to vector<32x128xf32>
    %239 = arith.addf %237, %238 : vector<32x128xf32>
    %c1_96 = arith.constant 1 : index
    %c0_97 = arith.constant 0 : index
    %c0_98 = arith.constant 0 : index
    %240 = vector.load %arg8[%c1_96, %c0_97, %c0_98] : memref<3x32x1xf32, #tpu.memory_space<vmem>>, vector<1x32x1xf32>
    %241 = vector.shape_cast %240 : vector<1x32x1xf32> to vector<32x1xf32>
    %c1_99 = arith.constant 1 : index
    %c0_100 = arith.constant 0 : index
    %c0_101 = arith.constant 0 : index
    %242 = vector.load %arg9[%c1_99, %c0_100, %c0_101] : memref<3x32x1xf32, #tpu.memory_space<vmem>>, vector<1x32x1xf32>
    %243 = vector.shape_cast %242 : vector<1x32x1xf32> to vector<32x1xf32>
    %cst_102 = arith.constant dense<0.000000e+00> : vector<128xf32>
    %244 = vector.multi_reduction <add>, %239, %cst_102 [0] : vector<32x128xf32> to vector<128xf32>
    %245 = vector.shape_cast %244 : vector<128xf32> to vector<1x128xf32>
    %246 = arith.mulf %239, %239 : vector<32x128xf32>
    %cst_103 = arith.constant dense<0.000000e+00> : vector<128xf32>
    %247 = vector.multi_reduction <add>, %246, %cst_103 [0] : vector<32x128xf32> to vector<128xf32>
    %248 = vector.shape_cast %247 : vector<128xf32> to vector<1x128xf32>
    %249 = arith.mulf %245, %4 : vector<1x128xf32>
    %250 = vector.shape_cast %249 : vector<1x128xf32> to vector<1x1x128xf32>
    %cst_104 = arith.constant dense<0.000000e+00> : vector<1xf32>
    %251 = vector.multi_reduction <add>, %250, %cst_104 [1, 2] : vector<1x1x128xf32> to vector<1xf32>
    %252 = vector.shape_cast %251 : vector<1xf32> to vector<1x1x1xf32>
    %253 = vector.extract %252[0, 0, 0] : f32 from vector<1x1x1xf32>
    %254 = arith.mulf %248, %4 : vector<1x128xf32>
    %255 = vector.shape_cast %254 : vector<1x128xf32> to vector<1x1x128xf32>
    %cst_105 = arith.constant dense<0.000000e+00> : vector<1xf32>
    %256 = vector.multi_reduction <add>, %255, %cst_105 [1, 2] : vector<1x1x128xf32> to vector<1xf32>
    %257 = vector.shape_cast %256 : vector<1xf32> to vector<1x1x1xf32>
    %258 = vector.extract %257[0, 0, 0] : f32 from vector<1x1x1xf32>
    %cst_106 = arith.constant 0.001953125 : f32
    %259 = arith.mulf %253, %cst_106 : f32
    %cst_107 = arith.constant 0.001953125 : f32
    %260 = arith.mulf %258, %cst_107 : f32
    %261 = arith.mulf %259, %259 : f32
    %262 = arith.subf %260, %261 : f32
    %cst_108 = arith.constant 0.000000e+00 : f32
    %263 = arith.maximumf %262, %cst_108 : f32
    %cst_109 = arith.constant 9.99999974E-6 : f32
    %264 = arith.addf %263, %cst_109 : f32
    %265 = math.rsqrt %264 : f32
    %266 = vector.broadcast %265 : f32 to vector<32x1xf32>
    %267 = arith.mulf %241, %266 : vector<32x1xf32>
    %268 = arith.mulf %259, %265 : f32
    %269 = vector.broadcast %268 : f32 to vector<32x1xf32>
    %270 = arith.mulf %269, %241 : vector<32x1xf32>
    %271 = arith.subf %243, %270 : vector<32x1xf32>
    %272 = vector.broadcast %267 : vector<32x1xf32> to vector<32x128xf32>
    %273 = arith.mulf %239, %272 : vector<32x128xf32>
    %274 = vector.broadcast %271 : vector<32x1xf32> to vector<32x128xf32>
    %275 = arith.addf %273, %274 : vector<32x128xf32>
    %cst_110 = arith.constant 0.000000e+00 : f32
    %276 = vector.broadcast %cst_110 : f32 to vector<32x128xf32>
    %277 = arith.maximumf %275, %276 : vector<32x128xf32>
    %cst_111 = arith.constant 0.000000e+00 : f32
    %278 = vector.broadcast %cst_111 : f32 to vector<32x128xf32>
    %c1_i32_112 = arith.constant 1 : i32
    %279 = tpu.dynamic_rotate %277 by %c1_i32_112 dim 1 : vector<32x128xf32>, i32 -> vector<32x128xf32>
    %280 = vector.shape_cast %58 : vector<1x128xi1> to vector<1x128xi1>
    %281 = vector.broadcast %280 : vector<1x128xi1> to vector<32x128xi1>
    %282 = arith.select %281, %279, %278 : vector<32x128xi1>, vector<32x128xf32>
    %c127_i32_113 = arith.constant 127 : i32
    %283 = tpu.dynamic_rotate %277 by %c127_i32_113 dim 1 : vector<32x128xf32>, i32 -> vector<32x128xf32>
    %284 = vector.shape_cast %13 : vector<1x128xi1> to vector<1x128xi1>
    %285 = vector.broadcast %284 : vector<1x128xi1> to vector<32x128xi1>
    %286 = arith.select %285, %283, %278 : vector<32x128xi1>, vector<32x128xf32>
    %c1_114 = arith.constant 1 : index
    %c0_115 = arith.constant 0 : index
    %c0_116 = arith.constant 0 : index
    %287 = vector.load %arg11[%c1_114, %c0_115, %c0_116] : memref<3x32x1xf32, #tpu.memory_space<vmem>>, vector<1x32x1xf32>
    %288 = vector.shape_cast %287 : vector<1x32x1xf32> to vector<32x1xf32>
    %c1_117 = arith.constant 1 : index
    %c0_118 = arith.constant 0 : index
    %c0_119 = arith.constant 0 : index
    %289 = vector.load %arg10[%c1_117, %c0_118, %c0_119] : memref<3x32x96xf32, #tpu.memory_space<vmem>>, vector<1x32x96xf32>
    %290 = vector.shape_cast %289 : vector<1x32x96xf32> to vector<32x96xf32>
    %291 = tpu.concatenate %282, %277, %286 in 0 : vector<32x128xf32>, vector<32x128xf32>, vector<32x128xf32> -> vector<96x128xf32>
    %cst_120 = arith.constant dense<0.000000e+00> : vector<32x128xf32>
    %292 = tpu.matmul %290, %291, %cst_120 {dimension_numbers = #tpu.dot_dimension_numbers<[1], [0], [0], [1], [0, 0, 1, 1], [], []>} : vector<32x96xf32>, vector<96x128xf32>, vector<32x128xf32> -> vector<32x128xf32>
    %293 = vector.broadcast %288 : vector<32x1xf32> to vector<32x128xf32>
    %294 = arith.addf %292, %293 : vector<32x128xf32>
    %c1_121 = arith.constant 1 : index
    %c0_122 = arith.constant 0 : index
    %c0_123 = arith.constant 0 : index
    %295 = vector.load %arg12[%c1_121, %c0_122, %c0_123] : memref<3x32x1xf32, #tpu.memory_space<vmem>>, vector<1x32x1xf32>
    %296 = vector.shape_cast %295 : vector<1x32x1xf32> to vector<32x1xf32>
    %c1_124 = arith.constant 1 : index
    %c0_125 = arith.constant 0 : index
    %c0_126 = arith.constant 0 : index
    %297 = vector.load %arg13[%c1_124, %c0_125, %c0_126] : memref<3x32x1xf32, #tpu.memory_space<vmem>>, vector<1x32x1xf32>
    %298 = vector.shape_cast %297 : vector<1x32x1xf32> to vector<32x1xf32>
    %cst_127 = arith.constant dense<0.000000e+00> : vector<128xf32>
    %299 = vector.multi_reduction <add>, %294, %cst_127 [0] : vector<32x128xf32> to vector<128xf32>
    %300 = vector.shape_cast %299 : vector<128xf32> to vector<1x128xf32>
    %301 = arith.mulf %294, %294 : vector<32x128xf32>
    %cst_128 = arith.constant dense<0.000000e+00> : vector<128xf32>
    %302 = vector.multi_reduction <add>, %301, %cst_128 [0] : vector<32x128xf32> to vector<128xf32>
    %303 = vector.shape_cast %302 : vector<128xf32> to vector<1x128xf32>
    %304 = arith.mulf %300, %4 : vector<1x128xf32>
    %305 = vector.shape_cast %304 : vector<1x128xf32> to vector<1x1x128xf32>
    %cst_129 = arith.constant dense<0.000000e+00> : vector<1xf32>
    %306 = vector.multi_reduction <add>, %305, %cst_129 [1, 2] : vector<1x1x128xf32> to vector<1xf32>
    %307 = vector.shape_cast %306 : vector<1xf32> to vector<1x1x1xf32>
    %308 = vector.extract %307[0, 0, 0] : f32 from vector<1x1x1xf32>
    %309 = arith.mulf %303, %4 : vector<1x128xf32>
    %310 = vector.shape_cast %309 : vector<1x128xf32> to vector<1x1x128xf32>
    %cst_130 = arith.constant dense<0.000000e+00> : vector<1xf32>
    %311 = vector.multi_reduction <add>, %310, %cst_130 [1, 2] : vector<1x1x128xf32> to vector<1xf32>
    %312 = vector.shape_cast %311 : vector<1xf32> to vector<1x1x1xf32>
    %313 = vector.extract %312[0, 0, 0] : f32 from vector<1x1x1xf32>
    %cst_131 = arith.constant 0.001953125 : f32
    %314 = arith.mulf %308, %cst_131 : f32
    %cst_132 = arith.constant 0.001953125 : f32
    %315 = arith.mulf %313, %cst_132 : f32
    %316 = arith.mulf %314, %314 : f32
    %317 = arith.subf %315, %316 : f32
    %cst_133 = arith.constant 0.000000e+00 : f32
    %318 = arith.maximumf %317, %cst_133 : f32
    %cst_134 = arith.constant 9.99999974E-6 : f32
    %319 = arith.addf %318, %cst_134 : f32
    %320 = math.rsqrt %319 : f32
    %321 = vector.broadcast %320 : f32 to vector<32x1xf32>
    %322 = arith.mulf %296, %321 : vector<32x1xf32>
    %323 = arith.mulf %314, %320 : f32
    %324 = vector.broadcast %323 : f32 to vector<32x1xf32>
    %325 = arith.mulf %324, %296 : vector<32x1xf32>
    %326 = arith.subf %298, %325 : vector<32x1xf32>
    %327 = vector.broadcast %322 : vector<32x1xf32> to vector<32x128xf32>
    %328 = arith.mulf %294, %327 : vector<32x128xf32>
    %329 = vector.broadcast %326 : vector<32x1xf32> to vector<32x128xf32>
    %330 = arith.addf %328, %329 : vector<32x128xf32>
    %331 = arith.addf %330, %222 : vector<32x128xf32>
    %cst_135 = arith.constant 0.000000e+00 : f32
    %332 = vector.broadcast %cst_135 : f32 to vector<32x128xf32>
    %333 = arith.maximumf %331, %332 : vector<32x128xf32>
    %cst_136 = arith.constant 0.000000e+00 : f32
    %334 = vector.broadcast %cst_136 : f32 to vector<32x128xf32>
    %c9_i32_137 = arith.constant 9 : i32
    %335 = tpu.dynamic_rotate %333 by %c9_i32_137 dim 1 : vector<32x128xf32>, i32 -> vector<32x128xf32>
    %336 = vector.shape_cast %40 : vector<1x128xi1> to vector<1x128xi1>
    %337 = vector.broadcast %336 : vector<1x128xi1> to vector<32x128xi1>
    %338 = arith.select %337, %335, %334 : vector<32x128xi1>, vector<32x128xf32>
    %c119_i32 = arith.constant 119 : i32
    %339 = tpu.dynamic_rotate %333 by %c119_i32 dim 1 : vector<32x128xf32>, i32 -> vector<32x128xf32>
    %340 = vector.shape_cast %31 : vector<1x128xi1> to vector<1x128xi1>
    %341 = vector.broadcast %340 : vector<1x128xi1> to vector<32x128xi1>
    %342 = arith.select %341, %339, %334 : vector<32x128xi1>, vector<32x128xf32>
    %c2 = arith.constant 2 : index
    %c0_138 = arith.constant 0 : index
    %c0_139 = arith.constant 0 : index
    %343 = vector.load %arg7[%c2, %c0_138, %c0_139] : memref<3x32x1xf32, #tpu.memory_space<vmem>>, vector<1x32x1xf32>
    %344 = vector.shape_cast %343 : vector<1x32x1xf32> to vector<32x1xf32>
    %c2_140 = arith.constant 2 : index
    %c0_141 = arith.constant 0 : index
    %c0_142 = arith.constant 0 : index
    %345 = vector.load %arg6[%c2_140, %c0_141, %c0_142] : memref<3x32x96xf32, #tpu.memory_space<vmem>>, vector<1x32x96xf32>
    %346 = vector.shape_cast %345 : vector<1x32x96xf32> to vector<32x96xf32>
    %347 = tpu.concatenate %338, %333, %342 in 0 : vector<32x128xf32>, vector<32x128xf32>, vector<32x128xf32> -> vector<96x128xf32>
    %cst_143 = arith.constant dense<0.000000e+00> : vector<32x128xf32>
    %348 = tpu.matmul %346, %347, %cst_143 {dimension_numbers = #tpu.dot_dimension_numbers<[1], [0], [0], [1], [0, 0, 1, 1], [], []>} : vector<32x96xf32>, vector<96x128xf32>, vector<32x128xf32> -> vector<32x128xf32>
    %349 = vector.broadcast %344 : vector<32x1xf32> to vector<32x128xf32>
    %350 = arith.addf %348, %349 : vector<32x128xf32>
    %c2_144 = arith.constant 2 : index
    %c0_145 = arith.constant 0 : index
    %c0_146 = arith.constant 0 : index
    %351 = vector.load %arg8[%c2_144, %c0_145, %c0_146] : memref<3x32x1xf32, #tpu.memory_space<vmem>>, vector<1x32x1xf32>
    %352 = vector.shape_cast %351 : vector<1x32x1xf32> to vector<32x1xf32>
    %c2_147 = arith.constant 2 : index
    %c0_148 = arith.constant 0 : index
    %c0_149 = arith.constant 0 : index
    %353 = vector.load %arg9[%c2_147, %c0_148, %c0_149] : memref<3x32x1xf32, #tpu.memory_space<vmem>>, vector<1x32x1xf32>
    %354 = vector.shape_cast %353 : vector<1x32x1xf32> to vector<32x1xf32>
    %cst_150 = arith.constant dense<0.000000e+00> : vector<128xf32>
    %355 = vector.multi_reduction <add>, %350, %cst_150 [0] : vector<32x128xf32> to vector<128xf32>
    %356 = vector.shape_cast %355 : vector<128xf32> to vector<1x128xf32>
    %357 = arith.mulf %350, %350 : vector<32x128xf32>
    %cst_151 = arith.constant dense<0.000000e+00> : vector<128xf32>
    %358 = vector.multi_reduction <add>, %357, %cst_151 [0] : vector<32x128xf32> to vector<128xf32>
    %359 = vector.shape_cast %358 : vector<128xf32> to vector<1x128xf32>
    %360 = arith.mulf %356, %4 : vector<1x128xf32>
    %361 = vector.shape_cast %360 : vector<1x128xf32> to vector<1x1x128xf32>
    %cst_152 = arith.constant dense<0.000000e+00> : vector<1xf32>
    %362 = vector.multi_reduction <add>, %361, %cst_152 [1, 2] : vector<1x1x128xf32> to vector<1xf32>
    %363 = vector.shape_cast %362 : vector<1xf32> to vector<1x1x1xf32>
    %364 = vector.extract %363[0, 0, 0] : f32 from vector<1x1x1xf32>
    %365 = arith.mulf %359, %4 : vector<1x128xf32>
    %366 = vector.shape_cast %365 : vector<1x128xf32> to vector<1x1x128xf32>
    %cst_153 = arith.constant dense<0.000000e+00> : vector<1xf32>
    %367 = vector.multi_reduction <add>, %366, %cst_153 [1, 2] : vector<1x1x128xf32> to vector<1xf32>
    %368 = vector.shape_cast %367 : vector<1xf32> to vector<1x1x1xf32>
    %369 = vector.extract %368[0, 0, 0] : f32 from vector<1x1x1xf32>
    %cst_154 = arith.constant 0.001953125 : f32
    %370 = arith.mulf %364, %cst_154 : f32
    %cst_155 = arith.constant 0.001953125 : f32
    %371 = arith.mulf %369, %cst_155 : f32
    %372 = arith.mulf %370, %370 : f32
    %373 = arith.subf %371, %372 : f32
    %cst_156 = arith.constant 0.000000e+00 : f32
    %374 = arith.maximumf %373, %cst_156 : f32
    %cst_157 = arith.constant 9.99999974E-6 : f32
    %375 = arith.addf %374, %cst_157 : f32
    %376 = math.rsqrt %375 : f32
    %377 = vector.broadcast %376 : f32 to vector<32x1xf32>
    %378 = arith.mulf %352, %377 : vector<32x1xf32>
    %379 = arith.mulf %370, %376 : f32
    %380 = vector.broadcast %379 : f32 to vector<32x1xf32>
    %381 = arith.mulf %380, %352 : vector<32x1xf32>
    %382 = arith.subf %354, %381 : vector<32x1xf32>
    %383 = vector.broadcast %378 : vector<32x1xf32> to vector<32x128xf32>
    %384 = arith.mulf %350, %383 : vector<32x128xf32>
    %385 = vector.broadcast %382 : vector<32x1xf32> to vector<32x128xf32>
    %386 = arith.addf %384, %385 : vector<32x128xf32>
    %cst_158 = arith.constant 0.000000e+00 : f32
    %387 = vector.broadcast %cst_158 : f32 to vector<32x128xf32>
    %388 = arith.maximumf %386, %387 : vector<32x128xf32>
    %cst_159 = arith.constant 0.000000e+00 : f32
    %389 = vector.broadcast %cst_159 : f32 to vector<32x128xf32>
    %c1_i32_160 = arith.constant 1 : i32
    %390 = tpu.dynamic_rotate %388 by %c1_i32_160 dim 1 : vector<32x128xf32>, i32 -> vector<32x128xf32>
    %391 = vector.shape_cast %58 : vector<1x128xi1> to vector<1x128xi1>
    %392 = vector.broadcast %391 : vector<1x128xi1> to vector<32x128xi1>
    %393 = arith.select %392, %390, %389 : vector<32x128xi1>, vector<32x128xf32>
    %c127_i32_161 = arith.constant 127 : i32
    %394 = tpu.dynamic_rotate %388 by %c127_i32_161 dim 1 : vector<32x128xf32>, i32 -> vector<32x128xf32>
    %395 = vector.shape_cast %13 : vector<1x128xi1> to vector<1x128xi1>
    %396 = vector.broadcast %395 : vector<1x128xi1> to vector<32x128xi1>
    %397 = arith.select %396, %394, %389 : vector<32x128xi1>, vector<32x128xf32>
    %c2_162 = arith.constant 2 : index
    %c0_163 = arith.constant 0 : index
    %c0_164 = arith.constant 0 : index
    %398 = vector.load %arg11[%c2_162, %c0_163, %c0_164] : memref<3x32x1xf32, #tpu.memory_space<vmem>>, vector<1x32x1xf32>
    %399 = vector.shape_cast %398 : vector<1x32x1xf32> to vector<32x1xf32>
    %c2_165 = arith.constant 2 : index
    %c0_166 = arith.constant 0 : index
    %c0_167 = arith.constant 0 : index
    %400 = vector.load %arg10[%c2_165, %c0_166, %c0_167] : memref<3x32x96xf32, #tpu.memory_space<vmem>>, vector<1x32x96xf32>
    %401 = vector.shape_cast %400 : vector<1x32x96xf32> to vector<32x96xf32>
    %402 = tpu.concatenate %393, %388, %397 in 0 : vector<32x128xf32>, vector<32x128xf32>, vector<32x128xf32> -> vector<96x128xf32>
    %cst_168 = arith.constant dense<0.000000e+00> : vector<32x128xf32>
    %403 = tpu.matmul %401, %402, %cst_168 {dimension_numbers = #tpu.dot_dimension_numbers<[1], [0], [0], [1], [0, 0, 1, 1], [], []>} : vector<32x96xf32>, vector<96x128xf32>, vector<32x128xf32> -> vector<32x128xf32>
    %404 = vector.broadcast %399 : vector<32x1xf32> to vector<32x128xf32>
    %405 = arith.addf %403, %404 : vector<32x128xf32>
    %c2_169 = arith.constant 2 : index
    %c0_170 = arith.constant 0 : index
    %c0_171 = arith.constant 0 : index
    %406 = vector.load %arg12[%c2_169, %c0_170, %c0_171] : memref<3x32x1xf32, #tpu.memory_space<vmem>>, vector<1x32x1xf32>
    %407 = vector.shape_cast %406 : vector<1x32x1xf32> to vector<32x1xf32>
    %c2_172 = arith.constant 2 : index
    %c0_173 = arith.constant 0 : index
    %c0_174 = arith.constant 0 : index
    %408 = vector.load %arg13[%c2_172, %c0_173, %c0_174] : memref<3x32x1xf32, #tpu.memory_space<vmem>>, vector<1x32x1xf32>
    %409 = vector.shape_cast %408 : vector<1x32x1xf32> to vector<32x1xf32>
    %cst_175 = arith.constant dense<0.000000e+00> : vector<128xf32>
    %410 = vector.multi_reduction <add>, %405, %cst_175 [0] : vector<32x128xf32> to vector<128xf32>
    %411 = vector.shape_cast %410 : vector<128xf32> to vector<1x128xf32>
    %412 = arith.mulf %405, %405 : vector<32x128xf32>
    %cst_176 = arith.constant dense<0.000000e+00> : vector<128xf32>
    %413 = vector.multi_reduction <add>, %412, %cst_176 [0] : vector<32x128xf32> to vector<128xf32>
    %414 = vector.shape_cast %413 : vector<128xf32> to vector<1x128xf32>
    %415 = arith.mulf %411, %4 : vector<1x128xf32>
    %416 = vector.shape_cast %415 : vector<1x128xf32> to vector<1x1x128xf32>
    %cst_177 = arith.constant dense<0.000000e+00> : vector<1xf32>
    %417 = vector.multi_reduction <add>, %416, %cst_177 [1, 2] : vector<1x1x128xf32> to vector<1xf32>
    %418 = vector.shape_cast %417 : vector<1xf32> to vector<1x1x1xf32>
    %419 = vector.extract %418[0, 0, 0] : f32 from vector<1x1x1xf32>
    %420 = arith.mulf %414, %4 : vector<1x128xf32>
    %421 = vector.shape_cast %420 : vector<1x128xf32> to vector<1x1x128xf32>
    %cst_178 = arith.constant dense<0.000000e+00> : vector<1xf32>
    %422 = vector.multi_reduction <add>, %421, %cst_178 [1, 2] : vector<1x1x128xf32> to vector<1xf32>
    %423 = vector.shape_cast %422 : vector<1xf32> to vector<1x1x1xf32>
    %424 = vector.extract %423[0, 0, 0] : f32 from vector<1x1x1xf32>
    %cst_179 = arith.constant 0.001953125 : f32
    %425 = arith.mulf %419, %cst_179 : f32
    %cst_180 = arith.constant 0.001953125 : f32
    %426 = arith.mulf %424, %cst_180 : f32
    %427 = arith.mulf %425, %425 : f32
    %428 = arith.subf %426, %427 : f32
    %cst_181 = arith.constant 0.000000e+00 : f32
    %429 = arith.maximumf %428, %cst_181 : f32
    %cst_182 = arith.constant 9.99999974E-6 : f32
    %430 = arith.addf %429, %cst_182 : f32
    %431 = math.rsqrt %430 : f32
    %432 = vector.broadcast %431 : f32 to vector<32x1xf32>
    %433 = arith.mulf %407, %432 : vector<32x1xf32>
    %434 = arith.mulf %425, %431 : f32
    %435 = vector.broadcast %434 : f32 to vector<32x1xf32>
    %436 = arith.mulf %435, %407 : vector<32x1xf32>
    %437 = arith.subf %409, %436 : vector<32x1xf32>
    %438 = vector.broadcast %433 : vector<32x1xf32> to vector<32x128xf32>
    %439 = arith.mulf %405, %438 : vector<32x128xf32>
    %440 = vector.broadcast %437 : vector<32x1xf32> to vector<32x128xf32>
    %441 = arith.addf %439, %440 : vector<32x128xf32>
    %442 = arith.addf %441, %333 : vector<32x128xf32>
    %cst_183 = arith.constant 0.000000e+00 : f32
    %443 = vector.broadcast %cst_183 : f32 to vector<32x128xf32>
    %444 = arith.maximumf %442, %443 : vector<32x128xf32>
    %c0_184 = arith.constant 0 : index
    %c0_185 = arith.constant 0 : index
    %c0_186 = arith.constant 0 : index
    %445 = vector.load %arg14[%c0_184, %c0_185, %c0_186] : memref<1x32x128xf32, #tpu.memory_space<vmem>>, vector<1x32x128xf32>
    %446 = vector.shape_cast %445 : vector<1x32x128xf32> to vector<32x128xf32>
    %447 = vector.shape_cast %444 : vector<32x128xf32> to vector<1x32x128xf32>
    tpu.vector_store %arg14[%c0_184, %c0_185, %c0_186], %447 {strides = array<i32>} : memref<1x32x128xf32, #tpu.memory_space<vmem>>, vector<1x32x128xf32>,
    return
  }
  func.func @transform_0(%arg0: i32) -> (i32, i32, i32) {
    %c0_i32 = arith.constant 0 : i32
    %c0_i32_0 = arith.constant 0 : i32
    %c0_i32_1 = arith.constant 0 : i32
    return %arg0, %c0_i32, %c0_i32_0 : i32, i32, i32
  }
  func.func @transform_1(%arg0: i32) -> (i32, i32) {
    %c0_i32 = arith.constant 0 : i32
    %c0_i32_0 = arith.constant 0 : i32
    %c0_i32_1 = arith.constant 0 : i32
    return %c0_i32, %c0_i32_0 : i32, i32
  }
  func.func @transform_2(%arg0: i32) -> (i32, i32) {
    %c0_i32 = arith.constant 0 : i32
    %c0_i32_0 = arith.constant 0 : i32
    %c0_i32_1 = arith.constant 0 : i32
    return %c0_i32, %c0_i32_0 : i32, i32
  }
  func.func @transform_3(%arg0: i32) -> (i32, i32) {
    %c0_i32 = arith.constant 0 : i32
    %c0_i32_0 = arith.constant 0 : i32
    %c0_i32_1 = arith.constant 0 : i32
    return %c0_i32, %c0_i32_0 : i32, i32
  }
  func.func @transform_4(%arg0: i32) -> (i32, i32) {
    %c0_i32 = arith.constant 0 : i32
    %c0_i32_0 = arith.constant 0 : i32
    %c0_i32_1 = arith.constant 0 : i32
    return %c0_i32, %c0_i32_0 : i32, i32
  }
  func.func @transform_5(%arg0: i32) -> (i32, i32, i32) {
    %c0_i32 = arith.constant 0 : i32
    %c0_i32_0 = arith.constant 0 : i32
    %c0_i32_1 = arith.constant 0 : i32
    %c0_i32_2 = arith.constant 0 : i32
    return %c0_i32, %c0_i32_0, %c0_i32_1 : i32, i32, i32
  }
  func.func @transform_6(%arg0: i32) -> (i32, i32, i32) {
    %c0_i32 = arith.constant 0 : i32
    %c0_i32_0 = arith.constant 0 : i32
    %c0_i32_1 = arith.constant 0 : i32
    %c0_i32_2 = arith.constant 0 : i32
    return %c0_i32, %c0_i32_0, %c0_i32_1 : i32, i32, i32
  }
  func.func @transform_7(%arg0: i32) -> (i32, i32, i32) {
    %c0_i32 = arith.constant 0 : i32
    %c0_i32_0 = arith.constant 0 : i32
    %c0_i32_1 = arith.constant 0 : i32
    %c0_i32_2 = arith.constant 0 : i32
    return %c0_i32, %c0_i32_0, %c0_i32_1 : i32, i32, i32
  }
  func.func @transform_8(%arg0: i32) -> (i32, i32, i32) {
    %c0_i32 = arith.constant 0 : i32
    %c0_i32_0 = arith.constant 0 : i32
    %c0_i32_1 = arith.constant 0 : i32
    %c0_i32_2 = arith.constant 0 : i32
    return %c0_i32, %c0_i32_0, %c0_i32_1 : i32, i32, i32
  }
  func.func @transform_9(%arg0: i32) -> (i32, i32, i32) {
    %c0_i32 = arith.constant 0 : i32
    %c0_i32_0 = arith.constant 0 : i32
    %c0_i32_1 = arith.constant 0 : i32
    %c0_i32_2 = arith.constant 0 : i32
    return %c0_i32, %c0_i32_0, %c0_i32_1 : i32, i32, i32
  }
  func.func @transform_10(%arg0: i32) -> (i32, i32, i32) {
    %c0_i32 = arith.constant 0 : i32
    %c0_i32_0 = arith.constant 0 : i32
    %c0_i32_1 = arith.constant 0 : i32
    %c0_i32_2 = arith.constant 0 : i32
    return %c0_i32, %c0_i32_0, %c0_i32_1 : i32, i32, i32
  }
  func.func @transform_11(%arg0: i32) -> (i32, i32, i32) {
    %c0_i32 = arith.constant 0 : i32
    %c0_i32_0 = arith.constant 0 : i32
    %c0_i32_1 = arith.constant 0 : i32
    %c0_i32_2 = arith.constant 0 : i32
    return %c0_i32, %c0_i32_0, %c0_i32_1 : i32, i32, i32
  }
  func.func @transform_12(%arg0: i32) -> (i32, i32, i32) {
    %c0_i32 = arith.constant 0 : i32
    %c0_i32_0 = arith.constant 0 : i32
    %c0_i32_1 = arith.constant 0 : i32
    %c0_i32_2 = arith.constant 0 : i32
    return %c0_i32, %c0_i32_0, %c0_i32_1 : i32, i32, i32
  }
  func.func @transform_13(%arg0: i32) -> (i32, i32, i32) {
    %c0_i32 = arith.constant 0 : i32
    %c0_i32_0 = arith.constant 0 : i32
    %c0_i32_1 = arith.constant 0 : i32
    return %arg0, %c0_i32, %c0_i32_0 : i32, i32, i32
  }
}

module attributes {stable_mosaic.version = 11 : i64} {
  func.func @encoder_kernel(%arg0: i32, %arg1: memref<1x16x128xf32, #tpu.memory_space<vmem>>, %arg2: memref<32x48xf32, #tpu.memory_space<vmem>>, %arg3: memref<32x1xf32, #tpu.memory_space<vmem>>, %arg4: memref<32x1xf32, #tpu.memory_space<vmem>>, %arg5: memref<32x1xf32, #tpu.memory_space<vmem>>, %arg6: memref<3x32x96xf32, #tpu.memory_space<vmem>>, %arg7: memref<3x32x1xf32, #tpu.memory_space<vmem>>, %arg8: memref<3x32x1xf32, #tpu.memory_space<vmem>>, %arg9: memref<3x32x1xf32, #tpu.memory_space<vmem>>, %arg10: memref<3x32x96xf32, #tpu.memory_space<vmem>>, %arg11: memref<3x32x1xf32, #tpu.memory_space<vmem>>, %arg12: memref<3x32x1xf32, #tpu.memory_space<vmem>>, %arg13: memref<3x32x1xf32, #tpu.memory_space<vmem>>, %arg14: memref<1x32x128xf32, #tpu.memory_space<vmem>>) attributes {dimension_semantics = [#tpu.dimension_semantics<parallel>], iteration_bounds = array<i64: 2>, scalar_prefetch = 0 : i64, scratch_operands = 0 : i64, tpu.core_type = #tpu.core_type<tc>, window_params = [{transform_indices = @transform_0, window_bounds = array<i64: 1, 16, 128>}, {pipeline_mode = #tpu.pipeline_mode<synchronous>, transform_indices = @transform_1, window_bounds = array<i64: 32, 48>}, {pipeline_mode = #tpu.pipeline_mode<synchronous>, transform_indices = @transform_2, window_bounds = array<i64: 32, 1>}, {pipeline_mode = #tpu.pipeline_mode<synchronous>, transform_indices = @transform_3, window_bounds = array<i64: 32, 1>}, {pipeline_mode = #tpu.pipeline_mode<synchronous>, transform_indices = @transform_4, window_bounds = array<i64: 32, 1>}, {pipeline_mode = #tpu.pipeline_mode<synchronous>, transform_indices = @transform_5, window_bounds = array<i64: 3, 32, 96>}, {pipeline_mode = #tpu.pipeline_mode<synchronous>, transform_indices = @transform_6, window_bounds = array<i64: 3, 32, 1>}, {pipeline_mode = #tpu.pipeline_mode<synchronous>, transform_indices = @transform_7, window_bounds = array<i64: 3, 32, 1>}, {pipeline_mode = #tpu.pipeline_mode<synchronous>, transform_indices = @transform_8, window_bounds = array<i64: 3, 32, 1>}, {pipeline_mode = #tpu.pipeline_mode<synchronous>, transform_indices = @transform_9, window_bounds = array<i64: 3, 32, 96>}, {pipeline_mode = #tpu.pipeline_mode<synchronous>, transform_indices = @transform_10, window_bounds = array<i64: 3, 32, 1>}, {pipeline_mode = #tpu.pipeline_mode<synchronous>, transform_indices = @transform_11, window_bounds = array<i64: 3, 32, 1>}, {pipeline_mode = #tpu.pipeline_mode<synchronous>, transform_indices = @transform_12, window_bounds = array<i64: 3, 32, 1>}, {transform_indices = @transform_13, window_bounds = array<i64: 1, 32, 128>}]} {
    %0 = tpu.iota {dimensions = array<i32: 1>} : vector<1x128xi32>
    %c16_i32 = arith.constant 16 : i32
    %1 = vector.broadcast %c16_i32 : i32 to vector<1x128xi32>
    %2 = arith.cmpi slt, %0, %1 : vector<1x128xi32>
    %3 = arith.extui %2 : vector<1x128xi1> to vector<1x128xi32>
    %4 = arith.sitofp %3 : vector<1x128xi32> to vector<1x128xf32>
    %c1_i32 = arith.constant 1 : i32
    %5 = vector.broadcast %c1_i32 : i32 to vector<1x128xi32>
    %6 = arith.addi %0, %5 : vector<1x128xi32>
    %c0_i32 = arith.constant 0 : i32
    %7 = vector.broadcast %c0_i32 : i32 to vector<1x128xi32>
    %8 = arith.cmpi sge, %6, %7 : vector<1x128xi32>
    %c1_i32_0 = arith.constant 1 : i32
    %9 = vector.broadcast %c1_i32_0 : i32 to vector<1x128xi32>
    %10 = arith.addi %0, %9 : vector<1x128xi32>
    %c16_i32_1 = arith.constant 16 : i32
    %11 = vector.broadcast %c16_i32_1 : i32 to vector<1x128xi32>
    %12 = arith.cmpi slt, %10, %11 : vector<1x128xi32>
    %13 = arith.andi %8, %12 : vector<1x128xi1>
    %c3_i32 = arith.constant 3 : i32
    %14 = vector.broadcast %c3_i32 : i32 to vector<1x128xi32>
    %15 = arith.addi %0, %14 : vector<1x128xi32>
    %c0_i32_2 = arith.constant 0 : i32
    %16 = vector.broadcast %c0_i32_2 : i32 to vector<1x128xi32>
    %17 = arith.cmpi sge, %15, %16 : vector<1x128xi32>
    %c3_i32_3 = arith.constant 3 : i32
    %18 = vector.broadcast %c3_i32_3 : i32 to vector<1x128xi32>
    %19 = arith.addi %0, %18 : vector<1x128xi32>
    %c16_i32_4 = arith.constant 16 : i32
    %20 = vector.broadcast %c16_i32_4 : i32 to vector<1x128xi32>
    %21 = arith.cmpi slt, %19, %20 : vector<1x128xi32>
    %22 = arith.andi %17, %21 : vector<1x128xi1>
    %c9_i32 = arith.constant 9 : i32
    %23 = vector.broadcast %c9_i32 : i32 to vector<1x128xi32>
    %24 = arith.addi %0, %23 : vector<1x128xi32>
    %c0_i32_5 = arith.constant 0 : i32
    %25 = vector.broadcast %c0_i32_5 : i32 to vector<1x128xi32>
    %26 = arith.cmpi sge, %24, %25 : vector<1x128xi32>
    %c9_i32_6 = arith.constant 9 : i32
    %27 = vector.broadcast %c9_i32_6 : i32 to vector<1x128xi32>
    %28 = arith.addi %0, %27 : vector<1x128xi32>
    %c16_i32_7 = arith.constant 16 : i32
    %29 = vector.broadcast %c16_i32_7 : i32 to vector<1x128xi32>
    %30 = arith.cmpi slt, %28, %29 : vector<1x128xi32>
    %31 = arith.andi %26, %30 : vector<1x128xi1>
    %c-9_i32 = arith.constant -9 : i32
    %32 = vector.broadcast %c-9_i32 : i32 to vector<1x128xi32>
    %33 = arith.addi %0, %32 : vector<1x128xi32>
    %c0_i32_8 = arith.constant 0 : i32
    %34 = vector.broadcast %c0_i32_8 : i32 to vector<1x128xi32>
    %35 = arith.cmpi sge, %33, %34 : vector<1x128xi32>
    %c-9_i32_9 = arith.constant -9 : i32
    %36 = vector.broadcast %c-9_i32_9 : i32 to vector<1x128xi32>
    %37 = arith.addi %0, %36 : vector<1x128xi32>
    %c16_i32_10 = arith.constant 16 : i32
    %38 = vector.broadcast %c16_i32_10 : i32 to vector<1x128xi32>
    %39 = arith.cmpi slt, %37, %38 : vector<1x128xi32>
    %40 = arith.andi %35, %39 : vector<1x128xi1>
    %c-3_i32 = arith.constant -3 : i32
    %41 = vector.broadcast %c-3_i32 : i32 to vector<1x128xi32>
    %42 = arith.addi %0, %41 : vector<1x128xi32>
    %c0_i32_11 = arith.constant 0 : i32
    %43 = vector.broadcast %c0_i32_11 : i32 to vector<1x128xi32>
    %44 = arith.cmpi sge, %42, %43 : vector<1x128xi32>
    %c-3_i32_12 = arith.constant -3 : i32
    %45 = vector.broadcast %c-3_i32_12 : i32 to vector<1x128xi32>
    %46 = arith.addi %0, %45 : vector<1x128xi32>
    %c16_i32_13 = arith.constant 16 : i32
    %47 = vector.broadcast %c16_i32_13 : i32 to vector<1x128xi32>
    %48 = arith.cmpi slt, %46, %47 : vector<1x128xi32>
    %49 = arith.andi %44, %48 : vector<1x128xi1>
    %c-1_i32 = arith.constant -1 : i32
    %50 = vector.broadcast %c-1_i32 : i32 to vector<1x128xi32>
    %51 = arith.addi %0, %50 : vector<1x128xi32>
    %c0_i32_14 = arith.constant 0 : i32
    %52 = vector.broadcast %c0_i32_14 : i32 to vector<1x128xi32>
    %53 = arith.cmpi sge, %51, %52 : vector<1x128xi32>
    %c-1_i32_15 = arith.constant -1 : i32
    %54 = vector.broadcast %c-1_i32_15 : i32 to vector<1x128xi32>
    %55 = arith.addi %0, %54 : vector<1x128xi32>
    %c16_i32_16 = arith.constant 16 : i32
    %56 = vector.broadcast %c16_i32_16 : i32 to vector<1x128xi32>
    %57 = arith.cmpi slt, %55, %56 : vector<1x128xi32>
    %58 = arith.andi %53, %57 : vector<1x128xi1>
    %c0 = arith.constant 0 : index
    %c0_17 = arith.constant 0 : index
    %c0_18 = arith.constant 0 : index
    %59 = vector.load %arg1[%c0, %c0_17, %c0_18] : memref<1x16x128xf32, #tpu.memory_space<vmem>>, vector<1x16x128xf32>
    %60 = vector.shape_cast %59 : vector<1x16x128xf32> to vector<16x128xf32>
    %cst = arith.constant 0.000000e+00 : f32
    %61 = vector.broadcast %cst : f32 to vector<16x128xf32>
    %c1_i32_19 = arith.constant 1 : i32
    %62 = tpu.dynamic_rotate %60 by %c1_i32_19 dim 1 : vector<16x128xf32>, i32 -> vector<16x128xf32>
    %63 = vector.shape_cast %58 : vector<1x128xi1> to vector<1x128xi1>
    %64 = vector.broadcast %63 : vector<1x128xi1> to vector<16x128xi1>
    %65 = arith.select %64, %62, %61 : vector<16x128xi1>, vector<16x128xf32>
    %c127_i32 = arith.constant 127 : i32
    %66 = tpu.dynamic_rotate %60 by %c127_i32 dim 1 : vector<16x128xf32>, i32 -> vector<16x128xf32>
    %67 = vector.shape_cast %13 : vector<1x128xi1> to vector<1x128xi1>
    %68 = vector.broadcast %67 : vector<1x128xi1> to vector<16x128xi1>
    %69 = arith.select %68, %66, %61 : vector<16x128xi1>, vector<16x128xf32>
    %c0_20 = arith.constant 0 : index
    %c0_21 = arith.constant 0 : index
    %70 = vector.load %arg3[%c0_20, %c0_21] : memref<32x1xf32, #tpu.memory_space<vmem>>, vector<32x1xf32>
    %c0_22 = arith.constant 0 : index
    %c0_23 = arith.constant 0 : index
    %71 = vector.load %arg2[%c0_22, %c0_23] : memref<32x48xf32, #tpu.memory_space<vmem>>, vector<32x48xf32>
    %72 = tpu.concatenate %65, %60, %69 in 0 : vector<16x128xf32>, vector<16x128xf32>, vector<16x128xf32> -> vector<48x128xf32>
    %cst_24 = arith.constant dense<0.000000e+00> : vector<32x128xf32>
    %73 = tpu.matmul %71, %72, %cst_24 {dimension_numbers = #tpu.dot_dimension_numbers<[1], [0], [0], [1], [0, 0, 1, 1], [], []>} : vector<32x48xf32>, vector<48x128xf32>, vector<32x128xf32> -> vector<32x128xf32>
    %74 = vector.broadcast %70 : vector<32x1xf32> to vector<32x128xf32>
    %75 = arith.addf %73, %74 : vector<32x128xf32>
    %c0_25 = arith.constant 0 : index
    %c0_26 = arith.constant 0 : index
    %76 = vector.load %arg4[%c0_25, %c0_26] : memref<32x1xf32, #tpu.memory_space<vmem>>, vector<32x1xf32>
    %c0_27 = arith.constant 0 : index
    %c0_28 = arith.constant 0 : index
    %77 = vector.load %arg5[%c0_27, %c0_28] : memref<32x1xf32, #tpu.memory_space<vmem>>, vector<32x1xf32>
    %cst_29 = arith.constant dense<0.000000e+00> : vector<128xf32>
    %78 = vector.multi_reduction <add>, %75, %cst_29 [0] : vector<32x128xf32> to vector<128xf32>
    %79 = vector.shape_cast %78 : vector<128xf32> to vector<1x128xf32>
    %80 = arith.mulf %75, %75 : vector<32x128xf32>
    %cst_30 = arith.constant dense<0.000000e+00> : vector<128xf32>
    %81 = vector.multi_reduction <add>, %80, %cst_30 [0] : vector<32x128xf32> to vector<128xf32>
    %82 = vector.shape_cast %81 : vector<128xf32> to vector<1x128xf32>
    %83 = arith.mulf %79, %4 : vector<1x128xf32>
    %84 = vector.shape_cast %83 : vector<1x128xf32> to vector<1x1x128xf32>
    %cst_31 = arith.constant dense<0.000000e+00> : vector<1xf32>
    %85 = vector.multi_reduction <add>, %84, %cst_31 [1, 2] : vector<1x1x128xf32> to vector<1xf32>
    %86 = vector.shape_cast %85 : vector<1xf32> to vector<1x1x1xf32>
    %87 = vector.extract %86[0, 0, 0] : f32 from vector<1x1x1xf32>
    %88 = arith.mulf %82, %4 : vector<1x128xf32>
    %89 = vector.shape_cast %88 : vector<1x128xf32> to vector<1x1x128xf32>
    %cst_32 = arith.constant dense<0.000000e+00> : vector<1xf32>
    %90 = vector.multi_reduction <add>, %89, %cst_32 [1, 2] : vector<1x1x128xf32> to vector<1xf32>
    %91 = vector.shape_cast %90 : vector<1xf32> to vector<1x1x1xf32>
    %92 = vector.extract %91[0, 0, 0] : f32 from vector<1x1x1xf32>
    %cst_33 = arith.constant 0.001953125 : f32
    %93 = arith.mulf %87, %cst_33 : f32
    %cst_34 = arith.constant 0.001953125 : f32
    %94 = arith.mulf %92, %cst_34 : f32
    %95 = arith.mulf %93, %93 : f32
    %96 = arith.subf %94, %95 : f32
    %cst_35 = arith.constant 0.000000e+00 : f32
    %97 = arith.maximumf %96, %cst_35 : f32
    %cst_36 = arith.constant 9.99999974E-6 : f32
    %98 = arith.addf %97, %cst_36 : f32
    %99 = math.rsqrt %98 : f32
    %100 = vector.broadcast %99 : f32 to vector<32x1xf32>
    %101 = arith.mulf %76, %100 : vector<32x1xf32>
    %102 = arith.mulf %93, %99 : f32
    %103 = vector.broadcast %102 : f32 to vector<32x1xf32>
    %104 = arith.mulf %103, %76 : vector<32x1xf32>
    %105 = arith.subf %77, %104 : vector<32x1xf32>
    %106 = vector.broadcast %101 : vector<32x1xf32> to vector<32x128xf32>
    %107 = arith.mulf %75, %106 : vector<32x128xf32>
    %108 = vector.broadcast %105 : vector<32x1xf32> to vector<32x128xf32>
    %109 = arith.addf %107, %108 : vector<32x128xf32>
    %cst_37 = arith.constant 0.000000e+00 : f32
    %110 = vector.broadcast %cst_37 : f32 to vector<32x128xf32>
    %111 = arith.maximumf %109, %110 : vector<32x128xf32>
    %cst_38 = arith.constant 0.000000e+00 : f32
    %112 = vector.broadcast %cst_38 : f32 to vector<32x128xf32>
    %c1_i32_39 = arith.constant 1 : i32
    %113 = tpu.dynamic_rotate %111 by %c1_i32_39 dim 1 : vector<32x128xf32>, i32 -> vector<32x128xf32>
    %114 = vector.shape_cast %58 : vector<1x128xi1> to vector<1x128xi1>
    %115 = vector.broadcast %114 : vector<1x128xi1> to vector<32x128xi1>
    %116 = arith.select %115, %113, %112 : vector<32x128xi1>, vector<32x128xf32>
    %c127_i32_40 = arith.constant 127 : i32
    %117 = tpu.dynamic_rotate %111 by %c127_i32_40 dim 1 : vector<32x128xf32>, i32 -> vector<32x128xf32>
    %118 = vector.shape_cast %13 : vector<1x128xi1> to vector<1x128xi1>
    %119 = vector.broadcast %118 : vector<1x128xi1> to vector<32x128xi1>
    %120 = arith.select %119, %117, %112 : vector<32x128xi1>, vector<32x128xf32>
    %c0_41 = arith.constant 0 : index
    %c0_42 = arith.constant 0 : index
    %c0_43 = arith.constant 0 : index
    %121 = vector.load %arg7[%c0_41, %c0_42, %c0_43] : memref<3x32x1xf32, #tpu.memory_space<vmem>>, vector<1x32x1xf32>
    %122 = vector.shape_cast %121 : vector<1x32x1xf32> to vector<32x1xf32>
    %c0_44 = arith.constant 0 : index
    %c0_45 = arith.constant 0 : index
    %c0_46 = arith.constant 0 : index
    %123 = vector.load %arg6[%c0_44, %c0_45, %c0_46] : memref<3x32x96xf32, #tpu.memory_space<vmem>>, vector<1x32x96xf32>
    %124 = vector.shape_cast %123 : vector<1x32x96xf32> to vector<32x96xf32>
    %125 = tpu.concatenate %116, %111, %120 in 0 : vector<32x128xf32>, vector<32x128xf32>, vector<32x128xf32> -> vector<96x128xf32>
    %cst_47 = arith.constant dense<0.000000e+00> : vector<32x128xf32>
    %126 = tpu.matmul %124, %125, %cst_47 {dimension_numbers = #tpu.dot_dimension_numbers<[1], [0], [0], [1], [0, 0, 1, 1], [], []>} : vector<32x96xf32>, vector<96x128xf32>, vector<32x128xf32> -> vector<32x128xf32>
    %127 = vector.broadcast %122 : vector<32x1xf32> to vector<32x128xf32>
    %128 = arith.addf %126, %127 : vector<32x128xf32>
    %c0_48 = arith.constant 0 : index
    %c0_49 = arith.constant 0 : index
    %c0_50 = arith.constant 0 : index
    %129 = vector.load %arg8[%c0_48, %c0_49, %c0_50] : memref<3x32x1xf32, #tpu.memory_space<vmem>>, vector<1x32x1xf32>
    %130 = vector.shape_cast %129 : vector<1x32x1xf32> to vector<32x1xf32>
    %c0_51 = arith.constant 0 : index
    %c0_52 = arith.constant 0 : index
    %c0_53 = arith.constant 0 : index
    %131 = vector.load %arg9[%c0_51, %c0_52, %c0_53] : memref<3x32x1xf32, #tpu.memory_space<vmem>>, vector<1x32x1xf32>
    %132 = vector.shape_cast %131 : vector<1x32x1xf32> to vector<32x1xf32>
    %cst_54 = arith.constant dense<0.000000e+00> : vector<128xf32>
    %133 = vector.multi_reduction <add>, %128, %cst_54 [0] : vector<32x128xf32> to vector<128xf32>
    %134 = vector.shape_cast %133 : vector<128xf32> to vector<1x128xf32>
    %135 = arith.mulf %128, %128 : vector<32x128xf32>
    %cst_55 = arith.constant dense<0.000000e+00> : vector<128xf32>
    %136 = vector.multi_reduction <add>, %135, %cst_55 [0] : vector<32x128xf32> to vector<128xf32>
    %137 = vector.shape_cast %136 : vector<128xf32> to vector<1x128xf32>
    %138 = arith.mulf %134, %4 : vector<1x128xf32>
    %139 = vector.shape_cast %138 : vector<1x128xf32> to vector<1x1x128xf32>
    %cst_56 = arith.constant dense<0.000000e+00> : vector<1xf32>
    %140 = vector.multi_reduction <add>, %139, %cst_56 [1, 2] : vector<1x1x128xf32> to vector<1xf32>
    %141 = vector.shape_cast %140 : vector<1xf32> to vector<1x1x1xf32>
    %142 = vector.extract %141[0, 0, 0] : f32 from vector<1x1x1xf32>
    %143 = arith.mulf %137, %4 : vector<1x128xf32>
    %144 = vector.shape_cast %143 : vector<1x128xf32> to vector<1x1x128xf32>
    %cst_57 = arith.constant dense<0.000000e+00> : vector<1xf32>
    %145 = vector.multi_reduction <add>, %144, %cst_57 [1, 2] : vector<1x1x128xf32> to vector<1xf32>
    %146 = vector.shape_cast %145 : vector<1xf32> to vector<1x1x1xf32>
    %147 = vector.extract %146[0, 0, 0] : f32 from vector<1x1x1xf32>
    %cst_58 = arith.constant 0.001953125 : f32
    %148 = arith.mulf %142, %cst_58 : f32
    %cst_59 = arith.constant 0.001953125 : f32
    %149 = arith.mulf %147, %cst_59 : f32
    %150 = arith.mulf %148, %148 : f32
    %151 = arith.subf %149, %150 : f32
    %cst_60 = arith.constant 0.000000e+00 : f32
    %152 = arith.maximumf %151, %cst_60 : f32
    %cst_61 = arith.constant 9.99999974E-6 : f32
    %153 = arith.addf %152, %cst_61 : f32
    %154 = math.rsqrt %153 : f32
    %155 = vector.broadcast %154 : f32 to vector<32x1xf32>
    %156 = arith.mulf %130, %155 : vector<32x1xf32>
    %157 = arith.mulf %148, %154 : f32
    %158 = vector.broadcast %157 : f32 to vector<32x1xf32>
    %159 = arith.mulf %158, %130 : vector<32x1xf32>
    %160 = arith.subf %132, %159 : vector<32x1xf32>
    %161 = vector.broadcast %156 : vector<32x1xf32> to vector<32x128xf32>
    %162 = arith.mulf %128, %161 : vector<32x128xf32>
    %163 = vector.broadcast %160 : vector<32x1xf32> to vector<32x128xf32>
    %164 = arith.addf %162, %163 : vector<32x128xf32>
    %cst_62 = arith.constant 0.000000e+00 : f32
    %165 = vector.broadcast %cst_62 : f32 to vector<32x128xf32>
    %166 = arith.maximumf %164, %165 : vector<32x128xf32>
    %cst_63 = arith.constant 0.000000e+00 : f32
    %167 = vector.broadcast %cst_63 : f32 to vector<32x128xf32>
    %c1_i32_64 = arith.constant 1 : i32
    %168 = tpu.dynamic_rotate %166 by %c1_i32_64 dim 1 : vector<32x128xf32>, i32 -> vector<32x128xf32>
    %169 = vector.shape_cast %58 : vector<1x128xi1> to vector<1x128xi1>
    %170 = vector.broadcast %169 : vector<1x128xi1> to vector<32x128xi1>
    %171 = arith.select %170, %168, %167 : vector<32x128xi1>, vector<32x128xf32>
    %c127_i32_65 = arith.constant 127 : i32
    %172 = tpu.dynamic_rotate %166 by %c127_i32_65 dim 1 : vector<32x128xf32>, i32 -> vector<32x128xf32>
    %173 = vector.shape_cast %13 : vector<1x128xi1> to vector<1x128xi1>
    %174 = vector.broadcast %173 : vector<1x128xi1> to vector<32x128xi1>
    %175 = arith.select %174, %172, %167 : vector<32x128xi1>, vector<32x128xf32>
    %c0_66 = arith.constant 0 : index
    %c0_67 = arith.constant 0 : index
    %c0_68 = arith.constant 0 : index
    %176 = vector.load %arg11[%c0_66, %c0_67, %c0_68] : memref<3x32x1xf32, #tpu.memory_space<vmem>>, vector<1x32x1xf32>
    %177 = vector.shape_cast %176 : vector<1x32x1xf32> to vector<32x1xf32>
    %c0_69 = arith.constant 0 : index
    %c0_70 = arith.constant 0 : index
    %c0_71 = arith.constant 0 : index
    %178 = vector.load %arg10[%c0_69, %c0_70, %c0_71] : memref<3x32x96xf32, #tpu.memory_space<vmem>>, vector<1x32x96xf32>
    %179 = vector.shape_cast %178 : vector<1x32x96xf32> to vector<32x96xf32>
    %180 = tpu.concatenate %171, %166, %175 in 0 : vector<32x128xf32>, vector<32x128xf32>, vector<32x128xf32> -> vector<96x128xf32>
    %cst_72 = arith.constant dense<0.000000e+00> : vector<32x128xf32>
    %181 = tpu.matmul %179, %180, %cst_72 {dimension_numbers = #tpu.dot_dimension_numbers<[1], [0], [0], [1], [0, 0, 1, 1], [], []>} : vector<32x96xf32>, vector<96x128xf32>, vector<32x128xf32> -> vector<32x128xf32>
    %182 = vector.broadcast %177 : vector<32x1xf32> to vector<32x128xf32>
    %183 = arith.addf %181, %182 : vector<32x128xf32>
    %c0_73 = arith.constant 0 : index
    %c0_74 = arith.constant 0 : index
    %c0_75 = arith.constant 0 : index
    %184 = vector.load %arg12[%c0_73, %c0_74, %c0_75] : memref<3x32x1xf32, #tpu.memory_space<vmem>>, vector<1x32x1xf32>
    %185 = vector.shape_cast %184 : vector<1x32x1xf32> to vector<32x1xf32>
    %c0_76 = arith.constant 0 : index
    %c0_77 = arith.constant 0 : index
    %c0_78 = arith.constant 0 : index
    %186 = vector.load %arg13[%c0_76, %c0_77, %c0_78] : memref<3x32x1xf32, #tpu.memory_space<vmem>>, vector<1x32x1xf32>
    %187 = vector.shape_cast %186 : vector<1x32x1xf32> to vector<32x1xf32>
    %cst_79 = arith.constant dense<0.000000e+00> : vector<128xf32>
    %188 = vector.multi_reduction <add>, %183, %cst_79 [0] : vector<32x128xf32> to vector<128xf32>
    %189 = vector.shape_cast %188 : vector<128xf32> to vector<1x128xf32>
    %190 = arith.mulf %183, %183 : vector<32x128xf32>
    %cst_80 = arith.constant dense<0.000000e+00> : vector<128xf32>
    %191 = vector.multi_reduction <add>, %190, %cst_80 [0] : vector<32x128xf32> to vector<128xf32>
    %192 = vector.shape_cast %191 : vector<128xf32> to vector<1x128xf32>
    %193 = arith.mulf %189, %4 : vector<1x128xf32>
    %194 = vector.shape_cast %193 : vector<1x128xf32> to vector<1x1x128xf32>
    %cst_81 = arith.constant dense<0.000000e+00> : vector<1xf32>
    %195 = vector.multi_reduction <add>, %194, %cst_81 [1, 2] : vector<1x1x128xf32> to vector<1xf32>
    %196 = vector.shape_cast %195 : vector<1xf32> to vector<1x1x1xf32>
    %197 = vector.extract %196[0, 0, 0] : f32 from vector<1x1x1xf32>
    %198 = arith.mulf %192, %4 : vector<1x128xf32>
    %199 = vector.shape_cast %198 : vector<1x128xf32> to vector<1x1x128xf32>
    %cst_82 = arith.constant dense<0.000000e+00> : vector<1xf32>
    %200 = vector.multi_reduction <add>, %199, %cst_82 [1, 2] : vector<1x1x128xf32> to vector<1xf32>
    %201 = vector.shape_cast %200 : vector<1xf32> to vector<1x1x1xf32>
    %202 = vector.extract %201[0, 0, 0] : f32 from vector<1x1x1xf32>
    %cst_83 = arith.constant 0.001953125 : f32
    %203 = arith.mulf %197, %cst_83 : f32
    %cst_84 = arith.constant 0.001953125 : f32
    %204 = arith.mulf %202, %cst_84 : f32
    %205 = arith.mulf %203, %203 : f32
    %206 = arith.subf %204, %205 : f32
    %cst_85 = arith.constant 0.000000e+00 : f32
    %207 = arith.maximumf %206, %cst_85 : f32
    %cst_86 = arith.constant 9.99999974E-6 : f32
    %208 = arith.addf %207, %cst_86 : f32
    %209 = math.rsqrt %208 : f32
    %210 = vector.broadcast %209 : f32 to vector<32x1xf32>
    %211 = arith.mulf %185, %210 : vector<32x1xf32>
    %212 = arith.mulf %203, %209 : f32
    %213 = vector.broadcast %212 : f32 to vector<32x1xf32>
    %214 = arith.mulf %213, %185 : vector<32x1xf32>
    %215 = arith.subf %187, %214 : vector<32x1xf32>
    %216 = vector.broadcast %211 : vector<32x1xf32> to vector<32x128xf32>
    %217 = arith.mulf %183, %216 : vector<32x128xf32>
    %218 = vector.broadcast %215 : vector<32x1xf32> to vector<32x128xf32>
    %219 = arith.addf %217, %218 : vector<32x128xf32>
    %220 = arith.addf %219, %111 : vector<32x128xf32>
    %cst_87 = arith.constant 0.000000e+00 : f32
    %221 = vector.broadcast %cst_87 : f32 to vector<32x128xf32>
    %222 = arith.maximumf %220, %221 : vector<32x128xf32>
    %cst_88 = arith.constant 0.000000e+00 : f32
    %223 = vector.broadcast %cst_88 : f32 to vector<32x128xf32>
    %c3_i32_89 = arith.constant 3 : i32
    %224 = tpu.dynamic_rotate %222 by %c3_i32_89 dim 1 : vector<32x128xf32>, i32 -> vector<32x128xf32>
    %225 = vector.shape_cast %49 : vector<1x128xi1> to vector<1x128xi1>
    %226 = vector.broadcast %225 : vector<1x128xi1> to vector<32x128xi1>
    %227 = arith.select %226, %224, %223 : vector<32x128xi1>, vector<32x128xf32>
    %c125_i32 = arith.constant 125 : i32
    %228 = tpu.dynamic_rotate %222 by %c125_i32 dim 1 : vector<32x128xf32>, i32 -> vector<32x128xf32>
    %229 = vector.shape_cast %22 : vector<1x128xi1> to vector<1x128xi1>
    %230 = vector.broadcast %229 : vector<1x128xi1> to vector<32x128xi1>
    %231 = arith.select %230, %228, %223 : vector<32x128xi1>, vector<32x128xf32>
    %c1 = arith.constant 1 : index
    %c0_90 = arith.constant 0 : index
    %c0_91 = arith.constant 0 : index
    %232 = vector.load %arg7[%c1, %c0_90, %c0_91] : memref<3x32x1xf32, #tpu.memory_space<vmem>>, vector<1x32x1xf32>
    %233 = vector.shape_cast %232 : vector<1x32x1xf32> to vector<32x1xf32>
    %c1_92 = arith.constant 1 : index
    %c0_93 = arith.constant 0 : index
    %c0_94 = arith.constant 0 : index
    %234 = vector.load %arg6[%c1_92, %c0_93, %c0_94] : memref<3x32x96xf32, #tpu.memory_space<vmem>>, vector<1x32x96xf32>
    %235 = vector.shape_cast %234 : vector<1x32x96xf32> to vector<32x96xf32>
    %236 = tpu.concatenate %227, %222, %231 in 0 : vector<32x128xf32>, vector<32x128xf32>, vector<32x128xf32> -> vector<96x128xf32>
    %cst_95 = arith.constant dense<0.000000e+00> : vector<32x128xf32>
    %237 = tpu.matmul %235, %236, %cst_95 {dimension_numbers = #tpu.dot_dimension_numbers<[1], [0], [0], [1], [0, 0, 1, 1], [], []>} : vector<32x96xf32>, vector<96x128xf32>, vector<32x128xf32> -> vector<32x128xf32>
    %238 = vector.broadcast %233 : vector<32x1xf32> to vector<32x128xf32>
    %239 = arith.addf %237, %238 : vector<32x128xf32>
    %c1_96 = arith.constant 1 : index
    %c0_97 = arith.constant 0 : index
    %c0_98 = arith.constant 0 : index
    %240 = vector.load %arg8[%c1_96, %c0_97, %c0_98] : memref<3x32x1xf32, #tpu.memory_space<vmem>>, vector<1x32x1xf32>
    %241 = vector.shape_cast %240 : vector<1x32x1xf32> to vector<32x1xf32>
    %c1_99 = arith.constant 1 : index
    %c0_100 = arith.constant 0 : index
    %c0_101 = arith.constant 0 : index
    %242 = vector.load %arg9[%c1_99, %c0_100, %c0_101] : memref<3x32x1xf32, #tpu.memory_space<vmem>>, vector<1x32x1xf32>
    %243 = vector.shape_cast %242 : vector<1x32x1xf32> to vector<32x1xf32>
    %cst_102 = arith.constant dense<0.000000e+00> : vector<128xf32>
    %244 = vector.multi_reduction <add>, %239, %cst_102 [0] : vector<32x128xf32> to vector<128xf32>
    %245 = vector.shape_cast %244 : vector<128xf32> to vector<1x128xf32>
    %246 = arith.mulf %239, %239 : vector<32x128xf32>
    %cst_103 = arith.constant dense<0.000000e+00> : vector<128xf32>
    %247 = vector.multi_reduction <add>, %246, %cst_103 [0] : vector<32x128xf32> to vector<128xf32>
    %248 = vector.shape_cast %247 : vector<128xf32> to vector<1x128xf32>
    %249 = arith.mulf %245, %4 : vector<1x128xf32>
    %250 = vector.shape_cast %249 : vector<1x128xf32> to vector<1x1x128xf32>
    %cst_104 = arith.constant dense<0.000000e+00> : vector<1xf32>
    %251 = vector.multi_reduction <add>, %250, %cst_104 [1, 2] : vector<1x1x128xf32> to vector<1xf32>
    %252 = vector.shape_cast %251 : vector<1xf32> to vector<1x1x1xf32>
    %253 = vector.extract %252[0, 0, 0] : f32 from vector<1x1x1xf32>
    %254 = arith.mulf %248, %4 : vector<1x128xf32>
    %255 = vector.shape_cast %254 : vector<1x128xf32> to vector<1x1x128xf32>
    %cst_105 = arith.constant dense<0.000000e+00> : vector<1xf32>
    %256 = vector.multi_reduction <add>, %255, %cst_105 [1, 2] : vector<1x1x128xf32> to vector<1xf32>
    %257 = vector.shape_cast %256 : vector<1xf32> to vector<1x1x1xf32>
    %258 = vector.extract %257[0, 0, 0] : f32 from vector<1x1x1xf32>
    %cst_106 = arith.constant 0.001953125 : f32
    %259 = arith.mulf %253, %cst_106 : f32
    %cst_107 = arith.constant 0.001953125 : f32
    %260 = arith.mulf %258, %cst_107 : f32
    %261 = arith.mulf %259, %259 : f32
    %262 = arith.subf %260, %261 : f32
    %cst_108 = arith.constant 0.000000e+00 : f32
    %263 = arith.maximumf %262, %cst_108 : f32
    %cst_109 = arith.constant 9.99999974E-6 : f32
    %264 = arith.addf %263, %cst_109 : f32
    %265 = math.rsqrt %264 : f32
    %266 = vector.broadcast %265 : f32 to vector<32x1xf32>
    %267 = arith.mulf %241, %266 : vector<32x1xf32>
    %268 = arith.mulf %259, %265 : f32
    %269 = vector.broadcast %268 : f32 to vector<32x1xf32>
    %270 = arith.mulf %269, %241 : vector<32x1xf32>
    %271 = arith.subf %243, %270 : vector<32x1xf32>
    %272 = vector.broadcast %267 : vector<32x1xf32> to vector<32x128xf32>
    %273 = arith.mulf %239, %272 : vector<32x128xf32>
    %274 = vector.broadcast %271 : vector<32x1xf32> to vector<32x128xf32>
    %275 = arith.addf %273, %274 : vector<32x128xf32>
    %cst_110 = arith.constant 0.000000e+00 : f32
    %276 = vector.broadcast %cst_110 : f32 to vector<32x128xf32>
    %277 = arith.maximumf %275, %276 : vector<32x128xf32>
    %cst_111 = arith.constant 0.000000e+00 : f32
    %278 = vector.broadcast %cst_111 : f32 to vector<32x128xf32>
    %c1_i32_112 = arith.constant 1 : i32
    %279 = tpu.dynamic_rotate %277 by %c1_i32_112 dim 1 : vector<32x128xf32>, i32 -> vector<32x128xf32>
    %280 = vector.shape_cast %58 : vector<1x128xi1> to vector<1x128xi1>
    %281 = vector.broadcast %280 : vector<1x128xi1> to vector<32x128xi1>
    %282 = arith.select %281, %279, %278 : vector<32x128xi1>, vector<32x128xf32>
    %c127_i32_113 = arith.constant 127 : i32
    %283 = tpu.dynamic_rotate %277 by %c127_i32_113 dim 1 : vector<32x128xf32>, i32 -> vector<32x128xf32>
    %284 = vector.shape_cast %13 : vector<1x128xi1> to vector<1x128xi1>
    %285 = vector.broadcast %284 : vector<1x128xi1> to vector<32x128xi1>
    %286 = arith.select %285, %283, %278 : vector<32x128xi1>, vector<32x128xf32>
    %c1_114 = arith.constant 1 : index
    %c0_115 = arith.constant 0 : index
    %c0_116 = arith.constant 0 : index
    %287 = vector.load %arg11[%c1_114, %c0_115, %c0_116] : memref<3x32x1xf32, #tpu.memory_space<vmem>>, vector<1x32x1xf32>
    %288 = vector.shape_cast %287 : vector<1x32x1xf32> to vector<32x1xf32>
    %c1_117 = arith.constant 1 : index
    %c0_118 = arith.constant 0 : index
    %c0_119 = arith.constant 0 : index
    %289 = vector.load %arg10[%c1_117, %c0_118, %c0_119] : memref<3x32x96xf32, #tpu.memory_space<vmem>>, vector<1x32x96xf32>
    %290 = vector.shape_cast %289 : vector<1x32x96xf32> to vector<32x96xf32>
    %291 = tpu.concatenate %282, %277, %286 in 0 : vector<32x128xf32>, vector<32x128xf32>, vector<32x128xf32> -> vector<96x128xf32>
    %cst_120 = arith.constant dense<0.000000e+00> : vector<32x128xf32>
    %292 = tpu.matmul %290, %291, %cst_120 {dimension_numbers = #tpu.dot_dimension_numbers<[1], [0], [0], [1], [0, 0, 1, 1], [], []>} : vector<32x96xf32>, vector<96x128xf32>, vector<32x128xf32> -> vector<32x128xf32>
    %293 = vector.broadcast %288 : vector<32x1xf32> to vector<32x128xf32>
    %294 = arith.addf %292, %293 : vector<32x128xf32>
    %c1_121 = arith.constant 1 : index
    %c0_122 = arith.constant 0 : index
    %c0_123 = arith.constant 0 : index
    %295 = vector.load %arg12[%c1_121, %c0_122, %c0_123] : memref<3x32x1xf32, #tpu.memory_space<vmem>>, vector<1x32x1xf32>
    %296 = vector.shape_cast %295 : vector<1x32x1xf32> to vector<32x1xf32>
    %c1_124 = arith.constant 1 : index
    %c0_125 = arith.constant 0 : index
    %c0_126 = arith.constant 0 : index
    %297 = vector.load %arg13[%c1_124, %c0_125, %c0_126] : memref<3x32x1xf32, #tpu.memory_space<vmem>>, vector<1x32x1xf32>
    %298 = vector.shape_cast %297 : vector<1x32x1xf32> to vector<32x1xf32>
    %cst_127 = arith.constant dense<0.000000e+00> : vector<128xf32>
    %299 = vector.multi_reduction <add>, %294, %cst_127 [0] : vector<32x128xf32> to vector<128xf32>
    %300 = vector.shape_cast %299 : vector<128xf32> to vector<1x128xf32>
    %301 = arith.mulf %294, %294 : vector<32x128xf32>
    %cst_128 = arith.constant dense<0.000000e+00> : vector<128xf32>
    %302 = vector.multi_reduction <add>, %301, %cst_128 [0] : vector<32x128xf32> to vector<128xf32>
    %303 = vector.shape_cast %302 : vector<128xf32> to vector<1x128xf32>
    %304 = arith.mulf %300, %4 : vector<1x128xf32>
    %305 = vector.shape_cast %304 : vector<1x128xf32> to vector<1x1x128xf32>
    %cst_129 = arith.constant dense<0.000000e+00> : vector<1xf32>
    %306 = vector.multi_reduction <add>, %305, %cst_129 [1, 2] : vector<1x1x128xf32> to vector<1xf32>
    %307 = vector.shape_cast %306 : vector<1xf32> to vector<1x1x1xf32>
    %308 = vector.extract %307[0, 0, 0] : f32 from vector<1x1x1xf32>
    %309 = arith.mulf %303, %4 : vector<1x128xf32>
    %310 = vector.shape_cast %309 : vector<1x128xf32> to vector<1x1x128xf32>
    %cst_130 = arith.constant dense<0.000000e+00> : vector<1xf32>
    %311 = vector.multi_reduction <add>, %310, %cst_130 [1, 2] : vector<1x1x128xf32> to vector<1xf32>
    %312 = vector.shape_cast %311 : vector<1xf32> to vector<1x1x1xf32>
    %313 = vector.extract %312[0, 0, 0] : f32 from vector<1x1x1xf32>
    %cst_131 = arith.constant 0.001953125 : f32
    %314 = arith.mulf %308, %cst_131 : f32
    %cst_132 = arith.constant 0.001953125 : f32
    %315 = arith.mulf %313, %cst_132 : f32
    %316 = arith.mulf %314, %314 : f32
    %317 = arith.subf %315, %316 : f32
    %cst_133 = arith.constant 0.000000e+00 : f32
    %318 = arith.maximumf %317, %cst_133 : f32
    %cst_134 = arith.constant 9.99999974E-6 : f32
    %319 = arith.addf %318, %cst_134 : f32
    %320 = math.rsqrt %319 : f32
    %321 = vector.broadcast %320 : f32 to vector<32x1xf32>
    %322 = arith.mulf %296, %321 : vector<32x1xf32>
    %323 = arith.mulf %314, %320 : f32
    %324 = vector.broadcast %323 : f32 to vector<32x1xf32>
    %325 = arith.mulf %324, %296 : vector<32x1xf32>
    %326 = arith.subf %298, %325 : vector<32x1xf32>
    %327 = vector.broadcast %322 : vector<32x1xf32> to vector<32x128xf32>
    %328 = arith.mulf %294, %327 : vector<32x128xf32>
    %329 = vector.broadcast %326 : vector<32x1xf32> to vector<32x128xf32>
    %330 = arith.addf %328, %329 : vector<32x128xf32>
    %331 = arith.addf %330, %222 : vector<32x128xf32>
    %cst_135 = arith.constant 0.000000e+00 : f32
    %332 = vector.broadcast %cst_135 : f32 to vector<32x128xf32>
    %333 = arith.maximumf %331, %332 : vector<32x128xf32>
    %cst_136 = arith.constant 0.000000e+00 : f32
    %334 = vector.broadcast %cst_136 : f32 to vector<32x128xf32>
    %c9_i32_137 = arith.constant 9 : i32
    %335 = tpu.dynamic_rotate %333 by %c9_i32_137 dim 1 : vector<32x128xf32>, i32 -> vector<32x128xf32>
    %336 = vector.shape_cast %40 : vector<1x128xi1> to vector<1x128xi1>
    %337 = vector.broadcast %336 : vector<1x128xi1> to vector<32x128xi1>
    %338 = arith.select %337, %335, %334 : vector<32x128xi1>, vector<32x128xf32>
    %c119_i32 = arith.constant 119 : i32
    %339 = tpu.dynamic_rotate %333 by %c119_i32 dim 1 : vector<32x128xf32>, i32 -> vector<32x128xf32>
    %340 = vector.shape_cast %31 : vector<1x128xi1> to vector<1x128xi1>
    %341 = vector.broadcast %340 : vector<1x128xi1> to vector<32x128xi1>
    %342 = arith.select %341, %339, %334 : vector<32x128xi1>, vector<32x128xf32>
    %c2 = arith.constant 2 : index
    %c0_138 = arith.constant 0 : index
    %c0_139 = arith.constant 0 : index
    %343 = vector.load %arg7[%c2, %c0_138, %c0_139] : memref<3x32x1xf32, #tpu.memory_space<vmem>>, vector<1x32x1xf32>
    %344 = vector.shape_cast %343 : vector<1x32x1xf32> to vector<32x1xf32>
    %c2_140 = arith.constant 2 : index
    %c0_141 = arith.constant 0 : index
    %c0_142 = arith.constant 0 : index
    %345 = vector.load %arg6[%c2_140, %c0_141, %c0_142] : memref<3x32x96xf32, #tpu.memory_space<vmem>>, vector<1x32x96xf32>
    %346 = vector.shape_cast %345 : vector<1x32x96xf32> to vector<32x96xf32>
    %347 = tpu.concatenate %338, %333, %342 in 0 : vector<32x128xf32>, vector<32x128xf32>, vector<32x128xf32> -> vector<96x128xf32>
    %cst_143 = arith.constant dense<0.000000e+00> : vector<32x128xf32>
    %348 = tpu.matmul %346, %347, %cst_143 {dimension_numbers = #tpu.dot_dimension_numbers<[1], [0], [0], [1], [0, 0, 1, 1], [], []>} : vector<32x96xf32>, vector<96x128xf32>, vector<32x128xf32> -> vector<32x128xf32>
    %349 = vector.broadcast %344 : vector<32x1xf32> to vector<32x128xf32>
    %350 = arith.addf %348, %349 : vector<32x128xf32>
    %c2_144 = arith.constant 2 : index
    %c0_145 = arith.constant 0 : index
    %c0_146 = arith.constant 0 : index
    %351 = vector.load %arg8[%c2_144, %c0_145, %c0_146] : memref<3x32x1xf32, #tpu.memory_space<vmem>>, vector<1x32x1xf32>
    %352 = vector.shape_cast %351 : vector<1x32x1xf32> to vector<32x1xf32>
    %c2_147 = arith.constant 2 : index
    %c0_148 = arith.constant 0 : index
    %c0_149 = arith.constant 0 : index
    %353 = vector.load %arg9[%c2_147, %c0_148, %c0_149] : memref<3x32x1xf32, #tpu.memory_space<vmem>>, vector<1x32x1xf32>
    %354 = vector.shape_cast %353 : vector<1x32x1xf32> to vector<32x1xf32>
    %cst_150 = arith.constant dense<0.000000e+00> : vector<128xf32>
    %355 = vector.multi_reduction <add>, %350, %cst_150 [0] : vector<32x128xf32> to vector<128xf32>
    %356 = vector.shape_cast %355 : vector<128xf32> to vector<1x128xf32>
    %357 = arith.mulf %350, %350 : vector<32x128xf32>
    %cst_151 = arith.constant dense<0.000000e+00> : vector<128xf32>
    %358 = vector.multi_reduction <add>, %357, %cst_151 [0] : vector<32x128xf32> to vector<128xf32>
    %359 = vector.shape_cast %358 : vector<128xf32> to vector<1x128xf32>
    %360 = arith.mulf %356, %4 : vector<1x128xf32>
    %361 = vector.shape_cast %360 : vector<1x128xf32> to vector<1x1x128xf32>
    %cst_152 = arith.constant dense<0.000000e+00> : vector<1xf32>
    %362 = vector.multi_reduction <add>, %361, %cst_152 [1, 2] : vector<1x1x128xf32> to vector<1xf32>
    %363 = vector.shape_cast %362 : vector<1xf32> to vector<1x1x1xf32>
    %364 = vector.extract %363[0, 0, 0] : f32 from vector<1x1x1xf32>
    %365 = arith.mulf %359, %4 : vector<1x128xf32>
    %366 = vector.shape_cast %365 : vector<1x128xf32> to vector<1x1x128xf32>
    %cst_153 = arith.constant dense<0.000000e+00> : vector<1xf32>
    %367 = vector.multi_reduction <add>, %366, %cst_153 [1, 2] : vector<1x1x128xf32> to vector<1xf32>
    %368 = vector.shape_cast %367 : vector<1xf32> to vector<1x1x1xf32>
    %369 = vector.extract %368[0, 0, 0] : f32 from vector<1x1x1xf32>
    %cst_154 = arith.constant 0.001953125 : f32
    %370 = arith.mulf %364, %cst_154 : f32
    %cst_155 = arith.constant 0.001953125 : f32
    %371 = arith.mulf %369, %cst_155 : f32
    %372 = arith.mulf %370, %370 : f32
    %373 = arith.subf %371, %372 : f32
    %cst_156 = arith.constant 0.000000e+00 : f32
    %374 = arith.maximumf %373, %cst_156 : f32
    %cst_157 = arith.constant 9.99999974E-6 : f32
    %375 = arith.addf %374, %cst_157 : f32
    %376 = math.rsqrt %375 : f32
    %377 = vector.broadcast %376 : f32 to vector<32x1xf32>
    %378 = arith.mulf %352, %377 : vector<32x1xf32>
    %379 = arith.mulf %370, %376 : f32
    %380 = vector.broadcast %379 : f32 to vector<32x1xf32>
    %381 = arith.mulf %380, %352 : vector<32x1xf32>
    %382 = arith.subf %354, %381 : vector<32x1xf32>
    %383 = vector.broadcast %378 : vector<32x1xf32> to vector<32x128xf32>
    %384 = arith.mulf %350, %383 : vector<32x128xf32>
    %385 = vector.broadcast %382 : vector<32x1xf32> to vector<32x128xf32>
    %386 = arith.addf %384, %385 : vector<32x128xf32>
    %cst_158 = arith.constant 0.000000e+00 : f32
    %387 = vector.broadcast %cst_158 : f32 to vector<32x128xf32>
    %388 = arith.maximumf %386, %387 : vector<32x128xf32>
    %cst_159 = arith.constant 0.000000e+00 : f32
    %389 = vector.broadcast %cst_159 : f32 to vector<32x128xf32>
    %c1_i32_160 = arith.constant 1 : i32
    %390 = tpu.dynamic_rotate %388 by %c1_i32_160 dim 1 : vector<32x128xf32>, i32 -> vector<32x128xf32>
    %391 = vector.shape_cast %58 : vector<1x128xi1> to vector<1x128xi1>
    %392 = vector.broadcast %391 : vector<1x128xi1> to vector<32x128xi1>
    %393 = arith.select %392, %390, %389 : vector<32x128xi1>, vector<32x128xf32>
    %c127_i32_161 = arith.constant 127 : i32
    %394 = tpu.dynamic_rotate %388 by %c127_i32_161 dim 1 : vector<32x128xf32>, i32 -> vector<32x128xf32>
    %395 = vector.shape_cast %13 : vector<1x128xi1> to vector<1x128xi1>
    %396 = vector.broadcast %395 : vector<1x128xi1> to vector<32x128xi1>
    %397 = arith.select %396, %394, %389 : vector<32x128xi1>, vector<32x128xf32>
    %c2_162 = arith.constant 2 : index
    %c0_163 = arith.constant 0 : index
    %c0_164 = arith.constant 0 : index
    %398 = vector.load %arg11[%c2_162, %c0_163, %c0_164] : memref<3x32x1xf32, #tpu.memory_space<vmem>>, vector<1x32x1xf32>
    %399 = vector.shape_cast %398 : vector<1x32x1xf32> to vector<32x1xf32>
    %c2_165 = arith.constant 2 : index
    %c0_166 = arith.constant 0 : index
    %c0_167 = arith.constant 0 : index
    %400 = vector.load %arg10[%c2_165, %c0_166, %c0_167] : memref<3x32x96xf32, #tpu.memory_space<vmem>>, vector<1x32x96xf32>
    %401 = vector.shape_cast %400 : vector<1x32x96xf32> to vector<32x96xf32>
    %402 = tpu.concatenate %393, %388, %397 in 0 : vector<32x128xf32>, vector<32x128xf32>, vector<32x128xf32> -> vector<96x128xf32>
    %cst_168 = arith.constant dense<0.000000e+00> : vector<32x128xf32>
    %403 = tpu.matmul %401, %402, %cst_168 {dimension_numbers = #tpu.dot_dimension_numbers<[1], [0], [0], [1], [0, 0, 1, 1], [], []>} : vector<32x96xf32>, vector<96x128xf32>, vector<32x128xf32> -> vector<32x128xf32>
    %404 = vector.broadcast %399 : vector<32x1xf32> to vector<32x128xf32>
    %405 = arith.addf %403, %404 : vector<32x128xf32>
    %c2_169 = arith.constant 2 : index
    %c0_170 = arith.constant 0 : index
    %c0_171 = arith.constant 0 : index
    %406 = vector.load %arg12[%c2_169, %c0_170, %c0_171] : memref<3x32x1xf32, #tpu.memory_space<vmem>>, vector<1x32x1xf32>
    %407 = vector.shape_cast %406 : vector<1x32x1xf32> to vector<32x1xf32>
    %c2_172 = arith.constant 2 : index
    %c0_173 = arith.constant 0 : index
    %c0_174 = arith.constant 0 : index
    %408 = vector.load %arg13[%c2_172, %c0_173, %c0_174] : memref<3x32x1xf32, #tpu.memory_space<vmem>>, vector<1x32x1xf32>
    %409 = vector.shape_cast %408 : vector<1x32x1xf32> to vector<32x1xf32>
    %cst_175 = arith.constant dense<0.000000e+00> : vector<128xf32>
    %410 = vector.multi_reduction <add>, %405, %cst_175 [0] : vector<32x128xf32> to vector<128xf32>
    %411 = vector.shape_cast %410 : vector<128xf32> to vector<1x128xf32>
    %412 = arith.mulf %405, %405 : vector<32x128xf32>
    %cst_176 = arith.constant dense<0.000000e+00> : vector<128xf32>
    %413 = vector.multi_reduction <add>, %412, %cst_176 [0] : vector<32x128xf32> to vector<128xf32>
    %414 = vector.shape_cast %413 : vector<128xf32> to vector<1x128xf32>
    %415 = arith.mulf %411, %4 : vector<1x128xf32>
    %416 = vector.shape_cast %415 : vector<1x128xf32> to vector<1x1x128xf32>
    %cst_177 = arith.constant dense<0.000000e+00> : vector<1xf32>
    %417 = vector.multi_reduction <add>, %416, %cst_177 [1, 2] : vector<1x1x128xf32> to vector<1xf32>
    %418 = vector.shape_cast %417 : vector<1xf32> to vector<1x1x1xf32>
    %419 = vector.extract %418[0, 0, 0] : f32 from vector<1x1x1xf32>
    %420 = arith.mulf %414, %4 : vector<1x128xf32>
    %421 = vector.shape_cast %420 : vector<1x128xf32> to vector<1x1x128xf32>
    %cst_178 = arith.constant dense<0.000000e+00> : vector<1xf32>
    %422 = vector.multi_reduction <add>, %421, %cst_178 [1, 2] : vector<1x1x128xf32> to vector<1xf32>
    %423 = vector.shape_cast %422 : vector<1xf32> to vector<1x1x1xf32>
    %424 = vector.extract %423[0, 0, 0] : f32 from vector<1x1x1xf32>
    %cst_179 = arith.constant 0.001953125 : f32
    %425 = arith.mulf %419, %cst_179 : f32
    %cst_180 = arith.constant 0.001953125 : f32
    %426 = arith.mulf %424, %cst_180 : f32
    %427 = arith.mulf %425, %425 : f32
    %428 = arith.subf %426, %427 : f32
    %cst_181 = arith.constant 0.000000e+00 : f32
    %429 = arith.maximumf %428, %cst_181 : f32
    %cst_182 = arith.constant 9.99999974E-6 : f32
    %430 = arith.addf %429, %cst_182 : f32
    %431 = math.rsqrt %430 : f32
    %432 = vector.broadcast %431 : f32 to vector<32x1xf32>
    %433 = arith.mulf %407, %432 : vector<32x1xf32>
    %434 = arith.mulf %425, %431 : f32
    %435 = vector.broadcast %434 : f32 to vector<32x1xf32>
    %436 = arith.mulf %435, %407 : vector<32x1xf32>
    %437 = arith.subf %409, %436 : vector<32x1xf32>
    %438 = vector.broadcast %433 : vector<32x1xf32> to vector<32x128xf32>
    %439 = arith.mulf %405, %438 : vector<32x128xf32>
    %440 = vector.broadcast %437 : vector<32x1xf32> to vector<32x128xf32>
    %441 = arith.addf %439, %440 : vector<32x128xf32>
    %442 = arith.addf %441, %333 : vector<32x128xf32>
    %cst_183 = arith.constant 0.000000e+00 : f32
    %443 = vector.broadcast %cst_183 : f32 to vector<32x128xf32>
    %444 = arith.maximumf %442, %443 : vector<32x128xf32>
    %c0_184 = arith.constant 0 : index
    %c0_185 = arith.constant 0 : index
    %c0_186 = arith.constant 0 : index
    %445 = vector.load %arg14[%c0_184, %c0_185, %c0_186] : memref<1x32x128xf32, #tpu.memory_space<vmem>>, vector<1x32x128xf32>
    %446 = vector.shape_cast %445 : vector<1x32x128xf32> to vector<32x128xf32>
    %447 = vector.shape_cast %444 : vector<32x128xf32> to vector<1x32x128xf32>
    tpu.vector_store %arg14[%c0_184, %c0_185, %c0_186], %447 {strides = array<i32>} : memref<1x32x128xf32, #tpu.memory_space<vmem>>, vector<1x32x128xf32>,
    return
  }
  func.func @transform_0(%arg0: i32) -> (i32, i32, i32) {
    %c0_i32 = arith.constant 0 : i32
    %c0_i32_0 = arith.constant 0 : i32
    %c0_i32_1 = arith.constant 0 : i32
    return %arg0, %c0_i32, %c0_i32_0 : i32, i32, i32
  }
  func.func @transform_1(%arg0: i32) -> (i32, i32) {
    %c0_i32 = arith.constant 0 : i32
    %c0_i32_0 = arith.constant 0 : i32
    %c0_i32_1 = arith.constant 0 : i32
    return %c0_i32, %c0_i32_0 : i32, i32
  }
  func.func @transform_2(%arg0: i32) -> (i32, i32) {
    %c0_i32 = arith.constant 0 : i32
    %c0_i32_0 = arith.constant 0 : i32
    %c0_i32_1 = arith.constant 0 : i32
    return %c0_i32, %c0_i32_0 : i32, i32
  }
  func.func @transform_3(%arg0: i32) -> (i32, i32) {
    %c0_i32 = arith.constant 0 : i32
    %c0_i32_0 = arith.constant 0 : i32
    %c0_i32_1 = arith.constant 0 : i32
    return %c0_i32, %c0_i32_0 : i32, i32
  }
  func.func @transform_4(%arg0: i32) -> (i32, i32) {
    %c0_i32 = arith.constant 0 : i32
    %c0_i32_0 = arith.constant 0 : i32
    %c0_i32_1 = arith.constant 0 : i32
    return %c0_i32, %c0_i32_0 : i32, i32
  }
  func.func @transform_5(%arg0: i32) -> (i32, i32, i32) {
    %c0_i32 = arith.constant 0 : i32
    %c0_i32_0 = arith.constant 0 : i32
    %c0_i32_1 = arith.constant 0 : i32
    %c0_i32_2 = arith.constant 0 : i32
    return %c0_i32, %c0_i32_0, %c0_i32_1 : i32, i32, i32
  }
  func.func @transform_6(%arg0: i32) -> (i32, i32, i32) {
    %c0_i32 = arith.constant 0 : i32
    %c0_i32_0 = arith.constant 0 : i32
    %c0_i32_1 = arith.constant 0 : i32
    %c0_i32_2 = arith.constant 0 : i32
    return %c0_i32, %c0_i32_0, %c0_i32_1 : i32, i32, i32
  }
  func.func @transform_7(%arg0: i32) -> (i32, i32, i32) {
    %c0_i32 = arith.constant 0 : i32
    %c0_i32_0 = arith.constant 0 : i32
    %c0_i32_1 = arith.constant 0 : i32
    %c0_i32_2 = arith.constant 0 : i32
    return %c0_i32, %c0_i32_0, %c0_i32_1 : i32, i32, i32
  }
  func.func @transform_8(%arg0: i32) -> (i32, i32, i32) {
    %c0_i32 = arith.constant 0 : i32
    %c0_i32_0 = arith.constant 0 : i32
    %c0_i32_1 = arith.constant 0 : i32
    %c0_i32_2 = arith.constant 0 : i32
    return %c0_i32, %c0_i32_0, %c0_i32_1 : i32, i32, i32
  }
  func.func @transform_9(%arg0: i32) -> (i32, i32, i32) {
    %c0_i32 = arith.constant 0 : i32
    %c0_i32_0 = arith.constant 0 : i32
    %c0_i32_1 = arith.constant 0 : i32
    %c0_i32_2 = arith.constant 0 : i32
    return %c0_i32, %c0_i32_0, %c0_i32_1 : i32, i32, i32
  }
  func.func @transform_10(%arg0: i32) -> (i32, i32, i32) {
    %c0_i32 = arith.constant 0 : i32
    %c0_i32_0 = arith.constant 0 : i32
    %c0_i32_1 = arith.constant 0 : i32
    %c0_i32_2 = arith.constant 0 : i32
    return %c0_i32, %c0_i32_0, %c0_i32_1 : i32, i32, i32
  }
  func.func @transform_11(%arg0: i32) -> (i32, i32, i32) {
    %c0_i32 = arith.constant 0 : i32
    %c0_i32_0 = arith.constant 0 : i32
    %c0_i32_1 = arith.constant 0 : i32
    %c0_i32_2 = arith.constant 0 : i32
    return %c0_i32, %c0_i32_0, %c0_i32_1 : i32, i32, i32
  }
  func.func @transform_12(%arg0: i32) -> (i32, i32, i32) {
    %c0_i32 = arith.constant 0 : i32
    %c0_i32_0 = arith.constant 0 : i32
    %c0_i32_1 = arith.constant 0 : i32
    %c0_i32_2 = arith.constant 0 : i32
    return %c0_i32, %c0_i32_0, %c0_i32_1 : i32, i32, i32
  }
  func.func @transform_13(%arg0: i32) -> (i32, i32, i32) {
    %c0_i32 = arith.constant 0 : i32
    %c0_i32_0 = arith.constant 0 : i32
    %c0_i32_1 = arith.constant 0 : i32
    return %arg0, %c0_i32, %c0_i32_0 : i32, i32, i32
  }
}

</mosaic_0001>

<llo_original>
// kernel: tpu_custom_call.1
$region0: #{tpu_custom_call.1}
  #allocation0 [shape = 'u32[]', space=smem, size = 0x4, offset = 0x4, fixed_abs, tag = 'smem constant byte address 0x4 - core index']
  #allocation1 [shape = 'u32[72,128]{1,0:T(1,128)}', space=vmem, size = 0x9000, scoped, tag = 'internal scratch']
  %s0 = inlined_call_operand.vmem [shape: f32[2,16,128], index: 0, kind: input, shape index: {}]
  %s1 = inlined_call_operand.vmem [shape: f32[32,48], index: 1, kind: input, shape index: {}]
  %s2 = inlined_call_operand.vmem [shape: f32[32,1], index: 2, kind: input, shape index: {}]
  %s3 = inlined_call_operand.vmem [shape: f32[32,1], index: 3, kind: input, shape index: {}]
  %s4 = inlined_call_operand.vmem [shape: f32[32,1], index: 4, kind: input, shape index: {}]
  %s5 = inlined_call_operand.vmem [shape: f32[3,32,96], index: 5, kind: input, shape index: {}]
  %s6 = inlined_call_operand.vmem [shape: f32[3,32,1], index: 6, kind: input, shape index: {}]
  %s7 = inlined_call_operand.vmem [shape: f32[3,32,1], index: 7, kind: input, shape index: {}]
  %s8 = inlined_call_operand.vmem [shape: f32[3,32,1], index: 8, kind: input, shape index: {}]
  %s9 = inlined_call_operand.vmem [shape: f32[3,32,96], index: 9, kind: input, shape index: {}]
  %s10 = inlined_call_operand.vmem [shape: f32[3,32,1], index: 10, kind: input, shape index: {}]
  %s11 = inlined_call_operand.vmem [shape: f32[3,32,1], index: 11, kind: input, shape index: {}]
  %s12 = inlined_call_operand.vmem [shape: f32[3,32,1], index: 12, kind: input, shape index: {}]
  %s13 = inlined_call_operand.hbm [shape: f32[2,32,128], index: 13, kind: output, shape index: {}]
  %s14 = sld [smem:[#allocation0]]
  $region85: #{tpu_custom_call.1} parent=0
    _
  %s16 = ssub.s32 1, %s14
  %s17 = scalar_select 0, %s16, %s14
  $region1: #{tpu_custom_call.1} parent=0
    #allocation2 [shape = 'u8[32768]{0}', space=vmem, size = 0x8000, scoped, tag = 'output window, operand 0']
    #allocation3 [shape = 's32[2]{0}', space=sflag, size = 0x8, scoped, tag = 'scoped memory for tpu_custom_call.1']
    %18 = vsyncpa [#allocation3], 0
    %s19 = scalar_lea.sflag [#allocation3], 1
    %20 = vsyncpa %s19, 0
    loop: start=0, step=1, limit=4
    $region2: #{tpu_custom_call.1} parent=1 // loop_pre_header
      _
    $region3: #{tpu_custom_call.1} parent=1 // loop_header
      %s22 = sphi 0, %s26
      %p23 = scmp.ge.s32.totalorder %s22, 4
      %s32 = sphi 0, %s34
      %s35 = sphi 0, %s32
      %s36 = sphi 0, %s35
      %s52 = sphi 0, %s36
      %s56 = sphi 0, %s56
      %s58 = sphi 0, %s56
      %s59 = sphi 0, %s58
      %s73 = sphi 0, %s59
      %s77 = sphi 0, %s77
      %s79 = sphi 0, %s77
      %s80 = sphi 0, %s79
      %s94 = sphi 0, %s80
      %s98 = sphi 0, %s98
      %s100 = sphi 0, %s98
      %s101 = sphi 0, %s100
      %s115 = sphi 0, %s101
      %s119 = sphi 0, %s119
      %s121 = sphi 0, %s119
      %s122 = sphi 0, %s121
      %s136 = sphi 0, %s122
      %s140 = sphi 0, %s140
      %s142 = sphi 0, %s140
      %s143 = sphi 0, %s142
      %s157 = sphi 0, %s143
      %s161 = sphi 0, %s161
      %s163 = sphi 0, %s161
      %s164 = sphi 0, %s163
      %s178 = sphi 0, %s164
      %s182 = sphi 0, %s182
      %s184 = sphi 0, %s182
      %s185 = sphi 0, %s184
      %s199 = sphi 0, %s185
      %s203 = sphi 0, %s203
      %s205 = sphi 0, %s203
      %s206 = sphi 0, %s205
      %s220 = sphi 0, %s206
      %s224 = sphi 0, %s224
      %s226 = sphi 0, %s224
      %s227 = sphi 0, %s226
      %s241 = sphi 0, %s227
      %s245 = sphi 0, %s245
      %s247 = sphi 0, %s245
      %s248 = sphi 0, %s247
      %s262 = sphi 0, %s248
      %s266 = sphi 0, %s266
      %s268 = sphi 0, %s266
      %s269 = sphi 0, %s268
      %s283 = sphi 0, %s269
      %s287 = sphi 0, %s287
      %s289 = sphi 0, %s287
      %s290 = sphi 0, %s289
      %s304 = sphi 0, %s290
      %s310 = sphi 0, %s312
      %s313 = sphi 0, %s310
      %s314 = sphi 0, %s313
      %s330 = sphi 0, %s314
    $region4: #{tpu_custom_call.1} parent=1 // loop_header_branch
      %25 = sbr.rel (%p23) target = $region8
    $region5: #{tpu_custom_call.1} parent=1 // loop_body
      %s27 = ssub.s32 %s22, 1
      %s28 = ssub.s32 %s22, 2
      %s29 = sadd.s32 %s22, 1
      %s30 = ssub.s32 %s22, %s29
      %p31 = scmp.eq.s32.totalorder %s30, 0
      %s33 = sadd.s32 %s32, 1
      %s34 = scalar_select %p31, %s32, %s33
      %p37 = pneg %p31
      %p38 = scmp.eq.s32.totalorder %s22, 1
      %p39 = por %p37, %p38
      %p40 = scmp.ne.s32.totalorder %s32, %s35
      %p41 = scmp.eq.s32.totalorder %s22, 0
      %p42 = por %p40, %p41
      %p43 = scmp.ne.s32.totalorder %s32, %s35
      %p44 = scmp.eq.s32.totalorder %s27, 1
      %p45 = por %p43, %p44
      %p46 = scmp.ne.s32.totalorder %s35, %s36
      %p47 = scmp.eq.s32.totalorder %s27, 0
      %p48 = por %p46, %p47
      %p49 = scmp.ne.s32.totalorder %s35, %s36
      %p50 = scmp.eq.s32.totalorder %s28, 1
      %p51 = por %p49, %p50
      %p53 = scmp.ne.s32.totalorder %s36, %s52
      %p54 = scmp.eq.s32.totalorder %s28, 0
      %p55 = por %p53, %p54
      %s57 = sadd.s32 %s56, 1
      %p60 = scmp.eq.s32.totalorder %s22, 1
      %p61 = scmp.ne.s32.totalorder %s56, %s58
      %p62 = scmp.eq.s32.totalorder %s22, 0
      %p63 = por %p61, %p62
      %p64 = scmp.ne.s32.totalorder %s56, %s58
      %p65 = scmp.eq.s32.totalorder %s27, 1
      %p66 = por %p64, %p65
      %p67 = scmp.ne.s32.totalorder %s58, %s59
      %p68 = scmp.eq.s32.totalorder %s27, 0
      %p69 = por %p67, %p68
      %p70 = scmp.ne.s32.totalorder %s58, %s59
      %p71 = scmp.eq.s32.totalorder %s28, 1
      %p72 = por %p70, %p71
      %p74 = scmp.ne.s32.totalorder %s59, %s73
      %p75 = scmp.eq.s32.totalorder %s28, 0
      %p76 = por %p74, %p75
      %s78 = sadd.s32 %s77, 1
      %p81 = scmp.eq.s32.totalorder %s22, 1
      %p82 = scmp.ne.s32.totalorder %s77, %s79
      %p83 = scmp.eq.s32.totalorder %s22, 0
      %p84 = por %p82, %p83
      %p85 = scmp.ne.s32.totalorder %s77, %s79
      %p86 = scmp.eq.s32.totalorder %s27, 1
      %p87 = por %p85, %p86
      %p88 = scmp.ne.s32.totalorder %s79, %s80
      %p89 = scmp.eq.s32.totalorder %s27, 0
      %p90 = por %p88, %p89
      %p91 = scmp.ne.s32.totalorder %s79, %s80
      %p92 = scmp.eq.s32.totalorder %s28, 1
      %p93 = por %p91, %p92
      %p95 = scmp.ne.s32.totalorder %s80, %s94
      %p96 = scmp.eq.s32.totalorder %s28, 0
      %p97 = por %p95, %p96
      %s99 = sadd.s32 %s98, 1
      %p102 = scmp.eq.s32.totalorder %s22, 1
      %p103 = scmp.ne.s32.totalorder %s98, %s100
      %p104 = scmp.eq.s32.totalorder %s22, 0
      %p105 = por %p103, %p104
      %p106 = scmp.ne.s32.totalorder %s98, %s100
      %p107 = scmp.eq.s32.totalorder %s27, 1
      %p108 = por %p106, %p107
      %p109 = scmp.ne.s32.totalorder %s100, %s101
      %p110 = scmp.eq.s32.totalorder %s27, 0
      %p111 = por %p109, %p110
      %p112 = scmp.ne.s32.totalorder %s100, %s101
      %p113 = scmp.eq.s32.totalorder %s28, 1
      %p114 = por %p112, %p113
      %p116 = scmp.ne.s32.totalorder %s101, %s115
      %p117 = scmp.eq.s32.totalorder %s28, 0
      %p118 = por %p116, %p117
      %s120 = sadd.s32 %s119, 1
      %p123 = scmp.eq.s32.totalorder %s22, 1
      %p124 = scmp.ne.s32.totalorder %s119, %s121
      %p125 = scmp.eq.s32.totalorder %s22, 0
      %p126 = por %p124, %p125
      %p127 = scmp.ne.s32.totalorder %s119, %s121
      %p128 = scmp.eq.s32.totalorder %s27, 1
      %p129 = por %p127, %p128
      %p130 = scmp.ne.s32.totalorder %s121, %s122
      %p131 = scmp.eq.s32.totalorder %s27, 0
      %p132 = por %p130, %p131
      %p133 = scmp.ne.s32.totalorder %s121, %s122
      %p134 = scmp.eq.s32.totalorder %s28, 1
      %p135 = por %p133, %p134
      %p137 = scmp.ne.s32.totalorder %s122, %s136
      %p138 = scmp.eq.s32.totalorder %s28, 0
      %p139 = por %p137, %p138
      %s141 = sadd.s32 %s140, 1
      %p144 = scmp.eq.s32.totalorder %s22, 1
      %p145 = scmp.ne.s32.totalorder %s140, %s142
      %p146 = scmp.eq.s32.totalorder %s22, 0
      %p147 = por %p145, %p146
      %p148 = scmp.ne.s32.totalorder %s140, %s142
      %p149 = scmp.eq.s32.totalorder %s27, 1
      %p150 = por %p148, %p149
      %p151 = scmp.ne.s32.totalorder %s142, %s143
      %p152 = scmp.eq.s32.totalorder %s27, 0
      %p153 = por %p151, %p152
      %p154 = scmp.ne.s32.totalorder %s142, %s143
      %p155 = scmp.eq.s32.totalorder %s28, 1
      %p156 = por %p154, %p155
      %p158 = scmp.ne.s32.totalorder %s143, %s157
      %p159 = scmp.eq.s32.totalorder %s28, 0
      %p160 = por %p158, %p159
      %s162 = sadd.s32 %s161, 1
      %p165 = scmp.eq.s32.totalorder %s22, 1
      %p166 = scmp.ne.s32.totalorder %s161, %s163
      %p167 = scmp.eq.s32.totalorder %s22, 0
      %p168 = por %p166, %p167
      %p169 = scmp.ne.s32.totalorder %s161, %s163
      %p170 = scmp.eq.s32.totalorder %s27, 1
      %p171 = por %p169, %p170
      %p172 = scmp.ne.s32.totalorder %s163, %s164
      %p173 = scmp.eq.s32.totalorder %s27, 0
      %p174 = por %p172, %p173
      %p175 = scmp.ne.s32.totalorder %s163, %s164
      %p176 = scmp.eq.s32.totalorder %s28, 1
      %p177 = por %p175, %p176
      %p179 = scmp.ne.s32.totalorder %s164, %s178
      %p180 = scmp.eq.s32.totalorder %s28, 0
      %p181 = por %p179, %p180
      %s183 = sadd.s32 %s182, 1
      %p186 = scmp.eq.s32.totalorder %s22, 1
      %p187 = scmp.ne.s32.totalorder %s182, %s184
      %p188 = scmp.eq.s32.totalorder %s22, 0
      %p189 = por %p187, %p188
      %p190 = scmp.ne.s32.totalorder %s182, %s184
      %p191 = scmp.eq.s32.totalorder %s27, 1
      %p192 = por %p190, %p191
      %p193 = scmp.ne.s32.totalorder %s184, %s185
      %p194 = scmp.eq.s32.totalorder %s27, 0
      %p195 = por %p193, %p194
      %p196 = scmp.ne.s32.totalorder %s184, %s185
      %p197 = scmp.eq.s32.totalorder %s28, 1
      %p198 = por %p196, %p197
      %p200 = scmp.ne.s32.totalorder %s185, %s199
      %p201 = scmp.eq.s32.totalorder %s28, 0
      %p202 = por %p200, %p201
      %s204 = sadd.s32 %s203, 1
      %p207 = scmp.eq.s32.totalorder %s22, 1
      %p208 = scmp.ne.s32.totalorder %s203, %s205
      %p209 = scmp.eq.s32.totalorder %s22, 0
      %p210 = por %p208, %p209
      %p211 = scmp.ne.s32.totalorder %s203, %s205
      %p212 = scmp.eq.s32.totalorder %s27, 1
      %p213 = por %p211, %p212
      %p214 = scmp.ne.s32.totalorder %s205, %s206
      %p215 = scmp.eq.s32.totalorder %s27, 0
      %p216 = por %p214, %p215
      %p217 = scmp.ne.s32.totalorder %s205, %s206
      %p218 = scmp.eq.s32.totalorder %s28, 1
      %p219 = por %p217, %p218
      %p221 = scmp.ne.s32.totalorder %s206, %s220
      %p222 = scmp.eq.s32.totalorder %s28, 0
      %p223 = por %p221, %p222
      %s225 = sadd.s32 %s224, 1
      %p228 = scmp.eq.s32.totalorder %s22, 1
      %p229 = scmp.ne.s32.totalorder %s224, %s226
      %p230 = scmp.eq.s32.totalorder %s22, 0
      %p231 = por %p229, %p230
      %p232 = scmp.ne.s32.totalorder %s224, %s226
      %p233 = scmp.eq.s32.totalorder %s27, 1
      %p234 = por %p232, %p233
      %p235 = scmp.ne.s32.totalorder %s226, %s227
      %p236 = scmp.eq.s32.totalorder %s27, 0
      %p237 = por %p235, %p236
      %p238 = scmp.ne.s32.totalorder %s226, %s227
      %p239 = scmp.eq.s32.totalorder %s28, 1
      %p240 = por %p238, %p239
      %p242 = scmp.ne.s32.totalorder %s227, %s241
      %p243 = scmp.eq.s32.totalorder %s28, 0
      %p244 = por %p242, %p243
      %s246 = sadd.s32 %s245, 1
      %p249 = scmp.eq.s32.totalorder %s22, 1
      %p250 = scmp.ne.s32.totalorder %s245, %s247
      %p251 = scmp.eq.s32.totalorder %s22, 0
      %p252 = por %p250, %p251
      %p253 = scmp.ne.s32.totalorder %s245, %s247
      %p254 = scmp.eq.s32.totalorder %s27, 1
      %p255 = por %p253, %p254
      %p256 = scmp.ne.s32.totalorder %s247, %s248
      %p257 = scmp.eq.s32.totalorder %s27, 0
      %p258 = por %p256, %p257
      %p259 = scmp.ne.s32.totalorder %s247, %s248
      %p260 = scmp.eq.s32.totalorder %s28, 1
      %p261 = por %p259, %p260
      %p263 = scmp.ne.s32.totalorder %s248, %s262
      %p264 = scmp.eq.s32.totalorder %s28, 0
      %p265 = por %p263, %p264
      %s267 = sadd.s32 %s266, 1
      %p270 = scmp.eq.s32.totalorder %s22, 1
      %p271 = scmp.ne.s32.totalorder %s266, %s268
      %p272 = scmp.eq.s32.totalorder %s22, 0
      %p273 = por %p271, %p272
      %p274 = scmp.ne.s32.totalorder %s266, %s268
      %p275 = scmp.eq.s32.totalorder %s27, 1
      %p276 = por %p274, %p275
      %p277 = scmp.ne.s32.totalorder %s268, %s269
      %p278 = scmp.eq.s32.totalorder %s27, 0
      %p279 = por %p277, %p278
      %p280 = scmp.ne.s32.totalorder %s268, %s269
      %p281 = scmp.eq.s32.totalorder %s28, 1
      %p282 = por %p280, %p281
      %p284 = scmp.ne.s32.totalorder %s269, %s283
      %p285 = scmp.eq.s32.totalorder %s28, 0
      %p286 = por %p284, %p285
      %s288 = sadd.s32 %s287, 1
      %p291 = scmp.eq.s32.totalorder %s22, 1
      %p292 = scmp.ne.s32.totalorder %s287, %s289
      %p293 = scmp.eq.s32.totalorder %s22, 0
      %p294 = por %p292, %p293
      %p295 = scmp.ne.s32.totalorder %s287, %s289
      %p296 = scmp.eq.s32.totalorder %s27, 1
      %p297 = por %p295, %p296
      %p298 = scmp.ne.s32.totalorder %s289, %s290
      %p299 = scmp.eq.s32.totalorder %s27, 0
      %p300 = por %p298, %p299
      %p301 = scmp.ne.s32.totalorder %s289, %s290
      %p302 = scmp.eq.s32.totalorder %s28, 1
      %p303 = por %p301, %p302
      %p305 = scmp.ne.s32.totalorder %s290, %s304
      %p306 = scmp.eq.s32.totalorder %s28, 0
      %p307 = por %p305, %p306
      %s308 = ssub.s32 %s22, %s29
      %p309 = scmp.eq.s32.totalorder %s308, 0
      %s311 = sadd.s32 %s310, 1
      %s312 = scalar_select %p309, %s310, %s311
      %p315 = pneg %p309
      %p316 = scmp.eq.s32.totalorder %s22, 1
      %p317 = por %p315, %p316
      %p318 = scmp.ne.s32.totalorder %s310, %s313
      %p319 = scmp.eq.s32.totalorder %s22, 0
      %p320 = por %p318, %p319
      %p321 = scmp.ne.s32.totalorder %s310, %s313
      %p322 = scmp.eq.s32.totalorder %s27, 1
      %p323 = por %p321, %p322
      %p324 = scmp.ne.s32.totalorder %s313, %s314
      %p325 = scmp.eq.s32.totalorder %s27, 0
      %p326 = por %p324, %p325
      %p327 = scmp.ne.s32.totalorder %s313, %s314
      %p328 = scmp.eq.s32.totalorder %s28, 1
      %p329 = por %p327, %p328
      %p331 = scmp.ne.s32.totalorder %s314, %s330
      %p332 = scmp.eq.s32.totalorder %s28, 0
      %p333 = por %p331, %p332
      %p334 = scmp.le.s32.totalorder 1, %s22
      %p335 = scmp.lt.s32.totalorder %s22, 3
      %p336 = pnand %p334, %p335
      %p337 = pneg %p336
      // Predicated region
      $region9: #{tpu_custom_call.1} parent=5 // pred_check
        _
      $region10: #{tpu_custom_call.1} parent=5 // pred_check_branch
        %339 = sbr.rel (%p336) target = $region12
      $region11: #{tpu_custom_call.1} parent=5 // pred_region
        %s340 = ssub.s32 %s22, 1
        // Predicated region
        $region13: #{tpu_custom_call.1} parent=11 // pred_check
          %p341 = pneg %p69
        $region14: #{tpu_custom_call.1} parent=11 // pred_check_branch
          %343 = sbr.rel (%p341) target = $region16
        $region15: #{tpu_custom_call.1} parent=11 // pred_region
          _
        $region16: #{tpu_custom_call.1} parent=11 // pred_fallthru
          _
        // Predicated region
        $region17: #{tpu_custom_call.1} parent=11 // pred_check
          %p344 = pneg %p90
        $region18: #{tpu_custom_call.1} parent=11 // pred_check_branch
          %346 = sbr.rel (%p344) target = $region20
        $region19: #{tpu_custom_call.1} parent=11 // pred_region
          _
        $region20: #{tpu_custom_call.1} parent=11 // pred_fallthru
          _
        // Predicated region
        $region21: #{tpu_custom_call.1} parent=11 // pred_check
          %p347 = pneg %p111
        $region22: #{tpu_custom_call.1} parent=11 // pred_check_branch
          %349 = sbr.rel (%p347) target = $region24
        $region23: #{tpu_custom_call.1} parent=11 // pred_region
          _
        $region24: #{tpu_custom_call.1} parent=11 // pred_fallthru
          _
        // Predicated region
        $region25: #{tpu_custom_call.1} parent=11 // pred_check
          %p350 = pneg %p132
        $region26: #{tpu_custom_call.1} parent=11 // pred_check_branch
          %352 = sbr.rel (%p350) target = $region28
        $region27: #{tpu_custom_call.1} parent=11 // pred_region
          _
        $region28: #{tpu_custom_call.1} parent=11 // pred_fallthru
          _
        // Predicated region
        $region29: #{tpu_custom_call.1} parent=11 // pred_check
          %p353 = pneg %p153
        $region30: #{tpu_custom_call.1} parent=11 // pred_check_branch
          %355 = sbr.rel (%p353) target = $region32
        $region31: #{tpu_custom_call.1} parent=11 // pred_region
          _
        $region32: #{tpu_custom_call.1} parent=11 // pred_fallthru
          _
        // Predicated region
        $region33: #{tpu_custom_call.1} parent=11 // pred_check
          %p356 = pneg %p174
        $region34: #{tpu_custom_call.1} parent=11 // pred_check_branch
          %358 = sbr.rel (%p356) target = $region36
        $region35: #{tpu_custom_call.1} parent=11 // pred_region
          _
        $region36: #{tpu_custom_call.1} parent=11 // pred_fallthru
          _
        // Predicated region
        $region37: #{tpu_custom_call.1} parent=11 // pred_check
          %p359 = pneg %p195
        $region38: #{tpu_custom_call.1} parent=11 // pred_check_branch
          %361 = sbr.rel (%p359) target = $region40
        $region39: #{tpu_custom_call.1} parent=11 // pred_region
          _
        $region40: #{tpu_custom_call.1} parent=11 // pred_fallthru
          _
        // Predicated region
        $region41: #{tpu_custom_call.1} parent=11 // pred_check
          %p362 = pneg %p216
        $region42: #{tpu_custom_call.1} parent=11 // pred_check_branch
          %364 = sbr.rel (%p362) target = $region44
        $region43: #{tpu_custom_call.1} parent=11 // pred_region
          _
        $region44: #{tpu_custom_call.1} parent=11 // pred_fallthru
          _
        // Predicated region
        $region45: #{tpu_custom_call.1} parent=11 // pred_check
          %p365 = pneg %p237
        $region46: #{tpu_custom_call.1} parent=11 // pred_check_branch
          %367 = sbr.rel (%p365) target = $region48
        $region47: #{tpu_custom_call.1} parent=11 // pred_region
          _
        $region48: #{tpu_custom_call.1} parent=11 // pred_fallthru
          _
        // Predicated region
        $region49: #{tpu_custom_call.1} parent=11 // pred_check
          %p368 = pneg %p258
        $region50: #{tpu_custom_call.1} parent=11 // pred_check_branch
          %370 = sbr.rel (%p368) target = $region52
        $region51: #{tpu_custom_call.1} parent=11 // pred_region
          _
        $region52: #{tpu_custom_call.1} parent=11 // pred_fallthru
          _
        // Predicated region
        $region53: #{tpu_custom_call.1} parent=11 // pred_check
          %p371 = pneg %p279
        $region54: #{tpu_custom_call.1} parent=11 // pred_check_branch
          %373 = sbr.rel (%p371) target = $region56
        $region55: #{tpu_custom_call.1} parent=11 // pred_region
          _
        $region56: #{tpu_custom_call.1} parent=11 // pred_fallthru
          _
        // Predicated region
        $region57: #{tpu_custom_call.1} parent=11 // pred_check
          %p374 = pneg %p300
        $region58: #{tpu_custom_call.1} parent=11 // pred_check_branch
          %376 = sbr.rel (%p374) target = $region60
        $region59: #{tpu_custom_call.1} parent=11 // pred_region
          _
        $region60: #{tpu_custom_call.1} parent=11 // pred_fallthru
          _
      $region12: #{tpu_custom_call.1} parent=5 // pred_fallthru
        _
      %p377 = scmp.lt.s32.totalorder %s22, 2
      // Predicated region
      $region61: #{tpu_custom_call.1} parent=5 // pred_check
        %p378 = pneg %p377
      $region62: #{tpu_custom_call.1} parent=5 // pred_check_branch
        %380 = sbr.rel (%p378) target = $region64
      $region63: #{tpu_custom_call.1} parent=5 // pred_region
        // Predicated region
        $region65: #{tpu_custom_call.1} parent=63 // pred_check
          %p381 = pneg %p42
        $region66: #{tpu_custom_call.1} parent=63 // pred_check_branch
          %383 = sbr.rel (%p381) target = $region68
        $region67: #{tpu_custom_call.1} parent=63 // pred_region
          %p384 = scmp.lt.s32.totalorder %s22, 1
          %s385 = scalar_select %p384, %s22, 1
          %s386 = smul.addr %s385, 2
          %s387 = smul.addr %s386, 8
          %s388 = scalar_lea.vmem %s0, %s387
        $region68: #{tpu_custom_call.1} parent=63 // pred_fallthru
          _
      $region64: #{tpu_custom_call.1} parent=5 // pred_fallthru
        _
      %p389 = scmp.le.s32.totalorder 1, %s22
      %p390 = scmp.lt.s32.totalorder %s22, 3
      %p391 = pnand %p389, %p390
      %p392 = pneg %p391
      // Predicated region
      $region69: #{tpu_custom_call.1} parent=5 // pred_check
        _
      $region70: #{tpu_custom_call.1} parent=5 // pred_check_branch
        %394 = sbr.rel (%p391) target = $region72
      $region71: #{tpu_custom_call.1} parent=5 // pred_region
        %s395 = ssub.s32 %s22, 1
        %p396 = scmp.lt.s32.totalorder %s27, 1
        %s397 = scalar_select %p396, %s27, 1
        %s398 = smul.addr %s397, 2
        %s399 = smul.addr %s398, 8
        %s400 = scalar_lea.vmem %s0, %s399
        %p401 = pneg %p48
        %p402 = pneg %p45
        %p403 = pneg %p69
        %p404 = pneg %p66
        %p405 = pneg %p90
        %p406 = pneg %p87
        %p407 = pneg %p111
        %p408 = pneg %p108
        %p409 = pneg %p132
        %p410 = pneg %p129
        %p411 = pneg %p153
        %p412 = pneg %p150
        %p413 = pneg %p174
        %p414 = pneg %p171
        %p415 = pneg %p195
        %p416 = pneg %p192
        %p417 = pneg %p216
        %p418 = pneg %p213
        %p419 = pneg %p237
        %p420 = pneg %p234
        %p421 = pneg %p258
        %p422 = pneg %p255
        %p423 = pneg %p279
        %p424 = pneg %p276
        %p425 = pneg %p300
        %p426 = pneg %p297
        %p427 = pneg %p326
        %p428 = pneg %p323
        %s429 = sand.u32 %s313, 1
        %s430 = scalar_lea.sflag [#allocation3], %s429
        %s431 = sand.u32 %s313, 1
        %s432 = smul.addr %s431, 32
        %s433 = scalar_lea.vmem [#allocation2], %s432
        %p434 = scmp.lt.s32.totalorder %s27, 1
        %s435 = scalar_select %p434, %s27, 1
        %s436 = smul.addr %s435, 2
        %s437 = smul.addr %s436, 8
        %s438 = scalar_lea.vmem %s0, %s437
        %v439 = vlaneseq
        %v440 = vand.u32 %v439, 127
        %vm441 = vcmp.lt.s32.totalorder %v440, 16
        %v442 = vsel %vm441, 1, 0
        %v443 = vcvt.s32.f32 %v442
        %v444 = vadd.s32 %v440, 1
        %vm445 = vcmp.ge.s32.totalorder %v444, 0
        %vm446 = vcmp.lt.s32.totalorder %v444, 16
        %vm447 = vmand %vm445, %vm446
        %v448 = vadd.s32 %v440, 3
        %vm449 = vcmp.ge.s32.totalorder %v448, 0
        %vm450 = vcmp.lt.s32.totalorder %v448, 16
        %vm451 = vmand %vm449, %vm450
        %v452 = vadd.s32 %v440, 9
        %vm453 = vcmp.ge.s32.totalorder %v452, 0
        %vm454 = vcmp.lt.s32.totalorder %v452, 16
        %vm455 = vmand %vm453, %vm454
        %v456 = vadd.s32 %v440, 4294967287
        %vm457 = vcmp.ge.s32.totalorder %v456, 0
        %vm458 = vcmp.lt.s32.totalorder %v456, 16
        %vm459 = vmand %vm457, %vm458
        %v460 = vadd.s32 %v440, 4294967293
        %vm461 = vcmp.ge.s32.totalorder %v460, 0
        %vm462 = vcmp.lt.s32.totalorder %v460, 16
        %vm463 = vmand %vm461, %vm462
        %v464 = vadd.s32 %v440, 4294967295
        %vm465 = vcmp.ge.s32.totalorder %v464, 0
        %vm466 = vcmp.lt.s32.totalorder %v464, 16
        %vm467 = vmand %vm465, %vm466
        %v468 = vld [vmem:[%s438] sm:$0xff]
        %v469 = vld [vmem:[%s438 + $0x8] sm:$0xff]
        %470 = vrot.lane.b32.xlu0 %v468, 1
        %v471 = vpop.permute.xlu0 %470
        %472 = vrot.lane.b32.xlu0 %v469, 1
        %v473 = vpop.permute.xlu0 %472
        %v474 = vsel %vm467, 1, 0
        %vm475 = vcmp.eq.s32.totalorder %v474, 1
        %v476 = vsel %vm475, %v471, 0.0
        %v477 = vsel %vm475, %v473, 0.0
        %478 = vrot.lane.b32.xlu0 %v468, 127
        %v479 = vpop.permute.xlu0 %478
        %480 = vrot.lane.b32.xlu0 %v469, 127
        %v481 = vpop.permute.xlu0 %480
        %v482 = vsel %vm447, 1, 0
        %vm483 = vcmp.eq.s32.totalorder %v482, 1
        %v484 = vsel %vm483, %v479, 0.0
        %v485 = vsel %vm483, %v481, 0.0
        %v486 = vld [vmem:[%s2] sm:$0xff]
        %v487 = vld [vmem:[%s2 + $0x8] sm:$0xff]
        %v488 = vld [vmem:[%s2 + $0x10] sm:$0xff]
        %v489 = vld [vmem:[%s2 + $0x18] sm:$0xff]
        %v490 = vld [vmem:[%s1] sm:$0xff]
        %v491 = vld [vmem:[%s1 + $0x8] sm:$0xff]
        %v492 = vld [vmem:[%s1 + $0x10] sm:$0xff]
        %v493 = vld [vmem:[%s1 + $0x18] sm:$0xff]
        %495 = vset.pattern.permute.xlu0 0
        %496 = vperm.xlu0 %495, %v486
        %v497 = vpop.permute.xlu0 %496
        %500 = vset.pattern.permute.xlu0 0
        %501 = vperm.xlu0 %500, %v487
        %v502 = vpop.permute.xlu0 %501
        %505 = vset.pattern.permute.xlu0 0
        %506 = vperm.xlu0 %505, %v488
        %v507 = vpop.permute.xlu0 %506
        %510 = vset.pattern.permute.xlu0 0
        %511 = vperm.xlu0 %510, %v489
        %v512 = vpop.permute.xlu0 %511
        %vm514 = vcmask 392192
        %v516 = vsel %vm514, %v490, 0
        %v519 = vsel %vm514, %v491, 0
        %v522 = vsel %vm514, %v492, 0
        %v525 = vsel %vm514, %v493, 0
        %527 = vmatpush.msra.mxu0 0.0
        %528 = vmatpush.msra.mxu0 0.0
        %529 = vmatpush.msra.mxu0 0.0
        %530 = vmatpush.msra.mxu0 0.0
        %531 = vmatpush.msra.mxu0 0.0
        %532 = vmatpush.msra.mxu0 0.0
        %533 = vmatpush.msra.mxu0 0.0
        %534 = vmatpush.msra.mxu0 0.0
        %535 = vmatpush.msra.mxu0 0.0
        %536 = vmatpush.msra.mxu0 0.0
        %537 = vmatpush.msra.mxu0 %v485
        %538 = vmatpush.msra.mxu0 %v484
        %539 = vmatpush.msra.mxu0 %v469
        %540 = vmatpush.msra.mxu0 %v468
        %541 = vmatpush.msra.mxu0 %v477
        %542 = vmatpush.msra.mxu0 %v476
        %543 = vmatmul.f32.gmra.mxu0 %v516
        %v544 = vpop.f32.mrf.mxu0
        %v545 = vadd.f32 %v497, %v544
        %546 = vmatmul.f32.gmra.mxu0 %v519
        %v547 = vpop.f32.mrf.mxu0
        %v548 = vadd.f32 %v502, %v547
        %549 = vmatmul.f32.gmra.mxu0 %v522
        %v550 = vpop.f32.mrf.mxu0
        %v551 = vadd.f32 %v507, %v550
        %552 = vmatmul.f32.gmra.mxu0 %v525
        %v553 = vpop.f32.mrf.mxu0
        %v554 = vadd.f32 %v512, %v553
        %555 = vdwg.mxu0
        %v556 = vld [vmem:[%s3] sm:$0xff]
        %v557 = vld [vmem:[%s3 + $0x8] sm:$0xff]
        %v558 = vld [vmem:[%s3 + $0x10] sm:$0xff]
        %v559 = vld [vmem:[%s3 + $0x18] sm:$0xff]
        %v560 = vld [vmem:[%s4] sm:$0xff]
        %v561 = vld [vmem:[%s4 + $0x8] sm:$0xff]
        %v562 = vld [vmem:[%s4 + $0x10] sm:$0xff]
        %v563 = vld [vmem:[%s4 + $0x18] sm:$0xff]
        %v564 = vadd.f32 %v545, %v548
        %v565 = vadd.f32 %v564, %v551
        %v566 = vadd.f32 %v565, %v554
        %v567 = vrot.slane %v566, 4
        %v568 = vadd.f32 %v566, %v567
        %v569 = vrot.slane %v568, 2
        %v570 = vadd.f32 %v568, %v569
        %v571 = vrot.slane %v570, 1
        %v572 = vadd.f32 %v570, %v571
        %v573 = vmul.f32 %v545, %v545
        %v574 = vmul.f32 %v548, %v548
        %v575 = vmul.f32 %v551, %v551
        %v576 = vmul.f32 %v554, %v554
        %v577 = vadd.f32 %v573, %v574
        %v578 = vadd.f32 %v577, %v575
        %v579 = vadd.f32 %v578, %v576
        %v580 = vrot.slane %v579, 4
        %v581 = vadd.f32 %v579, %v580
        %v582 = vrot.slane %v581, 2
        %v583 = vadd.f32 %v581, %v582
        %v584 = vrot.slane %v583, 1
        %v585 = vadd.f32 %v583, %v584
        %v586 = vmul.f32 %v572, %v443
        %vm587 = vcmask 1040384
        %v588 = vsel %vm587, %v586, 0.0
        %589 = vadd.xlane.f32.xlu0 %v588
        %v590 = vpop.xlane.xlu0 %589
        %v591 = vrot.slane %v590, 4
        %v592 = vadd.f32 %v590, %v591
        %v593 = vrot.slane %v592, 2
        %v594 = vadd.f32 %v592, %v593
        %v595 = vrot.slane %v594, 1
        %v596 = vadd.f32 %v594, %v595
        %s597 = vtos %v596
        %v598 = vmul.f32 %v585, %v443
        %v599 = vsel %vm587, %v598, 0.0
        %600 = vadd.xlane.f32.xlu0 %v599
        %v601 = vpop.xlane.xlu0 %600
        %v602 = vrot.slane %v601, 4
        %v603 = vadd.f32 %v601, %v602
        %v604 = vrot.slane %v603, 2
        %v605 = vadd.f32 %v603, %v604
        %v606 = vrot.slane %v605, 1
        %v607 = vadd.f32 %v605, %v606
        %s608 = vtos %v607
        %s609 = smul.f32 %s597, 0.001953125
        %s610 = smul.f32 %s608, 0.001953125
        %s611 = smul.f32 %s609, %s609
        %s612 = ssub.f32 %s610, %s611
        %s613 = smax.f32 %s612, 0.0
        %s614 = sadd.f32 %s613, 1e-05
        %v615 = vstv %s614
        %v616 = vrsqrt.pop %v615
        %v617 = vmul.f32 %v616, %v615
        %v618 = vmul.f32 %v617, %v616
        %v619 = vmul.f32 0.5, %v618
        %v620 = vsub.f32 1.5, %v619
        %v621 = vmul.f32 %v616, %v620
        %vm622 = vweird.f32 %v615
        %vm623 = vweird.f32 %v616
        %vm624 = vmor %vm622, %vm623
        %v625 = vsel %vm624, %v616, %v621
        %s626 = vtos %v625
        %v627 = vstv %s626
        %v628 = vmul.f32 %v556, %v627
        %v629 = vmul.f32 %v557, %v627
        %v630 = vmul.f32 %v558, %v627
        %v631 = vmul.f32 %v559, %v627
        %s632 = smul.f32 %s609, %s626
        %v633 = vstv %s632
        %v634 = vmul.f32 %v633, %v556
        %v635 = vmul.f32 %v633, %v557
        %v636 = vmul.f32 %v633, %v558
        %v637 = vmul.f32 %v633, %v559
        %v638 = vsub.f32 %v560, %v634
        %v639 = vsub.f32 %v561, %v635
        %v640 = vsub.f32 %v562, %v636
        %v641 = vsub.f32 %v563, %v637
        %643 = vset.pattern.permute.xlu0 0
        %644 = vperm.xlu0 %643, %v628
        %v645 = vpop.permute.xlu0 %644
        %648 = vset.pattern.permute.xlu0 0
        %649 = vperm.xlu0 %648, %v629
        %v650 = vpop.permute.xlu0 %649
        %653 = vset.pattern.permute.xlu0 0
        %654 = vperm.xlu0 %653, %v630
        %v655 = vpop.permute.xlu0 %654
        %658 = vset.pattern.permute.xlu0 0
        %659 = vperm.xlu0 %658, %v631
        %v660 = vpop.permute.xlu0 %659
        %v662 = vmul.f32 %v545, %v645
        %v663 = vmul.f32 %v548, %v650
        %v664 = vmul.f32 %v551, %v655
        %v665 = vmul.f32 %v554, %v660
        %667 = vset.pattern.permute.xlu0 0
        %668 = vperm.xlu0 %667, %v638
        %v669 = vpop.permute.xlu0 %668
        %672 = vset.pattern.permute.xlu0 0
        %673 = vperm.xlu0 %672, %v639
        %v674 = vpop.permute.xlu0 %673
        %677 = vset.pattern.permute.xlu0 0
        %678 = vperm.xlu0 %677, %v640
        %v679 = vpop.permute.xlu0 %678
        %682 = vset.pattern.permute.xlu0 0
        %683 = vperm.xlu0 %682, %v641
        %v684 = vpop.permute.xlu0 %683
        %v686 = vadd.f32 %v662, %v669
        %v687 = vadd.f32 %v663, %v674
        %v688 = vadd.f32 %v664, %v679
        %v689 = vadd.f32 %v665, %v684
        %v690 = vmax.f32 %v686, 0.0
        %v691 = vmax.f32 %v687, 0.0
        %v692 = vmax.f32 %v688, 0.0
        %v693 = vmax.f32 %v689, 0.0
        %694 = vrot.lane.b32.xlu0 %v690, 1
        %v695 = vpop.permute.xlu0 %694
        %696 = vrot.lane.b32.xlu0 %v691, 1
        %v697 = vpop.permute.xlu0 %696
        %698 = vrot.lane.b32.xlu0 %v692, 1
        %v699 = vpop.permute.xlu0 %698
        %700 = vrot.lane.b32.xlu0 %v693, 1
        %v701 = vpop.permute.xlu0 %700
        %v702 = vsel %vm475, %v695, 0.0
        %v703 = vsel %vm475, %v697, 0.0
        %v704 = vsel %vm475, %v699, 0.0
        %v705 = vsel %vm475, %v701, 0.0
        %706 = vrot.lane.b32.xlu0 %v690, 127
        %v707 = vpop.permute.xlu0 %706
        %708 = vrot.lane.b32.xlu0 %v691, 127
        %v709 = vpop.permute.xlu0 %708
        %710 = vrot.lane.b32.xlu0 %v692, 127
        %v711 = vpop.permute.xlu0 %710
        %712 = vrot.lane.b32.xlu0 %v693, 127
        %v713 = vpop.permute.xlu0 %712
        %v714 = vsel %vm483, %v707, 0.0
        %v715 = vsel %vm483, %v709, 0.0
        %v716 = vsel %vm483, %v711, 0.0
        %v717 = vsel %vm483, %v713, 0.0
        %v718 = vld [vmem:[%s6] sm:$0xff]
        %v719 = vld [vmem:[%s6 + $0x8] sm:$0xff]
        %v720 = vld [vmem:[%s6 + $0x10] sm:$0xff]
        %v721 = vld [vmem:[%s6 + $0x18] sm:$0xff]
        %v722 = vld [vmem:[%s5] sm:$0xff]
        %v723 = vld [vmem:[%s5 + $0x8] sm:$0xff]
        %v724 = vld [vmem:[%s5 + $0x10] sm:$0xff]
        %v725 = vld [vmem:[%s5 + $0x18] sm:$0xff]
        %727 = vset.pattern.permute.xlu0 0
        %728 = vperm.xlu0 %727, %v718
        %v729 = vpop.permute.xlu0 %728
        %732 = vset.pattern.permute.xlu0 0
        %733 = vperm.xlu0 %732, %v719
        %v734 = vpop.permute.xlu0 %733
        %737 = vset.pattern.permute.xlu0 0
        %738 = vperm.xlu0 %737, %v720
        %v739 = vpop.permute.xlu0 %738
        %742 = vset.pattern.permute.xlu0 0
        %743 = vperm.xlu0 %742, %v721
        %v744 = vpop.permute.xlu0 %743
        %vm746 = vcmask 785408
        %v748 = vsel %vm746, %v722, 0
        %v751 = vsel %vm746, %v723, 0
        %v754 = vsel %vm746, %v724, 0
        %v757 = vsel %vm746, %v725, 0
        %759 = vmatpush.msra.mxu0 0.0
        %760 = vmatpush.msra.mxu0 0.0
        %761 = vmatpush.msra.mxu0 0.0
        %762 = vmatpush.msra.mxu0 0.0
        %763 = vmatpush.msra.mxu0 %v717
        %764 = vmatpush.msra.mxu0 %v716
        %765 = vmatpush.msra.mxu0 %v715
        %766 = vmatpush.msra.mxu0 %v714
        %767 = vmatpush.msra.mxu0 %v693
        %768 = vmatpush.msra.mxu0 %v692
        %769 = vmatpush.msra.mxu0 %v691
        %770 = vmatpush.msra.mxu0 %v690
        %771 = vmatpush.msra.mxu0 %v705
        %772 = vmatpush.msra.mxu0 %v704
        %773 = vmatpush.msra.mxu0 %v703
        %774 = vmatpush.msra.mxu0 %v702
        %775 = vmatmul.f32.gmra.mxu0 %v748
        %v776 = vpop.f32.mrf.mxu0
        %v777 = vadd.f32 %v729, %v776
        %778 = vmatmul.f32.gmra.mxu0 %v751
        %v779 = vpop.f32.mrf.mxu0
        %v780 = vadd.f32 %v734, %v779
        %781 = vmatmul.f32.gmra.mxu0 %v754
        %v782 = vpop.f32.mrf.mxu0
        %v783 = vadd.f32 %v739, %v782
        %784 = vmatmul.f32.gmra.mxu0 %v757
        %v785 = vpop.f32.mrf.mxu0
        %v786 = vadd.f32 %v744, %v785
        %787 = vdwg.mxu0
        %v788 = vld [vmem:[%s7] sm:$0xff]
        %v789 = vld [vmem:[%s7 + $0x8] sm:$0xff]
        %v790 = vld [vmem:[%s7 + $0x10] sm:$0xff]
        %v791 = vld [vmem:[%s7 + $0x18] sm:$0xff]
        %v792 = vld [vmem:[%s8] sm:$0xff]
        %v793 = vld [vmem:[%s8 + $0x8] sm:$0xff]
        %v794 = vld [vmem:[%s8 + $0x10] sm:$0xff]
        %v795 = vld [vmem:[%s8 + $0x18] sm:$0xff]
        %v796 = vadd.f32 %v777, %v780
        %v797 = vadd.f32 %v796, %v783
        %v798 = vadd.f32 %v797, %v786
        %v799 = vrot.slane %v798, 4
        %v800 = vadd.f32 %v798, %v799
        %v801 = vrot.slane %v800, 2
        %v802 = vadd.f32 %v800, %v801
        %v803 = vrot.slane %v802, 1
        %v804 = vadd.f32 %v802, %v803
        %v805 = vmul.f32 %v777, %v777
        %v806 = vmul.f32 %v780, %v780
        %v807 = vmul.f32 %v783, %v783
        %v808 = vmul.f32 %v786, %v786
        %v809 = vadd.f32 %v805, %v806
        %v810 = vadd.f32 %v809, %v807
        %v811 = vadd.f32 %v810, %v808
        %v812 = vrot.slane %v811, 4
        %v813 = vadd.f32 %v811, %v812
        %v814 = vrot.slane %v813, 2
        %v815 = vadd.f32 %v813, %v814
        %v816 = vrot.slane %v815, 1
        %v817 = vadd.f32 %v815, %v816
        %v818 = vmul.f32 %v804, %v443
        %v819 = vsel %vm587, %v818, 0.0
        %820 = vadd.xlane.f32.xlu0 %v819
        %v821 = vpop.xlane.xlu0 %820
        %v822 = vrot.slane %v821, 4
        %v823 = vadd.f32 %v821, %v822
        %v824 = vrot.slane %v823, 2
        %v825 = vadd.f32 %v823, %v824
        %v826 = vrot.slane %v825, 1
        %v827 = vadd.f32 %v825, %v826
        %s828 = vtos %v827
        %v829 = vmul.f32 %v817, %v443
        %v830 = vsel %vm587, %v829, 0.0
        %831 = vadd.xlane.f32.xlu0 %v830
        %v832 = vpop.xlane.xlu0 %831
        %v833 = vrot.slane %v832, 4
        %v834 = vadd.f32 %v832, %v833
        %v835 = vrot.slane %v834, 2
        %v836 = vadd.f32 %v834, %v835
        %v837 = vrot.slane %v836, 1
        %v838 = vadd.f32 %v836, %v837
        %s839 = vtos %v838
        %s840 = smul.f32 %s828, 0.001953125
        %s841 = smul.f32 %s839, 0.001953125
        %s842 = smul.f32 %s840, %s840
        %s843 = ssub.f32 %s841, %s842
        %s844 = smax.f32 %s843, 0.0
        %s845 = sadd.f32 %s844, 1e-05
        %v846 = vstv %s845
        %v847 = vrsqrt.pop %v846
        %v848 = vmul.f32 %v847, %v846
        %v849 = vmul.f32 %v848, %v847
        %v850 = vmul.f32 0.5, %v849
        %v851 = vsub.f32 1.5, %v850
        %v852 = vmul.f32 %v847, %v851
        %vm853 = vweird.f32 %v846
        %vm854 = vweird.f32 %v847
        %vm855 = vmor %vm853, %vm854
        %v856 = vsel %vm855, %v847, %v852
        %s857 = vtos %v856
        %v858 = vstv %s857
        %v859 = vmul.f32 %v788, %v858
        %v860 = vmul.f32 %v789, %v858
        %v861 = vmul.f32 %v790, %v858
        %v862 = vmul.f32 %v791, %v858
        %s863 = smul.f32 %s840, %s857
        %v864 = vstv %s863
        %v865 = vmul.f32 %v864, %v788
        %v866 = vmul.f32 %v864, %v789
        %v867 = vmul.f32 %v864, %v790
        %v868 = vmul.f32 %v864, %v791
        %v869 = vsub.f32 %v792, %v865
        %v870 = vsub.f32 %v793, %v866
        %v871 = vsub.f32 %v794, %v867
        %v872 = vsub.f32 %v795, %v868
        %874 = vset.pattern.permute.xlu0 0
        %875 = vperm.xlu0 %874, %v859
        %v876 = vpop.permute.xlu0 %875
        %879 = vset.pattern.permute.xlu0 0
        %880 = vperm.xlu0 %879, %v860
        %v881 = vpop.permute.xlu0 %880
        %884 = vset.pattern.permute.xlu0 0
        %885 = vperm.xlu0 %884, %v861
        %v886 = vpop.permute.xlu0 %885
        %889 = vset.pattern.permute.xlu0 0
        %890 = vperm.xlu0 %889, %v862
        %v891 = vpop.permute.xlu0 %890
        %v893 = vmul.f32 %v777, %v876
        %v894 = vmul.f32 %v780, %v881
        %v895 = vmul.f32 %v783, %v886
        %v896 = vmul.f32 %v786, %v891
        %898 = vset.pattern.permute.xlu0 0
        %899 = vperm.xlu0 %898, %v869
        %v900 = vpop.permute.xlu0 %899
        %903 = vset.pattern.permute.xlu0 0
        %904 = vperm.xlu0 %903, %v870
        %v905 = vpop.permute.xlu0 %904
        %908 = vset.pattern.permute.xlu0 0
        %909 = vperm.xlu0 %908, %v871
        %v910 = vpop.permute.xlu0 %909
        %913 = vset.pattern.permute.xlu0 0
        %914 = vperm.xlu0 %913, %v872
        %v915 = vpop.permute.xlu0 %914
        %v917 = vadd.f32 %v893, %v900
        %v918 = vadd.f32 %v894, %v905
        %v919 = vadd.f32 %v895, %v910
        %v920 = vadd.f32 %v896, %v915
        %v921 = vmax.f32 %v917, 0.0
        %v922 = vmax.f32 %v918, 0.0
        %v923 = vmax.f32 %v919, 0.0
        %v924 = vmax.f32 %v920, 0.0
        %925 = vrot.lane.b32.xlu0 %v921, 1
        %v926 = vpop.permute.xlu0 %925
        %927 = vrot.lane.b32.xlu0 %v922, 1
        %v928 = vpop.permute.xlu0 %927
        %929 = vrot.lane.b32.xlu0 %v923, 1
        %v930 = vpop.permute.xlu0 %929
        %931 = vrot.lane.b32.xlu0 %v924, 1
        %v932 = vpop.permute.xlu0 %931
        %v933 = vsel %vm475, %v926, 0.0
        %v934 = vsel %vm475, %v928, 0.0
        %v935 = vsel %vm475, %v930, 0.0
        %v936 = vsel %vm475, %v932, 0.0
        %937 = vrot.lane.b32.xlu0 %v921, 127
        %v938 = vpop.permute.xlu0 %937
        %939 = vrot.lane.b32.xlu0 %v922, 127
        %v940 = vpop.permute.xlu0 %939
        %941 = vrot.lane.b32.xlu0 %v923, 127
        %v942 = vpop.permute.xlu0 %941
        %943 = vrot.lane.b32.xlu0 %v924, 127
        %v944 = vpop.permute.xlu0 %943
        %v945 = vsel %vm483, %v938, 0.0
        %v946 = vsel %vm483, %v940, 0.0
        %v947 = vsel %vm483, %v942, 0.0
        %v948 = vsel %vm483, %v944, 0.0
        %v949 = vld [vmem:[%s10] sm:$0xff]
        %v950 = vld [vmem:[%s10 + $0x8] sm:$0xff]
        %v951 = vld [vmem:[%s10 + $0x10] sm:$0xff]
        %v952 = vld [vmem:[%s10 + $0x18] sm:$0xff]
        %v953 = vld [vmem:[%s9] sm:$0xff]
        %v954 = vld [vmem:[%s9 + $0x8] sm:$0xff]
        %v955 = vld [vmem:[%s9 + $0x10] sm:$0xff]
        %v956 = vld [vmem:[%s9 + $0x18] sm:$0xff]
        %958 = vset.pattern.permute.xlu0 0
        %959 = vperm.xlu0 %958, %v949
        %v960 = vpop.permute.xlu0 %959
        %963 = vset.pattern.permute.xlu0 0
        %964 = vperm.xlu0 %963, %v950
        %v965 = vpop.permute.xlu0 %964
        %968 = vset.pattern.permute.xlu0 0
        %969 = vperm.xlu0 %968, %v951
        %v970 = vpop.permute.xlu0 %969
        %973 = vset.pattern.permute.xlu0 0
        %974 = vperm.xlu0 %973, %v952
        %v975 = vpop.permute.xlu0 %974
        %v978 = vsel %vm746, %v953, 0
        %v981 = vsel %vm746, %v954, 0
        %v984 = vsel %vm746, %v955, 0
        %v987 = vsel %vm746, %v956, 0
        %989 = vmatpush.msra.mxu0 0.0
        %990 = vmatpush.msra.mxu0 0.0
        %991 = vmatpush.msra.mxu0 0.0
        %992 = vmatpush.msra.mxu0 0.0
        %993 = vmatpush.msra.mxu0 %v948
        %994 = vmatpush.msra.mxu0 %v947
        %995 = vmatpush.msra.mxu0 %v946
        %996 = vmatpush.msra.mxu0 %v945
        %997 = vmatpush.msra.mxu0 %v924
        %998 = vmatpush.msra.mxu0 %v923
        %999 = vmatpush.msra.mxu0 %v922
        %1000 = vmatpush.msra.mxu0 %v921
        %1001 = vmatpush.msra.mxu0 %v936
        %1002 = vmatpush.msra.mxu0 %v935
        %1003 = vmatpush.msra.mxu0 %v934
        %1004 = vmatpush.msra.mxu0 %v933
        %1005 = vmatmul.f32.gmra.mxu0 %v978
        %v1006 = vpop.f32.mrf.mxu0
        %v1007 = vadd.f32 %v960, %v1006
        %1008 = vmatmul.f32.gmra.mxu0 %v981
        %v1009 = vpop.f32.mrf.mxu0
        %v1010 = vadd.f32 %v965, %v1009
        %1011 = vmatmul.f32.gmra.mxu0 %v984
        %v1012 = vpop.f32.mrf.mxu0
        %v1013 = vadd.f32 %v970, %v1012
        %1014 = vmatmul.f32.gmra.mxu0 %v987
        %v1015 = vpop.f32.mrf.mxu0
        %v1016 = vadd.f32 %v975, %v1015
        %1017 = vdwg.mxu0
        %v1018 = vld [vmem:[%s11] sm:$0xff]
        %v1019 = vld [vmem:[%s11 + $0x8] sm:$0xff]
        %v1020 = vld [vmem:[%s11 + $0x10] sm:$0xff]
        %v1021 = vld [vmem:[%s11 + $0x18] sm:$0xff]
        %v1022 = vld [vmem:[%s12] sm:$0xff]
        %v1023 = vld [vmem:[%s12 + $0x8] sm:$0xff]
        %v1024 = vld [vmem:[%s12 + $0x10] sm:$0xff]
        %v1025 = vld [vmem:[%s12 + $0x18] sm:$0xff]
        %v1026 = vadd.f32 %v1007, %v1010
        %v1027 = vadd.f32 %v1026, %v1013
        %v1028 = vadd.f32 %v1027, %v1016
        %v1029 = vrot.slane %v1028, 4
        %v1030 = vadd.f32 %v1028, %v1029
        %v1031 = vrot.slane %v1030, 2
        %v1032 = vadd.f32 %v1030, %v1031
        %v1033 = vrot.slane %v1032, 1
        %v1034 = vadd.f32 %v1032, %v1033
        %v1035 = vmul.f32 %v1007, %v1007
        %v1036 = vmul.f32 %v1010, %v1010
        %v1037 = vmul.f32 %v1013, %v1013
        %v1038 = vmul.f32 %v1016, %v1016
        %v1039 = vadd.f32 %v1035, %v1036
        %v1040 = vadd.f32 %v1039, %v1037
        %v1041 = vadd.f32 %v1040, %v1038
        %v1042 = vrot.slane %v1041, 4
        %v1043 = vadd.f32 %v1041, %v1042
        %v1044 = vrot.slane %v1043, 2
        %v1045 = vadd.f32 %v1043, %v1044
        %v1046 = vrot.slane %v1045, 1
        %v1047 = vadd.f32 %v1045, %v1046
        %v1048 = vmul.f32 %v1034, %v443
        %v1049 = vsel %vm587, %v1048, 0.0
        %1050 = vadd.xlane.f32.xlu0 %v1049
        %v1051 = vpop.xlane.xlu0 %1050
        %v1052 = vrot.slane %v1051, 4
        %v1053 = vadd.f32 %v1051, %v1052
        %v1054 = vrot.slane %v1053, 2
        %v1055 = vadd.f32 %v1053, %v1054
        %v1056 = vrot.slane %v1055, 1
        %v1057 = vadd.f32 %v1055, %v1056
        %s1058 = vtos %v1057
        %v1059 = vmul.f32 %v1047, %v443
        %v1060 = vsel %vm587, %v1059, 0.0
        %1061 = vadd.xlane.f32.xlu0 %v1060
        %v1062 = vpop.xlane.xlu0 %1061
        %v1063 = vrot.slane %v1062, 4
        %v1064 = vadd.f32 %v1062, %v1063
        %v1065 = vrot.slane %v1064, 2
        %v1066 = vadd.f32 %v1064, %v1065
        %v1067 = vrot.slane %v1066, 1
        %v1068 = vadd.f32 %v1066, %v1067
        %s1069 = vtos %v1068
        %s1070 = smul.f32 %s1058, 0.001953125
        %s1071 = smul.f32 %s1069, 0.001953125
        %s1072 = smul.f32 %s1070, %s1070
        %s1073 = ssub.f32 %s1071, %s1072
        %s1074 = smax.f32 %s1073, 0.0
        %s1075 = sadd.f32 %s1074, 1e-05
        %v1076 = vstv %s1075
        %v1077 = vrsqrt.pop %v1076
        %v1078 = vmul.f32 %v1077, %v1076
        %v1079 = vmul.f32 %v1078, %v1077
        %v1080 = vmul.f32 0.5, %v1079
        %v1081 = vsub.f32 1.5, %v1080
        %v1082 = vmul.f32 %v1077, %v1081
        %vm1083 = vweird.f32 %v1076
        %vm1084 = vweird.f32 %v1077
        %vm1085 = vmor %vm1083, %vm1084
        %v1086 = vsel %vm1085, %v1077, %v1082
        %s1087 = vtos %v1086
        %v1088 = vstv %s1087
        %v1089 = vmul.f32 %v1018, %v1088
        %v1090 = vmul.f32 %v1019, %v1088
        %v1091 = vmul.f32 %v1020, %v1088
        %v1092 = vmul.f32 %v1021, %v1088
        %s1093 = smul.f32 %s1070, %s1087
        %v1094 = vstv %s1093
        %v1095 = vmul.f32 %v1094, %v1018
        %v1096 = vmul.f32 %v1094, %v1019
        %v1097 = vmul.f32 %v1094, %v1020
        %v1098 = vmul.f32 %v1094, %v1021
        %v1099 = vsub.f32 %v1022, %v1095
        %v1100 = vsub.f32 %v1023, %v1096
        %v1101 = vsub.f32 %v1024, %v1097
        %v1102 = vsub.f32 %v1025, %v1098
        %1104 = vset.pattern.permute.xlu0 0
        %1105 = vperm.xlu0 %1104, %v1089
        %v1106 = vpop.permute.xlu0 %1105
        %1109 = vset.pattern.permute.xlu0 0
        %1110 = vperm.xlu0 %1109, %v1090
        %v1111 = vpop.permute.xlu0 %1110
        %1114 = vset.pattern.permute.xlu0 0
        %1115 = vperm.xlu0 %1114, %v1091
        %v1116 = vpop.permute.xlu0 %1115
        %1119 = vset.pattern.permute.xlu0 0
        %1120 = vperm.xlu0 %1119, %v1092
        %v1121 = vpop.permute.xlu0 %1120
        %v1123 = vmul.f32 %v1007, %v1106
        %v1124 = vmul.f32 %v1010, %v1111
        %v1125 = vmul.f32 %v1013, %v1116
        %v1126 = vmul.f32 %v1016, %v1121
        %1128 = vset.pattern.permute.xlu0 0
        %1129 = vperm.xlu0 %1128, %v1099
        %v1130 = vpop.permute.xlu0 %1129
        %1133 = vset.pattern.permute.xlu0 0
        %1134 = vperm.xlu0 %1133, %v1100
        %v1135 = vpop.permute.xlu0 %1134
        %1138 = vset.pattern.permute.xlu0 0
        %1139 = vperm.xlu0 %1138, %v1101
        %v1140 = vpop.permute.xlu0 %1139
        %1143 = vset.pattern.permute.xlu0 0
        %1144 = vperm.xlu0 %1143, %v1102
        %v1145 = vpop.permute.xlu0 %1144
        %v1147 = vadd.f32 %v1123, %v1130
        %v1148 = vadd.f32 %v1124, %v1135
        %v1149 = vadd.f32 %v1125, %v1140
        %v1150 = vadd.f32 %v1126, %v1145
        %v1151 = vadd.f32 %v1147, %v690
        %v1152 = vadd.f32 %v1148, %v691
        %v1153 = vadd.f32 %v1149, %v692
        %v1154 = vadd.f32 %v1150, %v693
        %v1155 = vmax.f32 %v1151, 0.0
        %v1156 = vmax.f32 %v1152, 0.0
        %v1157 = vmax.f32 %v1153, 0.0
        %v1158 = vmax.f32 %v1154, 0.0
        %1159 = vrot.lane.b32.xlu0 %v1155, 3
        %v1160 = vpop.permute.xlu0 %1159
        %1161 = vrot.lane.b32.xlu0 %v1156, 3
        %v1162 = vpop.permute.xlu0 %1161
        %1163 = vrot.lane.b32.xlu0 %v1157, 3
        %v1164 = vpop.permute.xlu0 %1163
        %1165 = vrot.lane.b32.xlu0 %v1158, 3
        %v1166 = vpop.permute.xlu0 %1165
        %v1167 = vsel %vm463, 1, 0
        %vm1168 = vcmp.eq.s32.totalorder %v1167, 1
        %v1169 = vsel %vm1168, %v1160, 0.0
        %v1170 = vsel %vm1168, %v1162, 0.0
        %v1171 = vsel %vm1168, %v1164, 0.0
        %v1172 = vsel %vm1168, %v1166, 0.0
        %1173 = vrot.lane.b32.xlu0 %v1155, 125
        %v1174 = vpop.permute.xlu0 %1173
        %1175 = vrot.lane.b32.xlu0 %v1156, 125
        %v1176 = vpop.permute.xlu0 %1175
        %1177 = vrot.lane.b32.xlu0 %v1157, 125
        %v1178 = vpop.permute.xlu0 %1177
        %1179 = vrot.lane.b32.xlu0 %v1158, 125
        %v1180 = vpop.permute.xlu0 %1179
        %v1181 = vsel %vm451, 1, 0
        %vm1182 = vcmp.eq.s32.totalorder %v1181, 1
        %v1183 = vsel %vm1182, %v1174, 0.0
        %v1184 = vsel %vm1182, %v1176, 0.0
        %v1185 = vsel %vm1182, %v1178, 0.0
        %v1186 = vsel %vm1182, %v1180, 0.0
        %s1187 = scalar_lea.vmem %s6, 32
        %v1188 = vld [vmem:[%s1187] sm:$0xff]
        %v1189 = vld [vmem:[%s1187 + $0x8] sm:$0xff]
        %v1190 = vld [vmem:[%s1187 + $0x10] sm:$0xff]
        %v1191 = vld [vmem:[%s1187 + $0x18] sm:$0xff]
        %s1192 = scalar_lea.vmem %s5, 32
        %v1193 = vld [vmem:[%s1192] sm:$0xff]
        %v1194 = vld [vmem:[%s1192 + $0x8] sm:$0xff]
        %v1195 = vld [vmem:[%s1192 + $0x10] sm:$0xff]
        %v1196 = vld [vmem:[%s1192 + $0x18] sm:$0xff]
        %1198 = vset.pattern.permute.xlu0 0
        %1199 = vperm.xlu0 %1198, %v1188
        %v1200 = vpop.permute.xlu0 %1199
        %1203 = vset.pattern.permute.xlu0 0
        %1204 = vperm.xlu0 %1203, %v1189
        %v1205 = vpop.permute.xlu0 %1204
        %1208 = vset.pattern.permute.xlu0 0
        %1209 = vperm.xlu0 %1208, %v1190
        %v1210 = vpop.permute.xlu0 %1209
        %1213 = vset.pattern.permute.xlu0 0
        %1214 = vperm.xlu0 %1213, %v1191
        %v1215 = vpop.permute.xlu0 %1214
        %v1218 = vsel %vm746, %v1193, 0
        %v1221 = vsel %vm746, %v1194, 0
        %v1224 = vsel %vm746, %v1195, 0
        %v1227 = vsel %vm746, %v1196, 0
        %1229 = vmatpush.msra.mxu0 0.0
        %1230 = vmatpush.msra.mxu0 0.0
        %1231 = vmatpush.msra.mxu0 0.0
        %1232 = vmatpush.msra.mxu0 0.0
        %1233 = vmatpush.msra.mxu0 %v1186
        %1234 = vmatpush.msra.mxu0 %v1185
        %1235 = vmatpush.msra.mxu0 %v1184
        %1236 = vmatpush.msra.mxu0 %v1183
        %1237 = vmatpush.msra.mxu0 %v1158
        %1238 = vmatpush.msra.mxu0 %v1157
        %1239 = vmatpush.msra.mxu0 %v1156
        %1240 = vmatpush.msra.mxu0 %v1155
        %1241 = vmatpush.msra.mxu0 %v1172
        %1242 = vmatpush.msra.mxu0 %v1171
        %1243 = vmatpush.msra.mxu0 %v1170
        %1244 = vmatpush.msra.mxu0 %v1169
        %1245 = vmatmul.f32.gmra.mxu0 %v1218
        %v1246 = vpop.f32.mrf.mxu0
        %v1247 = vadd.f32 %v1200, %v1246
        %1248 = vmatmul.f32.gmra.mxu0 %v1221
        %v1249 = vpop.f32.mrf.mxu0
        %v1250 = vadd.f32 %v1205, %v1249
        %1251 = vmatmul.f32.gmra.mxu0 %v1224
        %v1252 = vpop.f32.mrf.mxu0
        %v1253 = vadd.f32 %v1210, %v1252
        %1254 = vmatmul.f32.gmra.mxu0 %v1227
        %v1255 = vpop.f32.mrf.mxu0
        %v1256 = vadd.f32 %v1215, %v1255
        %1257 = vdwg.mxu0
        %s1258 = scalar_lea.vmem %s7, 32
        %v1259 = vld [vmem:[%s1258] sm:$0xff]
        %v1260 = vld [vmem:[%s1258 + $0x8] sm:$0xff]
        %v1261 = vld [vmem:[%s1258 + $0x10] sm:$0xff]
        %v1262 = vld [vmem:[%s1258 + $0x18] sm:$0xff]
        %s1263 = scalar_lea.vmem %s8, 32
        %v1264 = vld [vmem:[%s1263] sm:$0xff]
        %v1265 = vld [vmem:[%s1263 + $0x8] sm:$0xff]
        %v1266 = vld [vmem:[%s1263 + $0x10] sm:$0xff]
        %v1267 = vld [vmem:[%s1263 + $0x18] sm:$0xff]
        %v1268 = vadd.f32 %v1247, %v1250
        %v1269 = vadd.f32 %v1268, %v1253
        %v1270 = vadd.f32 %v1269, %v1256
        %v1271 = vrot.slane %v1270, 4
        %v1272 = vadd.f32 %v1270, %v1271
        %v1273 = vrot.slane %v1272, 2
        %v1274 = vadd.f32 %v1272, %v1273
        %v1275 = vrot.slane %v1274, 1
        %v1276 = vadd.f32 %v1274, %v1275
        %v1277 = vmul.f32 %v1247, %v1247
        %v1278 = vmul.f32 %v1250, %v1250
        %v1279 = vmul.f32 %v1253, %v1253
        %v1280 = vmul.f32 %v1256, %v1256
        %v1281 = vadd.f32 %v1277, %v1278
        %v1282 = vadd.f32 %v1281, %v1279
        %v1283 = vadd.f32 %v1282, %v1280
        %v1284 = vrot.slane %v1283, 4
        %v1285 = vadd.f32 %v1283, %v1284
        %v1286 = vrot.slane %v1285, 2
        %v1287 = vadd.f32 %v1285, %v1286
        %v1288 = vrot.slane %v1287, 1
        %v1289 = vadd.f32 %v1287, %v1288
        %v1290 = vmul.f32 %v1276, %v443
        %v1291 = vsel %vm587, %v1290, 0.0
        %1292 = vadd.xlane.f32.xlu0 %v1291
        %v1293 = vpop.xlane.xlu0 %1292
        %v1294 = vrot.slane %v1293, 4
        %v1295 = vadd.f32 %v1293, %v1294
        %v1296 = vrot.slane %v1295, 2
        %v1297 = vadd.f32 %v1295, %v1296
        %v1298 = vrot.slane %v1297, 1
        %v1299 = vadd.f32 %v1297, %v1298
        %s1300 = vtos %v1299
        %v1301 = vmul.f32 %v1289, %v443
        %v1302 = vsel %vm587, %v1301, 0.0
        %1303 = vadd.xlane.f32.xlu0 %v1302
        %v1304 = vpop.xlane.xlu0 %1303
        %v1305 = vrot.slane %v1304, 4
        %v1306 = vadd.f32 %v1304, %v1305
        %v1307 = vrot.slane %v1306, 2
        %v1308 = vadd.f32 %v1306, %v1307
        %v1309 = vrot.slane %v1308, 1
        %v1310 = vadd.f32 %v1308, %v1309
        %s1311 = vtos %v1310
        %s1312 = smul.f32 %s1300, 0.001953125
        %s1313 = smul.f32 %s1311, 0.001953125
        %s1314 = smul.f32 %s1312, %s1312
        %s1315 = ssub.f32 %s1313, %s1314
        %s1316 = smax.f32 %s1315, 0.0
        %s1317 = sadd.f32 %s1316, 1e-05
        %v1318 = vstv %s1317
        %v1319 = vrsqrt.pop %v1318
        %v1320 = vmul.f32 %v1319, %v1318
        %v1321 = vmul.f32 %v1320, %v1319
        %v1322 = vmul.f32 0.5, %v1321
        %v1323 = vsub.f32 1.5, %v1322
        %v1324 = vmul.f32 %v1319, %v1323
        %vm1325 = vweird.f32 %v1318
        %vm1326 = vweird.f32 %v1319
        %vm1327 = vmor %vm1325, %vm1326
        %v1328 = vsel %vm1327, %v1319, %v1324
        %s1329 = vtos %v1328
        %v1330 = vstv %s1329
        %v1331 = vmul.f32 %v1259, %v1330
        %v1332 = vmul.f32 %v1260, %v1330
        %v1333 = vmul.f32 %v1261, %v1330
        %v1334 = vmul.f32 %v1262, %v1330
        %s1335 = smul.f32 %s1312, %s1329
        %v1336 = vstv %s1335
        %v1337 = vmul.f32 %v1336, %v1259
        %v1338 = vmul.f32 %v1336, %v1260
        %v1339 = vmul.f32 %v1336, %v1261
        %v1340 = vmul.f32 %v1336, %v1262
        %v1341 = vsub.f32 %v1264, %v1337
        %v1342 = vsub.f32 %v1265, %v1338
        %v1343 = vsub.f32 %v1266, %v1339
        %v1344 = vsub.f32 %v1267, %v1340
        %1346 = vset.pattern.permute.xlu0 0
        %1347 = vperm.xlu0 %1346, %v1331
        %v1348 = vpop.permute.xlu0 %1347
        %1351 = vset.pattern.permute.xlu0 0
        %1352 = vperm.xlu0 %1351, %v1332
        %v1353 = vpop.permute.xlu0 %1352
        %1356 = vset.pattern.permute.xlu0 0
        %1357 = vperm.xlu0 %1356, %v1333
        %v1358 = vpop.permute.xlu0 %1357
        %1361 = vset.pattern.permute.xlu0 0
        %1362 = vperm.xlu0 %1361, %v1334
        %v1363 = vpop.permute.xlu0 %1362
        %v1365 = vmul.f32 %v1247, %v1348
        %v1366 = vmul.f32 %v1250, %v1353
        %v1367 = vmul.f32 %v1253, %v1358
        %v1368 = vmul.f32 %v1256, %v1363
        %1370 = vset.pattern.permute.xlu0 0
        %1371 = vperm.xlu0 %1370, %v1341
        %v1372 = vpop.permute.xlu0 %1371
        %1375 = vset.pattern.permute.xlu0 0
        %1376 = vperm.xlu0 %1375, %v1342
        %v1377 = vpop.permute.xlu0 %1376
        %1380 = vset.pattern.permute.xlu0 0
        %1381 = vperm.xlu0 %1380, %v1343
        %v1382 = vpop.permute.xlu0 %1381
        %1385 = vset.pattern.permute.xlu0 0
        %1386 = vperm.xlu0 %1385, %v1344
        %v1387 = vpop.permute.xlu0 %1386
        %v1389 = vadd.f32 %v1365, %v1372
        %v1390 = vadd.f32 %v1366, %v1377
        %v1391 = vadd.f32 %v1367, %v1382
        %v1392 = vadd.f32 %v1368, %v1387
        %v1393 = vmax.f32 %v1389, 0.0
        %v1394 = vmax.f32 %v1390, 0.0
        %v1395 = vmax.f32 %v1391, 0.0
        %v1396 = vmax.f32 %v1392, 0.0
        %1397 = vrot.lane.b32.xlu0 %v1393, 1
        %v1398 = vpop.permute.xlu0 %1397
        %1399 = vrot.lane.b32.xlu0 %v1394, 1
        %v1400 = vpop.permute.xlu0 %1399
        %1401 = vrot.lane.b32.xlu0 %v1395, 1
        %v1402 = vpop.permute.xlu0 %1401
        %1403 = vrot.lane.b32.xlu0 %v1396, 1
        %v1404 = vpop.permute.xlu0 %1403
        %v1405 = vsel %vm475, %v1398, 0.0
        %v1406 = vsel %vm475, %v1400, 0.0
        %v1407 = vsel %vm475, %v1402, 0.0
        %v1408 = vsel %vm475, %v1404, 0.0
        %1409 = vrot.lane.b32.xlu0 %v1393, 127
        %v1410 = vpop.permute.xlu0 %1409
        %1411 = vrot.lane.b32.xlu0 %v1394, 127
        %v1412 = vpop.permute.xlu0 %1411
        %1413 = vrot.lane.b32.xlu0 %v1395, 127
        %v1414 = vpop.permute.xlu0 %1413
        %1415 = vrot.lane.b32.xlu0 %v1396, 127
        %v1416 = vpop.permute.xlu0 %1415
        %v1417 = vsel %vm483, %v1410, 0.0
        %v1418 = vsel %vm483, %v1412, 0.0
        %v1419 = vsel %vm483, %v1414, 0.0
        %v1420 = vsel %vm483, %v1416, 0.0
        %s1421 = scalar_lea.vmem %s10, 32
        %v1422 = vld [vmem:[%s1421] sm:$0xff]
        %v1423 = vld [vmem:[%s1421 + $0x8] sm:$0xff]
        %v1424 = vld [vmem:[%s1421 + $0x10] sm:$0xff]
        %v1425 = vld [vmem:[%s1421 + $0x18] sm:$0xff]
        %s1426 = scalar_lea.vmem %s9, 32
        %v1427 = vld [vmem:[%s1426] sm:$0xff]
        %v1428 = vld [vmem:[%s1426 + $0x8] sm:$0xff]
        %v1429 = vld [vmem:[%s1426 + $0x10] sm:$0xff]
        %v1430 = vld [vmem:[%s1426 + $0x18] sm:$0xff]
        %1432 = vset.pattern.permute.xlu0 0
        %1433 = vperm.xlu0 %1432, %v1422
        %v1434 = vpop.permute.xlu0 %1433
        %1437 = vset.pattern.permute.xlu0 0
        %1438 = vperm.xlu0 %1437, %v1423
        %v1439 = vpop.permute.xlu0 %1438
        %1442 = vset.pattern.permute.xlu0 0
        %1443 = vperm.xlu0 %1442, %v1424
        %v1444 = vpop.permute.xlu0 %1443
        %1447 = vset.pattern.permute.xlu0 0
        %1448 = vperm.xlu0 %1447, %v1425
        %v1449 = vpop.permute.xlu0 %1448
        %v1452 = vsel %vm746, %v1427, 0
        %v1455 = vsel %vm746, %v1428, 0
        %v1458 = vsel %vm746, %v1429, 0
        %v1461 = vsel %vm746, %v1430, 0
        %1463 = vmatpush.msra.mxu0 0.0
        %1464 = vmatpush.msra.mxu0 0.0
        %1465 = vmatpush.msra.mxu0 0.0
        %1466 = vmatpush.msra.mxu0 0.0
        %1467 = vmatpush.msra.mxu0 %v1420
        %1468 = vmatpush.msra.mxu0 %v1419
        %1469 = vmatpush.msra.mxu0 %v1418
        %1470 = vmatpush.msra.mxu0 %v1417
        %1471 = vmatpush.msra.mxu0 %v1396
        %1472 = vmatpush.msra.mxu0 %v1395
        %1473 = vmatpush.msra.mxu0 %v1394
        %1474 = vmatpush.msra.mxu0 %v1393
        %1475 = vmatpush.msra.mxu0 %v1408
        %1476 = vmatpush.msra.mxu0 %v1407
        %1477 = vmatpush.msra.mxu0 %v1406
        %1478 = vmatpush.msra.mxu0 %v1405
        %1479 = vmatmul.f32.gmra.mxu0 %v1452
        %v1480 = vpop.f32.mrf.mxu0
        %v1481 = vadd.f32 %v1434, %v1480
        %1482 = vmatmul.f32.gmra.mxu0 %v1455
        %v1483 = vpop.f32.mrf.mxu0
        %v1484 = vadd.f32 %v1439, %v1483
        %1485 = vmatmul.f32.gmra.mxu0 %v1458
        %v1486 = vpop.f32.mrf.mxu0
        %v1487 = vadd.f32 %v1444, %v1486
        %1488 = vmatmul.f32.gmra.mxu0 %v1461
        %v1489 = vpop.f32.mrf.mxu0
        %v1490 = vadd.f32 %v1449, %v1489
        %1491 = vdwg.mxu0
        %s1492 = scalar_lea.vmem %s11, 32
        %v1493 = vld [vmem:[%s1492] sm:$0xff]
        %v1494 = vld [vmem:[%s1492 + $0x8] sm:$0xff]
        %v1495 = vld [vmem:[%s1492 + $0x10] sm:$0xff]
        %v1496 = vld [vmem:[%s1492 + $0x18] sm:$0xff]
        %s1497 = scalar_lea.vmem %s12, 32
        %v1498 = vld [vmem:[%s1497] sm:$0xff]
        %v1499 = vld [vmem:[%s1497 + $0x8] sm:$0xff]
        %v1500 = vld [vmem:[%s1497 + $0x10] sm:$0xff]
        %v1501 = vld [vmem:[%s1497 + $0x18] sm:$0xff]
        %v1502 = vadd.f32 %v1481, %v1484
        %v1503 = vadd.f32 %v1502, %v1487
        %v1504 = vadd.f32 %v1503, %v1490
        %v1505 = vrot.slane %v1504, 4
        %v1506 = vadd.f32 %v1504, %v1505
        %v1507 = vrot.slane %v1506, 2
        %v1508 = vadd.f32 %v1506, %v1507
        %v1509 = vrot.slane %v1508, 1
        %v1510 = vadd.f32 %v1508, %v1509
        %v1511 = vmul.f32 %v1481, %v1481
        %v1512 = vmul.f32 %v1484, %v1484
        %v1513 = vmul.f32 %v1487, %v1487
        %v1514 = vmul.f32 %v1490, %v1490
        %v1515 = vadd.f32 %v1511, %v1512
        %v1516 = vadd.f32 %v1515, %v1513
        %v1517 = vadd.f32 %v1516, %v1514
        %v1518 = vrot.slane %v1517, 4
        %v1519 = vadd.f32 %v1517, %v1518
        %v1520 = vrot.slane %v1519, 2
        %v1521 = vadd.f32 %v1519, %v1520
        %v1522 = vrot.slane %v1521, 1
        %v1523 = vadd.f32 %v1521, %v1522
        %v1524 = vmul.f32 %v1510, %v443
        %v1525 = vsel %vm587, %v1524, 0.0
        %1526 = vadd.xlane.f32.xlu0 %v1525
        %v1527 = vpop.xlane.xlu0 %1526
        %v1528 = vrot.slane %v1527, 4
        %v1529 = vadd.f32 %v1527, %v1528
        %v1530 = vrot.slane %v1529, 2
        %v1531 = vadd.f32 %v1529, %v1530
        %v1532 = vrot.slane %v1531, 1
        %v1533 = vadd.f32 %v1531, %v1532
        %s1534 = vtos %v1533
        %v1535 = vmul.f32 %v1523, %v443
        %v1536 = vsel %vm587, %v1535, 0.0
        %1537 = vadd.xlane.f32.xlu0 %v1536
        %v1538 = vpop.xlane.xlu0 %1537
        %v1539 = vrot.slane %v1538, 4
        %v1540 = vadd.f32 %v1538, %v1539
        %v1541 = vrot.slane %v1540, 2
        %v1542 = vadd.f32 %v1540, %v1541
        %v1543 = vrot.slane %v1542, 1
        %v1544 = vadd.f32 %v1542, %v1543
        %s1545 = vtos %v1544
        %s1546 = smul.f32 %s1534, 0.001953125
        %s1547 = smul.f32 %s1545, 0.001953125
        %s1548 = smul.f32 %s1546, %s1546
        %s1549 = ssub.f32 %s1547, %s1548
        %s1550 = smax.f32 %s1549, 0.0
        %s1551 = sadd.f32 %s1550, 1e-05
        %v1552 = vstv %s1551
        %v1553 = vrsqrt.pop %v1552
        %v1554 = vmul.f32 %v1553, %v1552
        %v1555 = vmul.f32 %v1554, %v1553
        %v1556 = vmul.f32 0.5, %v1555
        %v1557 = vsub.f32 1.5, %v1556
        %v1558 = vmul.f32 %v1553, %v1557
        %vm1559 = vweird.f32 %v1552
        %vm1560 = vweird.f32 %v1553
        %vm1561 = vmor %vm1559, %vm1560
        %v1562 = vsel %vm1561, %v1553, %v1558
        %s1563 = vtos %v1562
        %v1564 = vstv %s1563
        %v1565 = vmul.f32 %v1493, %v1564
        %v1566 = vmul.f32 %v1494, %v1564
        %v1567 = vmul.f32 %v1495, %v1564
        %v1568 = vmul.f32 %v1496, %v1564
        %s1569 = smul.f32 %s1546, %s1563
        %v1570 = vstv %s1569
        %v1571 = vmul.f32 %v1570, %v1493
        %v1572 = vmul.f32 %v1570, %v1494
        %v1573 = vmul.f32 %v1570, %v1495
        %v1574 = vmul.f32 %v1570, %v1496
        %v1575 = vsub.f32 %v1498, %v1571
        %v1576 = vsub.f32 %v1499, %v1572
        %v1577 = vsub.f32 %v1500, %v1573
        %v1578 = vsub.f32 %v1501, %v1574
        %1580 = vset.pattern.permute.xlu0 0
        %1581 = vperm.xlu0 %1580, %v1565
        %v1582 = vpop.permute.xlu0 %1581
        %1585 = vset.pattern.permute.xlu0 0
        %1586 = vperm.xlu0 %1585, %v1566
        %v1587 = vpop.permute.xlu0 %1586
        %1590 = vset.pattern.permute.xlu0 0
        %1591 = vperm.xlu0 %1590, %v1567
        %v1592 = vpop.permute.xlu0 %1591
        %1595 = vset.pattern.permute.xlu0 0
        %1596 = vperm.xlu0 %1595, %v1568
        %v1597 = vpop.permute.xlu0 %1596
        %v1599 = vmul.f32 %v1481, %v1582
        %v1600 = vmul.f32 %v1484, %v1587
        %v1601 = vmul.f32 %v1487, %v1592
        %v1602 = vmul.f32 %v1490, %v1597
        %1604 = vset.pattern.permute.xlu0 0
        %1605 = vperm.xlu0 %1604, %v1575
        %v1606 = vpop.permute.xlu0 %1605
        %1609 = vset.pattern.permute.xlu0 0
        %1610 = vperm.xlu0 %1609, %v1576
        %v1611 = vpop.permute.xlu0 %1610
        %1614 = vset.pattern.permute.xlu0 0
        %1615 = vperm.xlu0 %1614, %v1577
        %v1616 = vpop.permute.xlu0 %1615
        %1619 = vset.pattern.permute.xlu0 0
        %1620 = vperm.xlu0 %1619, %v1578
        %v1621 = vpop.permute.xlu0 %1620
        %v1623 = vadd.f32 %v1599, %v1606
        %v1624 = vadd.f32 %v1600, %v1611
        %v1625 = vadd.f32 %v1601, %v1616
        %v1626 = vadd.f32 %v1602, %v1621
        %v1627 = vadd.f32 %v1623, %v1155
        %v1628 = vadd.f32 %v1624, %v1156
        %v1629 = vadd.f32 %v1625, %v1157
        %v1630 = vadd.f32 %v1626, %v1158
        %v1631 = vmax.f32 %v1627, 0.0
        %v1632 = vmax.f32 %v1628, 0.0
        %v1633 = vmax.f32 %v1629, 0.0
        %v1634 = vmax.f32 %v1630, 0.0
        %1635 = vrot.lane.b32.xlu0 %v1631, 9
        %v1636 = vpop.permute.xlu0 %1635
        %1637 = vrot.lane.b32.xlu0 %v1632, 9
        %v1638 = vpop.permute.xlu0 %1637
        %1639 = vrot.lane.b32.xlu0 %v1633, 9
        %v1640 = vpop.permute.xlu0 %1639
        %1641 = vrot.lane.b32.xlu0 %v1634, 9
        %v1642 = vpop.permute.xlu0 %1641
        %v1643 = vsel %vm459, 1, 0
        %vm1644 = vcmp.eq.s32.totalorder %v1643, 1
        %v1645 = vsel %vm1644, %v1636, 0.0
        %v1646 = vsel %vm1644, %v1638, 0.0
        %v1647 = vsel %vm1644, %v1640, 0.0
        %v1648 = vsel %vm1644, %v1642, 0.0
        %1649 = vrot.lane.b32.xlu0 %v1631, 119
        %v1650 = vpop.permute.xlu0 %1649
        %1651 = vrot.lane.b32.xlu0 %v1632, 119
        %v1652 = vpop.permute.xlu0 %1651
        %1653 = vrot.lane.b32.xlu0 %v1633, 119
        %v1654 = vpop.permute.xlu0 %1653
        %1655 = vrot.lane.b32.xlu0 %v1634, 119
        %v1656 = vpop.permute.xlu0 %1655
        %v1657 = vsel %vm455, 1, 0
        %vm1658 = vcmp.eq.s32.totalorder %v1657, 1
        %v1659 = vsel %vm1658, %v1650, 0.0
        %v1660 = vsel %vm1658, %v1652, 0.0
        %v1661 = vsel %vm1658, %v1654, 0.0
        %v1662 = vsel %vm1658, %v1656, 0.0
        %s1663 = scalar_lea.vmem %s6, 64
        %v1664 = vld [vmem:[%s1663] sm:$0xff]
        %v1665 = vld [vmem:[%s1663 + $0x8] sm:$0xff]
        %v1666 = vld [vmem:[%s1663 + $0x10] sm:$0xff]
        %v1667 = vld [vmem:[%s1663 + $0x18] sm:$0xff]
        %s1668 = scalar_lea.vmem %s5, 64
        %v1669 = vld [vmem:[%s1668] sm:$0xff]
        %v1670 = vld [vmem:[%s1668 + $0x8] sm:$0xff]
        %v1671 = vld [vmem:[%s1668 + $0x10] sm:$0xff]
        %v1672 = vld [vmem:[%s1668 + $0x18] sm:$0xff]
        %1674 = vset.pattern.permute.xlu0 0
        %1675 = vperm.xlu0 %1674, %v1664
        %v1676 = vpop.permute.xlu0 %1675
        %1679 = vset.pattern.permute.xlu0 0
        %1680 = vperm.xlu0 %1679, %v1665
        %v1681 = vpop.permute.xlu0 %1680
        %1684 = vset.pattern.permute.xlu0 0
        %1685 = vperm.xlu0 %1684, %v1666
        %v1686 = vpop.permute.xlu0 %1685
        %1689 = vset.pattern.permute.xlu0 0
        %1690 = vperm.xlu0 %1689, %v1667
        %v1691 = vpop.permute.xlu0 %1690
        %v1694 = vsel %vm746, %v1669, 0
        %v1697 = vsel %vm746, %v1670, 0
        %v1700 = vsel %vm746, %v1671, 0
        %v1703 = vsel %vm746, %v1672, 0
        %1705 = vmatpush.msra.mxu0 0.0
        %1706 = vmatpush.msra.mxu0 0.0
        %1707 = vmatpush.msra.mxu0 0.0
        %1708 = vmatpush.msra.mxu0 0.0
        %1709 = vmatpush.msra.mxu0 %v1662
        %1710 = vmatpush.msra.mxu0 %v1661
        %1711 = vmatpush.msra.mxu0 %v1660
        %1712 = vmatpush.msra.mxu0 %v1659
        %1713 = vmatpush.msra.mxu0 %v1634
        %1714 = vmatpush.msra.mxu0 %v1633
        %1715 = vmatpush.msra.mxu0 %v1632
        %1716 = vmatpush.msra.mxu0 %v1631
        %1717 = vmatpush.msra.mxu0 %v1648
        %1718 = vmatpush.msra.mxu0 %v1647
        %1719 = vmatpush.msra.mxu0 %v1646
        %1720 = vmatpush.msra.mxu0 %v1645
        %1721 = vmatmul.f32.gmra.mxu0 %v1694
        %v1722 = vpop.f32.mrf.mxu0
        %v1723 = vadd.f32 %v1676, %v1722
        %1724 = vmatmul.f32.gmra.mxu0 %v1697
        %v1725 = vpop.f32.mrf.mxu0
        %v1726 = vadd.f32 %v1681, %v1725
        %1727 = vmatmul.f32.gmra.mxu0 %v1700
        %v1728 = vpop.f32.mrf.mxu0
        %v1729 = vadd.f32 %v1686, %v1728
        %1730 = vmatmul.f32.gmra.mxu0 %v1703
        %v1731 = vpop.f32.mrf.mxu0
        %v1732 = vadd.f32 %v1691, %v1731
        %1733 = vdwg.mxu0
        %s1734 = scalar_lea.vmem %s7, 64
        %v1735 = vld [vmem:[%s1734] sm:$0xff]
        %v1736 = vld [vmem:[%s1734 + $0x8] sm:$0xff]
        %v1737 = vld [vmem:[%s1734 + $0x10] sm:$0xff]
        %v1738 = vld [vmem:[%s1734 + $0x18] sm:$0xff]
        %s1739 = scalar_lea.vmem %s8, 64
        %v1740 = vld [vmem:[%s1739] sm:$0xff]
        %v1741 = vld [vmem:[%s1739 + $0x8] sm:$0xff]
        %v1742 = vld [vmem:[%s1739 + $0x10] sm:$0xff]
        %v1743 = vld [vmem:[%s1739 + $0x18] sm:$0xff]
        %v1744 = vadd.f32 %v1723, %v1726
        %v1745 = vadd.f32 %v1744, %v1729
        %v1746 = vadd.f32 %v1745, %v1732
        %v1747 = vrot.slane %v1746, 4
        %v1748 = vadd.f32 %v1746, %v1747
        %v1749 = vrot.slane %v1748, 2
        %v1750 = vadd.f32 %v1748, %v1749
        %v1751 = vrot.slane %v1750, 1
        %v1752 = vadd.f32 %v1750, %v1751
        %v1753 = vmul.f32 %v1723, %v1723
        %v1754 = vmul.f32 %v1726, %v1726
        %v1755 = vmul.f32 %v1729, %v1729
        %v1756 = vmul.f32 %v1732, %v1732
        %v1757 = vadd.f32 %v1753, %v1754
        %v1758 = vadd.f32 %v1757, %v1755
        %v1759 = vadd.f32 %v1758, %v1756
        %v1760 = vrot.slane %v1759, 4
        %v1761 = vadd.f32 %v1759, %v1760
        %v1762 = vrot.slane %v1761, 2
        %v1763 = vadd.f32 %v1761, %v1762
        %v1764 = vrot.slane %v1763, 1
        %v1765 = vadd.f32 %v1763, %v1764
        %v1766 = vmul.f32 %v1752, %v443
        %v1767 = vsel %vm587, %v1766, 0.0
        %1768 = vadd.xlane.f32.xlu0 %v1767
        %v1769 = vpop.xlane.xlu0 %1768
        %v1770 = vrot.slane %v1769, 4
        %v1771 = vadd.f32 %v1769, %v1770
        %v1772 = vrot.slane %v1771, 2
        %v1773 = vadd.f32 %v1771, %v1772
        %v1774 = vrot.slane %v1773, 1
        %v1775 = vadd.f32 %v1773, %v1774
        %s1776 = vtos %v1775
        %v1777 = vmul.f32 %v1765, %v443
        %v1778 = vsel %vm587, %v1777, 0.0
        %1779 = vadd.xlane.f32.xlu0 %v1778
        %v1780 = vpop.xlane.xlu0 %1779
        %v1781 = vrot.slane %v1780, 4
        %v1782 = vadd.f32 %v1780, %v1781
        %v1783 = vrot.slane %v1782, 2
        %v1784 = vadd.f32 %v1782, %v1783
        %v1785 = vrot.slane %v1784, 1
        %v1786 = vadd.f32 %v1784, %v1785
        %s1787 = vtos %v1786
        %s1788 = smul.f32 %s1776, 0.001953125
        %s1789 = smul.f32 %s1787, 0.001953125
        %s1790 = smul.f32 %s1788, %s1788
        %s1791 = ssub.f32 %s1789, %s1790
        %s1792 = smax.f32 %s1791, 0.0
        %s1793 = sadd.f32 %s1792, 1e-05
        %v1794 = vstv %s1793
        %v1795 = vrsqrt.pop %v1794
        %v1796 = vmul.f32 %v1795, %v1794
        %v1797 = vmul.f32 %v1796, %v1795
        %v1798 = vmul.f32 0.5, %v1797
        %v1799 = vsub.f32 1.5, %v1798
        %v1800 = vmul.f32 %v1795, %v1799
        %vm1801 = vweird.f32 %v1794
        %vm1802 = vweird.f32 %v1795
        %vm1803 = vmor %vm1801, %vm1802
        %v1804 = vsel %vm1803, %v1795, %v1800
        %s1805 = vtos %v1804
        %v1806 = vstv %s1805
        %v1807 = vmul.f32 %v1735, %v1806
        %v1808 = vmul.f32 %v1736, %v1806
        %v1809 = vmul.f32 %v1737, %v1806
        %v1810 = vmul.f32 %v1738, %v1806
        %s1811 = smul.f32 %s1788, %s1805
        %v1812 = vstv %s1811
        %v1813 = vmul.f32 %v1812, %v1735
        %v1814 = vmul.f32 %v1812, %v1736
        %v1815 = vmul.f32 %v1812, %v1737
        %v1816 = vmul.f32 %v1812, %v1738
        %v1817 = vsub.f32 %v1740, %v1813
        %v1818 = vsub.f32 %v1741, %v1814
        %v1819 = vsub.f32 %v1742, %v1815
        %v1820 = vsub.f32 %v1743, %v1816
        %1822 = vset.pattern.permute.xlu0 0
        %1823 = vperm.xlu0 %1822, %v1807
        %v1824 = vpop.permute.xlu0 %1823
        %1827 = vset.pattern.permute.xlu0 0
        %1828 = vperm.xlu0 %1827, %v1808
        %v1829 = vpop.permute.xlu0 %1828
        %1832 = vset.pattern.permute.xlu0 0
        %1833 = vperm.xlu0 %1832, %v1809
        %v1834 = vpop.permute.xlu0 %1833
        %1837 = vset.pattern.permute.xlu0 0
        %1838 = vperm.xlu0 %1837, %v1810
        %v1839 = vpop.permute.xlu0 %1838
        %v1841 = vmul.f32 %v1723, %v1824
        %v1842 = vmul.f32 %v1726, %v1829
        %v1843 = vmul.f32 %v1729, %v1834
        %v1844 = vmul.f32 %v1732, %v1839
        %1846 = vset.pattern.permute.xlu0 0
        %1847 = vperm.xlu0 %1846, %v1817
        %v1848 = vpop.permute.xlu0 %1847
        %1851 = vset.pattern.permute.xlu0 0
        %1852 = vperm.xlu0 %1851, %v1818
        %v1853 = vpop.permute.xlu0 %1852
        %1856 = vset.pattern.permute.xlu0 0
        %1857 = vperm.xlu0 %1856, %v1819
        %v1858 = vpop.permute.xlu0 %1857
        %1861 = vset.pattern.permute.xlu0 0
        %1862 = vperm.xlu0 %1861, %v1820
        %v1863 = vpop.permute.xlu0 %1862
        %v1865 = vadd.f32 %v1841, %v1848
        %v1866 = vadd.f32 %v1842, %v1853
        %v1867 = vadd.f32 %v1843, %v1858
        %v1868 = vadd.f32 %v1844, %v1863
        %v1869 = vmax.f32 %v1865, 0.0
        %v1870 = vmax.f32 %v1866, 0.0
        %v1871 = vmax.f32 %v1867, 0.0
        %v1872 = vmax.f32 %v1868, 0.0
        %1873 = vrot.lane.b32.xlu0 %v1869, 1
        %v1874 = vpop.permute.xlu0 %1873
        %1875 = vrot.lane.b32.xlu0 %v1870, 1
        %v1876 = vpop.permute.xlu0 %1875
        %1877 = vrot.lane.b32.xlu0 %v1871, 1
        %v1878 = vpop.permute.xlu0 %1877
        %1879 = vrot.lane.b32.xlu0 %v1872, 1
        %v1880 = vpop.permute.xlu0 %1879
        %v1881 = vsel %vm475, %v1874, 0.0
        %v1882 = vsel %vm475, %v1876, 0.0
        %v1883 = vsel %vm475, %v1878, 0.0
        %v1884 = vsel %vm475, %v1880, 0.0
        %1885 = vrot.lane.b32.xlu0 %v1869, 127
        %v1886 = vpop.permute.xlu0 %1885
        %1887 = vrot.lane.b32.xlu0 %v1870, 127
        %v1888 = vpop.permute.xlu0 %1887
        %1889 = vrot.lane.b32.xlu0 %v1871, 127
        %v1890 = vpop.permute.xlu0 %1889
        %1891 = vrot.lane.b32.xlu0 %v1872, 127
        %v1892 = vpop.permute.xlu0 %1891
        %v1893 = vsel %vm483, %v1886, 0.0
        %v1894 = vsel %vm483, %v1888, 0.0
        %v1895 = vsel %vm483, %v1890, 0.0
        %v1896 = vsel %vm483, %v1892, 0.0
        %s1897 = scalar_lea.vmem %s10, 64
        %v1898 = vld [vmem:[%s1897] sm:$0xff]
        %v1899 = vld [vmem:[%s1897 + $0x8] sm:$0xff]
        %v1900 = vld [vmem:[%s1897 + $0x10] sm:$0xff]
        %v1901 = vld [vmem:[%s1897 + $0x18] sm:$0xff]
        %s1902 = scalar_lea.vmem %s9, 64
        %v1903 = vld [vmem:[%s1902] sm:$0xff]
        %v1904 = vld [vmem:[%s1902 + $0x8] sm:$0xff]
        %v1905 = vld [vmem:[%s1902 + $0x10] sm:$0xff]
        %v1906 = vld [vmem:[%s1902 + $0x18] sm:$0xff]
        %1908 = vset.pattern.permute.xlu0 0
        %1909 = vperm.xlu0 %1908, %v1898
        %v1910 = vpop.permute.xlu0 %1909
        %1913 = vset.pattern.permute.xlu0 0
        %1914 = vperm.xlu0 %1913, %v1899
        %v1915 = vpop.permute.xlu0 %1914
        %1918 = vset.pattern.permute.xlu0 0
        %1919 = vperm.xlu0 %1918, %v1900
        %v1920 = vpop.permute.xlu0 %1919
        %1923 = vset.pattern.permute.xlu0 0
        %1924 = vperm.xlu0 %1923, %v1901
        %v1925 = vpop.permute.xlu0 %1924
        %v1928 = vsel %vm746, %v1903, 0
        %v1931 = vsel %vm746, %v1904, 0
        %v1934 = vsel %vm746, %v1905, 0
        %v1937 = vsel %vm746, %v1906, 0
        %1939 = vmatpush.msra.mxu0 0.0
        %1940 = vmatpush.msra.mxu0 0.0
        %1941 = vmatpush.msra.mxu0 0.0
        %1942 = vmatpush.msra.mxu0 0.0
        %1943 = vmatpush.msra.mxu0 %v1896
        %1944 = vmatpush.msra.mxu0 %v1895
        %1945 = vmatpush.msra.mxu0 %v1894
        %1946 = vmatpush.msra.mxu0 %v1893
        %1947 = vmatpush.msra.mxu0 %v1872
        %1948 = vmatpush.msra.mxu0 %v1871
        %1949 = vmatpush.msra.mxu0 %v1870
        %1950 = vmatpush.msra.mxu0 %v1869
        %1951 = vmatpush.msra.mxu0 %v1884
        %1952 = vmatpush.msra.mxu0 %v1883
        %1953 = vmatpush.msra.mxu0 %v1882
        %1954 = vmatpush.msra.mxu0 %v1881
        %1955 = vmatmul.f32.gmra.mxu0 %v1928
        %v1956 = vpop.f32.mrf.mxu0
        %v1957 = vadd.f32 %v1910, %v1956
        %1958 = vmatmul.f32.gmra.mxu0 %v1931
        %v1959 = vpop.f32.mrf.mxu0
        %v1960 = vadd.f32 %v1915, %v1959
        %1961 = vmatmul.f32.gmra.mxu0 %v1934
        %v1962 = vpop.f32.mrf.mxu0
        %v1963 = vadd.f32 %v1920, %v1962
        %1964 = vmatmul.f32.gmra.mxu0 %v1937
        %v1965 = vpop.f32.mrf.mxu0
        %v1966 = vadd.f32 %v1925, %v1965
        %1967 = vdwg.mxu0
        %s1968 = scalar_lea.vmem %s11, 64
        %v1969 = vld [vmem:[%s1968] sm:$0xff]
        %v1970 = vld [vmem:[%s1968 + $0x8] sm:$0xff]
        %v1971 = vld [vmem:[%s1968 + $0x10] sm:$0xff]
        %v1972 = vld [vmem:[%s1968 + $0x18] sm:$0xff]
        %s1973 = scalar_lea.vmem %s12, 64
        %v1974 = vld [vmem:[%s1973] sm:$0xff]
        %v1975 = vld [vmem:[%s1973 + $0x8] sm:$0xff]
        %v1976 = vld [vmem:[%s1973 + $0x10] sm:$0xff]
        %v1977 = vld [vmem:[%s1973 + $0x18] sm:$0xff]
        %v1978 = vadd.f32 %v1957, %v1960
        %v1979 = vadd.f32 %v1978, %v1963
        %v1980 = vadd.f32 %v1979, %v1966
        %v1981 = vrot.slane %v1980, 4
        %v1982 = vadd.f32 %v1980, %v1981
        %v1983 = vrot.slane %v1982, 2
        %v1984 = vadd.f32 %v1982, %v1983
        %v1985 = vrot.slane %v1984, 1
        %v1986 = vadd.f32 %v1984, %v1985
        %v1987 = vmul.f32 %v1957, %v1957
        %v1988 = vmul.f32 %v1960, %v1960
        %v1989 = vmul.f32 %v1963, %v1963
        %v1990 = vmul.f32 %v1966, %v1966
        %v1991 = vadd.f32 %v1987, %v1988
        %v1992 = vadd.f32 %v1991, %v1989
        %v1993 = vadd.f32 %v1992, %v1990
        %v1994 = vrot.slane %v1993, 4
        %v1995 = vadd.f32 %v1993, %v1994
        %v1996 = vrot.slane %v1995, 2
        %v1997 = vadd.f32 %v1995, %v1996
        %v1998 = vrot.slane %v1997, 1
        %v1999 = vadd.f32 %v1997, %v1998
        %v2000 = vmul.f32 %v1986, %v443
        %v2001 = vsel %vm587, %v2000, 0.0
        %2002 = vadd.xlane.f32.xlu0 %v2001
        %v2003 = vpop.xlane.xlu0 %2002
        %v2004 = vrot.slane %v2003, 4
        %v2005 = vadd.f32 %v2003, %v2004
        %v2006 = vrot.slane %v2005, 2
        %v2007 = vadd.f32 %v2005, %v2006
        %v2008 = vrot.slane %v2007, 1
        %v2009 = vadd.f32 %v2007, %v2008
        %s2010 = vtos %v2009
        %v2011 = vmul.f32 %v1999, %v443
        %v2012 = vsel %vm587, %v2011, 0.0
        %2013 = vadd.xlane.f32.xlu0 %v2012
        %v2014 = vpop.xlane.xlu0 %2013
        %v2015 = vrot.slane %v2014, 4
        %v2016 = vadd.f32 %v2014, %v2015
        %v2017 = vrot.slane %v2016, 2
        %v2018 = vadd.f32 %v2016, %v2017
        %v2019 = vrot.slane %v2018, 1
        %v2020 = vadd.f32 %v2018, %v2019
        %s2021 = vtos %v2020
        %s2022 = smul.f32 %s2010, 0.001953125
        %s2023 = smul.f32 %s2021, 0.001953125
        %s2024 = smul.f32 %s2022, %s2022
        %s2025 = ssub.f32 %s2023, %s2024
        %s2026 = smax.f32 %s2025, 0.0
        %s2027 = sadd.f32 %s2026, 1e-05
        %v2028 = vstv %s2027
        %v2029 = vrsqrt.pop %v2028
        %v2030 = vmul.f32 %v2029, %v2028
        %v2031 = vmul.f32 %v2030, %v2029
        %v2032 = vmul.f32 0.5, %v2031
        %v2033 = vsub.f32 1.5, %v2032
        %v2034 = vmul.f32 %v2029, %v2033
        %vm2035 = vweird.f32 %v2028
        %vm2036 = vweird.f32 %v2029
        %vm2037 = vmor %vm2035, %vm2036
        %v2038 = vsel %vm2037, %v2029, %v2034
        %s2039 = vtos %v2038
        %v2040 = vstv %s2039
        %v2041 = vmul.f32 %v1969, %v2040
        %v2042 = vmul.f32 %v1970, %v2040
        %v2043 = vmul.f32 %v1971, %v2040
        %v2044 = vmul.f32 %v1972, %v2040
        %s2045 = smul.f32 %s2022, %s2039
        %v2046 = vstv %s2045
        %v2047 = vmul.f32 %v2046, %v1969
        %v2048 = vmul.f32 %v2046, %v1970
        %v2049 = vmul.f32 %v2046, %v1971
        %v2050 = vmul.f32 %v2046, %v1972
        %v2051 = vsub.f32 %v1974, %v2047
        %v2052 = vsub.f32 %v1975, %v2048
        %v2053 = vsub.f32 %v1976, %v2049
        %v2054 = vsub.f32 %v1977, %v2050
        %2056 = vset.pattern.permute.xlu0 0
        %2057 = vperm.xlu0 %2056, %v2041
        %v2058 = vpop.permute.xlu0 %2057
        %2061 = vset.pattern.permute.xlu0 0
        %2062 = vperm.xlu0 %2061, %v2042
        %v2063 = vpop.permute.xlu0 %2062
        %2066 = vset.pattern.permute.xlu0 0
        %2067 = vperm.xlu0 %2066, %v2043
        %v2068 = vpop.permute.xlu0 %2067
        %2071 = vset.pattern.permute.xlu0 0
        %2072 = vperm.xlu0 %2071, %v2044
        %v2073 = vpop.permute.xlu0 %2072
        %v2075 = vmul.f32 %v1957, %v2058
        %v2076 = vmul.f32 %v1960, %v2063
        %v2077 = vmul.f32 %v1963, %v2068
        %v2078 = vmul.f32 %v1966, %v2073
        %2080 = vset.pattern.permute.xlu0 0
        %2081 = vperm.xlu0 %2080, %v2051
        %v2082 = vpop.permute.xlu0 %2081
        %2085 = vset.pattern.permute.xlu0 0
        %2086 = vperm.xlu0 %2085, %v2052
        %v2087 = vpop.permute.xlu0 %2086
        %2090 = vset.pattern.permute.xlu0 0
        %2091 = vperm.xlu0 %2090, %v2053
        %v2092 = vpop.permute.xlu0 %2091
        %2095 = vset.pattern.permute.xlu0 0
        %2096 = vperm.xlu0 %2095, %v2054
        %v2097 = vpop.permute.xlu0 %2096
        %v2099 = vadd.f32 %v2075, %v2082
        %v2100 = vadd.f32 %v2076, %v2087
        %v2101 = vadd.f32 %v2077, %v2092
        %v2102 = vadd.f32 %v2078, %v2097
        %v2103 = vadd.f32 %v2099, %v1631
        %v2104 = vadd.f32 %v2100, %v1632
        %v2105 = vadd.f32 %v2101, %v1633
        %v2106 = vadd.f32 %v2102, %v1634
        %v2107 = vmax.f32 %v2103, 0.0
        %v2108 = vmax.f32 %v2104, 0.0
        %v2109 = vmax.f32 %v2105, 0.0
        %v2110 = vmax.f32 %v2106, 0.0
        %2111 = vst [vmem:[%s433] sm:$0xff] %v2107
        %2112 = vst [vmem:[%s433 + $0x8] sm:$0xff] %v2108
        %2113 = vst [vmem:[%s433 + $0x10] sm:$0xff] %v2109
        %2114 = vst [vmem:[%s433 + $0x18] sm:$0xff] %v2110
        %s2115 = sand.u32 %s313, 1
        %s2116 = scalar_lea.sflag [#allocation3], %s2115
        %s2117 = sand.u32 %s313, 1
        %s2118 = smul.addr %s2117, 32
        %s2119 = scalar_lea.vmem [#allocation2], %s2118
        // Predicated region
        $region73: #{tpu_custom_call.1} parent=71 // pred_check
          %p2120 = pneg %p323
        $region74: #{tpu_custom_call.1} parent=71 // pred_check_branch
          %2122 = sbr.rel (%p2120) target = $region76
        $region75: #{tpu_custom_call.1} parent=71 // pred_region
          %2124 = vsyncadd %s2116, 0
          %s2125 = smul.addr %s27, 4
          %s2126 = smul.addr %s2125, 8
          %s2127 = scalar_lea.hbm %s13, %s2126
          %s2128 = sshll.u32 %s2119, 4
          %s2129 = int_to_ptr.vmem [resolvable:$true] %s2128
          %s2130 = sshll.u32 %s2127, 4
          %s2131 = int_to_ptr.hbm [resolvable:$true] %s2130
          %2136 = dma.vmem_to_hbm [thread:$0]  %s2129, 512, %s2131, %s2116, 128, 128, 8
        $region76: #{tpu_custom_call.1} parent=71 // pred_fallthru
          _
      $region72: #{tpu_custom_call.1} parent=5 // pred_fallthru
        _
      %p2137 = scmp.le.s32.totalorder 2, %s22
      // Predicated region
      $region77: #{tpu_custom_call.1} parent=5 // pred_check
        %p2138 = pneg %p2137
      $region78: #{tpu_custom_call.1} parent=5 // pred_check_branch
        %2140 = sbr.rel (%p2138) target = $region80
      $region79: #{tpu_custom_call.1} parent=5 // pred_region
        %s2141 = ssub.s32 %s22, 2
        // Predicated region
        $region81: #{tpu_custom_call.1} parent=79 // pred_check
          %p2142 = pneg %p329
        $region82: #{tpu_custom_call.1} parent=79 // pred_check_branch
          %2144 = sbr.rel (%p2142) target = $region84
        $region83: #{tpu_custom_call.1} parent=79 // pred_region
          %s2145 = sand.u32 %s314, 1
          %s2146 = scalar_lea.sflag [#allocation3], %s2145
          %s2147 = sand.u32 %s314, 1
          %s2148 = smul.addr %s2147, 32
          %s2149 = scalar_lea.vmem [#allocation2], %s2148
          %2151 = dma.done %s2146, 512
        $region84: #{tpu_custom_call.1} parent=79 // pred_fallthru
          _
      $region80: #{tpu_custom_call.1} parent=5 // pred_fallthru
        _
    $region6: #{tpu_custom_call.1} parent=1 // loop_footer
      %s26 = sadd.s32 1, %s22
    $region7: #{tpu_custom_call.1} parent=1 // loop_footer_branch
      %21 = sbr.rel target = $region3
    $region8: #{tpu_custom_call.1} parent=1 // loop_exit
      _
    %2152 = vsyncpa [#allocation3], 1
    %s2153 = scalar_lea.sflag [#allocation3], 1
    %2154 = vsyncpa %s2153, 1

// kernel: tpu_custom_call.1
$region0: #{tpu_custom_call.1}
  #allocation0 [shape = 'u32[]', space=smem, size = 0x4, offset = 0x4, fixed_abs, tag = 'smem constant byte address 0x4 - core index']
  #allocation1 [shape = 'u32[72,128]{1,0:T(1,128)}', space=vmem, size = 0x9000, scoped, tag = 'internal scratch']
  %s0 = inlined_call_operand.vmem [shape: f32[2,16,128], index: 0, kind: input, shape index: {}]
  %s1 = inlined_call_operand.vmem [shape: f32[32,48], index: 1, kind: input, shape index: {}]
  %s2 = inlined_call_operand.vmem [shape: f32[32,1], index: 2, kind: input, shape index: {}]
  %s3 = inlined_call_operand.vmem [shape: f32[32,1], index: 3, kind: input, shape index: {}]
  %s4 = inlined_call_operand.vmem [shape: f32[32,1], index: 4, kind: input, shape index: {}]
  %s5 = inlined_call_operand.vmem [shape: f32[3,32,96], index: 5, kind: input, shape index: {}]
  %s6 = inlined_call_operand.vmem [shape: f32[3,32,1], index: 6, kind: input, shape index: {}]
  %s7 = inlined_call_operand.vmem [shape: f32[3,32,1], index: 7, kind: input, shape index: {}]
  %s8 = inlined_call_operand.vmem [shape: f32[3,32,1], index: 8, kind: input, shape index: {}]
  %s9 = inlined_call_operand.vmem [shape: f32[3,32,96], index: 9, kind: input, shape index: {}]
  %s10 = inlined_call_operand.vmem [shape: f32[3,32,1], index: 10, kind: input, shape index: {}]
  %s11 = inlined_call_operand.vmem [shape: f32[3,32,1], index: 11, kind: input, shape index: {}]
  %s12 = inlined_call_operand.vmem [shape: f32[3,32,1], index: 12, kind: input, shape index: {}]
  %s13 = inlined_call_operand.hbm [shape: f32[2,32,128], index: 13, kind: output, shape index: {}]
  %s14 = sld [smem:[#allocation0]]
  $region85: #{tpu_custom_call.1} parent=0
    _
  %s16 = ssub.s32 1, %s14
  %s17 = scalar_select 0, %s16, %s14
  $region1: #{tpu_custom_call.1} parent=0
    #allocation2 [shape = 'u8[32768]{0}', space=vmem, size = 0x8000, scoped, tag = 'output window, operand 0']
    #allocation3 [shape = 's32[2]{0}', space=sflag, size = 0x8, scoped, tag = 'scoped memory for tpu_custom_call.1']
    %18 = vsyncpa [#allocation3], 0
    %s19 = scalar_lea.sflag [#allocation3], 1
    %20 = vsyncpa %s19, 0
    loop: start=0, step=1, limit=4
    $region2: #{tpu_custom_call.1} parent=1 // loop_pre_header
      _
    $region3: #{tpu_custom_call.1} parent=1 // loop_header
      %s22 = sphi 0, %s26
      %p23 = scmp.ge.s32.totalorder %s22, 4
      %s32 = sphi 0, %s34
      %s35 = sphi 0, %s32
      %s36 = sphi 0, %s35
      %s52 = sphi 0, %s36
      %s56 = sphi 0, %s56
      %s58 = sphi 0, %s56
      %s59 = sphi 0, %s58
      %s73 = sphi 0, %s59
      %s77 = sphi 0, %s77
      %s79 = sphi 0, %s77
      %s80 = sphi 0, %s79
      %s94 = sphi 0, %s80
      %s98 = sphi 0, %s98
      %s100 = sphi 0, %s98
      %s101 = sphi 0, %s100
      %s115 = sphi 0, %s101
      %s119 = sphi 0, %s119
      %s121 = sphi 0, %s119
      %s122 = sphi 0, %s121
      %s136 = sphi 0, %s122
      %s140 = sphi 0, %s140
      %s142 = sphi 0, %s140
      %s143 = sphi 0, %s142
      %s157 = sphi 0, %s143
      %s161 = sphi 0, %s161
      %s163 = sphi 0, %s161
      %s164 = sphi 0, %s163
      %s178 = sphi 0, %s164
      %s182 = sphi 0, %s182
      %s184 = sphi 0, %s182
      %s185 = sphi 0, %s184
      %s199 = sphi 0, %s185
      %s203 = sphi 0, %s203
      %s205 = sphi 0, %s203
      %s206 = sphi 0, %s205
      %s220 = sphi 0, %s206
      %s224 = sphi 0, %s224
      %s226 = sphi 0, %s224
      %s227 = sphi 0, %s226
      %s241 = sphi 0, %s227
      %s245 = sphi 0, %s245
      %s247 = sphi 0, %s245
      %s248 = sphi 0, %s247
      %s262 = sphi 0, %s248
      %s266 = sphi 0, %s266
      %s268 = sphi 0, %s266
      %s269 = sphi 0, %s268
      %s283 = sphi 0, %s269
      %s287 = sphi 0, %s287
      %s289 = sphi 0, %s287
      %s290 = sphi 0, %s289
      %s304 = sphi 0, %s290
      %s310 = sphi 0, %s312
      %s313 = sphi 0, %s310
      %s314 = sphi 0, %s313
      %s330 = sphi 0, %s314
    $region4: #{tpu_custom_call.1} parent=1 // loop_header_branch
      %25 = sbr.rel (%p23) target = $region8
    $region5: #{tpu_custom_call.1} parent=1 // loop_body
      %s27 = ssub.s32 %s22, 1
      %s28 = ssub.s32 %s22, 2
      %s29 = sadd.s32 %s22, 1
      %s30 = ssub.s32 %s22, %s29
      %p31 = scmp.eq.s32.totalorder %s30, 0
      %s33 = sadd.s32 %s32, 1
      %s34 = scalar_select %p31, %s32, %s33
      %p37 = pneg %p31
      %p38 = scmp.eq.s32.totalorder %s22, 1
      %p39 = por %p37, %p38
      %p40 = scmp.ne.s32.totalorder %s32, %s35
      %p41 = scmp.eq.s32.totalorder %s22, 0
      %p42 = por %p40, %p41
      %p43 = scmp.ne.s32.totalorder %s32, %s35
      %p44 = scmp.eq.s32.totalorder %s27, 1
      %p45 = por %p43, %p44
      %p46 = scmp.ne.s32.totalorder %s35, %s36
      %p47 = scmp.eq.s32.totalorder %s27, 0
      %p48 = por %p46, %p47
      %p49 = scmp.ne.s32.totalorder %s35, %s36
      %p50 = scmp.eq.s32.totalorder %s28, 1
      %p51 = por %p49, %p50
      %p53 = scmp.ne.s32.totalorder %s36, %s52
      %p54 = scmp.eq.s32.totalorder %s28, 0
      %p55 = por %p53, %p54
      %s57 = sadd.s32 %s56, 1
      %p60 = scmp.eq.s32.totalorder %s22, 1
      %p61 = scmp.ne.s32.totalorder %s56, %s58
      %p62 = scmp.eq.s32.totalorder %s22, 0
      %p63 = por %p61, %p62
      %p64 = scmp.ne.s32.totalorder %s56, %s58
      %p65 = scmp.eq.s32.totalorder %s27, 1
      %p66 = por %p64, %p65
      %p67 = scmp.ne.s32.totalorder %s58, %s59
      %p68 = scmp.eq.s32.totalorder %s27, 0
      %p69 = por %p67, %p68
      %p70 = scmp.ne.s32.totalorder %s58, %s59
      %p71 = scmp.eq.s32.totalorder %s28, 1
      %p72 = por %p70, %p71
      %p74 = scmp.ne.s32.totalorder %s59, %s73
      %p75 = scmp.eq.s32.totalorder %s28, 0
      %p76 = por %p74, %p75
      %s78 = sadd.s32 %s77, 1
      %p81 = scmp.eq.s32.totalorder %s22, 1
      %p82 = scmp.ne.s32.totalorder %s77, %s79
      %p83 = scmp.eq.s32.totalorder %s22, 0
      %p84 = por %p82, %p83
      %p85 = scmp.ne.s32.totalorder %s77, %s79
      %p86 = scmp.eq.s32.totalorder %s27, 1
      %p87 = por %p85, %p86
      %p88 = scmp.ne.s32.totalorder %s79, %s80
      %p89 = scmp.eq.s32.totalorder %s27, 0
      %p90 = por %p88, %p89
      %p91 = scmp.ne.s32.totalorder %s79, %s80
      %p92 = scmp.eq.s32.totalorder %s28, 1
      %p93 = por %p91, %p92
      %p95 = scmp.ne.s32.totalorder %s80, %s94
      %p96 = scmp.eq.s32.totalorder %s28, 0
      %p97 = por %p95, %p96
      %s99 = sadd.s32 %s98, 1
      %p102 = scmp.eq.s32.totalorder %s22, 1
      %p103 = scmp.ne.s32.totalorder %s98, %s100
      %p104 = scmp.eq.s32.totalorder %s22, 0
      %p105 = por %p103, %p104
      %p106 = scmp.ne.s32.totalorder %s98, %s100
      %p107 = scmp.eq.s32.totalorder %s27, 1
      %p108 = por %p106, %p107
      %p109 = scmp.ne.s32.totalorder %s100, %s101
      %p110 = scmp.eq.s32.totalorder %s27, 0
      %p111 = por %p109, %p110
      %p112 = scmp.ne.s32.totalorder %s100, %s101
      %p113 = scmp.eq.s32.totalorder %s28, 1
      %p114 = por %p112, %p113
      %p116 = scmp.ne.s32.totalorder %s101, %s115
      %p117 = scmp.eq.s32.totalorder %s28, 0
      %p118 = por %p116, %p117
      %s120 = sadd.s32 %s119, 1
      %p123 = scmp.eq.s32.totalorder %s22, 1
      %p124 = scmp.ne.s32.totalorder %s119, %s121
      %p125 = scmp.eq.s32.totalorder %s22, 0
      %p126 = por %p124, %p125
      %p127 = scmp.ne.s32.totalorder %s119, %s121
      %p128 = scmp.eq.s32.totalorder %s27, 1
      %p129 = por %p127, %p128
      %p130 = scmp.ne.s32.totalorder %s121, %s122
      %p131 = scmp.eq.s32.totalorder %s27, 0
      %p132 = por %p130, %p131
      %p133 = scmp.ne.s32.totalorder %s121, %s122
      %p134 = scmp.eq.s32.totalorder %s28, 1
      %p135 = por %p133, %p134
      %p137 = scmp.ne.s32.totalorder %s122, %s136
      %p138 = scmp.eq.s32.totalorder %s28, 0
      %p139 = por %p137, %p138
      %s141 = sadd.s32 %s140, 1
      %p144 = scmp.eq.s32.totalorder %s22, 1
      %p145 = scmp.ne.s32.totalorder %s140, %s142
      %p146 = scmp.eq.s32.totalorder %s22, 0
      %p147 = por %p145, %p146
      %p148 = scmp.ne.s32.totalorder %s140, %s142
      %p149 = scmp.eq.s32.totalorder %s27, 1
      %p150 = por %p148, %p149
      %p151 = scmp.ne.s32.totalorder %s142, %s143
      %p152 = scmp.eq.s32.totalorder %s27, 0
      %p153 = por %p151, %p152
      %p154 = scmp.ne.s32.totalorder %s142, %s143
      %p155 = scmp.eq.s32.totalorder %s28, 1
      %p156 = por %p154, %p155
      %p158 = scmp.ne.s32.totalorder %s143, %s157
      %p159 = scmp.eq.s32.totalorder %s28, 0
      %p160 = por %p158, %p159
      %s162 = sadd.s32 %s161, 1
      %p165 = scmp.eq.s32.totalorder %s22, 1
      %p166 = scmp.ne.s32.totalorder %s161, %s163
      %p167 = scmp.eq.s32.totalorder %s22, 0
      %p168 = por %p166, %p167
      %p169 = scmp.ne.s32.totalorder %s161, %s163
      %p170 = scmp.eq.s32.totalorder %s27, 1
      %p171 = por %p169, %p170
      %p172 = scmp.ne.s32.totalorder %s163, %s164
      %p173 = scmp.eq.s32.totalorder %s27, 0
      %p174 = por %p172, %p173
      %p175 = scmp.ne.s32.totalorder %s163, %s164
      %p176 = scmp.eq.s32.totalorder %s28, 1
      %p177 = por %p175, %p176
      %p179 = scmp.ne.s32.totalorder %s164, %s178
      %p180 = scmp.eq.s32.totalorder %s28, 0
      %p181 = por %p179, %p180
      %s183 = sadd.s32 %s182, 1
      %p186 = scmp.eq.s32.totalorder %s22, 1
      %p187 = scmp.ne.s32.totalorder %s182, %s184
      %p188 = scmp.eq.s32.totalorder %s22, 0
      %p189 = por %p187, %p188
      %p190 = scmp.ne.s32.totalorder %s182, %s184
      %p191 = scmp.eq.s32.totalorder %s27, 1
      %p192 = por %p190, %p191
      %p193 = scmp.ne.s32.totalorder %s184, %s185
      %p194 = scmp.eq.s32.totalorder %s27, 0
      %p195 = por %p193, %p194
      %p196 = scmp.ne.s32.totalorder %s184, %s185
      %p197 = scmp.eq.s32.totalorder %s28, 1
      %p198 = por %p196, %p197
      %p200 = scmp.ne.s32.totalorder %s185, %s199
      %p201 = scmp.eq.s32.totalorder %s28, 0
      %p202 = por %p200, %p201
      %s204 = sadd.s32 %s203, 1
      %p207 = scmp.eq.s32.totalorder %s22, 1
      %p208 = scmp.ne.s32.totalorder %s203, %s205
      %p209 = scmp.eq.s32.totalorder %s22, 0
      %p210 = por %p208, %p209
      %p211 = scmp.ne.s32.totalorder %s203, %s205
      %p212 = scmp.eq.s32.totalorder %s27, 1
      %p213 = por %p211, %p212
      %p214 = scmp.ne.s32.totalorder %s205, %s206
      %p215 = scmp.eq.s32.totalorder %s27, 0
      %p216 = por %p214, %p215
      %p217 = scmp.ne.s32.totalorder %s205, %s206
      %p218 = scmp.eq.s32.totalorder %s28, 1
      %p219 = por %p217, %p218
      %p221 = scmp.ne.s32.totalorder %s206, %s220
      %p222 = scmp.eq.s32.totalorder %s28, 0
      %p223 = por %p221, %p222
      %s225 = sadd.s32 %s224, 1
      %p228 = scmp.eq.s32.totalorder %s22, 1
      %p229 = scmp.ne.s32.totalorder %s224, %s226
      %p230 = scmp.eq.s32.totalorder %s22, 0
      %p231 = por %p229, %p230
      %p232 = scmp.ne.s32.totalorder %s224, %s226
      %p233 = scmp.eq.s32.totalorder %s27, 1
      %p234 = por %p232, %p233
      %p235 = scmp.ne.s32.totalorder %s226, %s227
      %p236 = scmp.eq.s32.totalorder %s27, 0
      %p237 = por %p235, %p236
      %p238 = scmp.ne.s32.totalorder %s226, %s227
      %p239 = scmp.eq.s32.totalorder %s28, 1
      %p240 = por %p238, %p239
      %p242 = scmp.ne.s32.totalorder %s227, %s241
      %p243 = scmp.eq.s32.totalorder %s28, 0
      %p244 = por %p242, %p243
      %s246 = sadd.s32 %s245, 1
      %p249 = scmp.eq.s32.totalorder %s22, 1
      %p250 = scmp.ne.s32.totalorder %s245, %s247
      %p251 = scmp.eq.s32.totalorder %s22, 0
      %p252 = por %p250, %p251
      %p253 = scmp.ne.s32.totalorder %s245, %s247
      %p254 = scmp.eq.s32.totalorder %s27, 1
      %p255 = por %p253, %p254
      %p256 = scmp.ne.s32.totalorder %s247, %s248
      %p257 = scmp.eq.s32.totalorder %s27, 0
      %p258 = por %p256, %p257
      %p259 = scmp.ne.s32.totalorder %s247, %s248
      %p260 = scmp.eq.s32.totalorder %s28, 1
      %p261 = por %p259, %p260
      %p263 = scmp.ne.s32.totalorder %s248, %s262
      %p264 = scmp.eq.s32.totalorder %s28, 0
      %p265 = por %p263, %p264
      %s267 = sadd.s32 %s266, 1
      %p270 = scmp.eq.s32.totalorder %s22, 1
      %p271 = scmp.ne.s32.totalorder %s266, %s268
      %p272 = scmp.eq.s32.totalorder %s22, 0
      %p273 = por %p271, %p272
      %p274 = scmp.ne.s32.totalorder %s266, %s268
      %p275 = scmp.eq.s32.totalorder %s27, 1
      %p276 = por %p274, %p275
      %p277 = scmp.ne.s32.totalorder %s268, %s269
      %p278 = scmp.eq.s32.totalorder %s27, 0
      %p279 = por %p277, %p278
      %p280 = scmp.ne.s32.totalorder %s268, %s269
      %p281 = scmp.eq.s32.totalorder %s28, 1
      %p282 = por %p280, %p281
      %p284 = scmp.ne.s32.totalorder %s269, %s283
      %p285 = scmp.eq.s32.totalorder %s28, 0
      %p286 = por %p284, %p285
      %s288 = sadd.s32 %s287, 1
      %p291 = scmp.eq.s32.totalorder %s22, 1
      %p292 = scmp.ne.s32.totalorder %s287, %s289
      %p293 = scmp.eq.s32.totalorder %s22, 0
      %p294 = por %p292, %p293
      %p295 = scmp.ne.s32.totalorder %s287, %s289
      %p296 = scmp.eq.s32.totalorder %s27, 1
      %p297 = por %p295, %p296
      %p298 = scmp.ne.s32.totalorder %s289, %s290
      %p299 = scmp.eq.s32.totalorder %s27, 0
      %p300 = por %p298, %p299
      %p301 = scmp.ne.s32.totalorder %s289, %s290
      %p302 = scmp.eq.s32.totalorder %s28, 1
      %p303 = por %p301, %p302
      %p305 = scmp.ne.s32.totalorder %s290, %s304
      %p306 = scmp.eq.s32.totalorder %s28, 0
      %p307 = por %p305, %p306
      %s308 = ssub.s32 %s22, %s29
      %p309 = scmp.eq.s32.totalorder %s308, 0
      %s311 = sadd.s32 %s310, 1
      %s312 = scalar_select %p309, %s310, %s311
      %p315 = pneg %p309
      %p316 = scmp.eq.s32.totalorder %s22, 1
      %p317 = por %p315, %p316
      %p318 = scmp.ne.s32.totalorder %s310, %s313
      %p319 = scmp.eq.s32.totalorder %s22, 0
      %p320 = por %p318, %p319
      %p321 = scmp.ne.s32.totalorder %s310, %s313
      %p322 = scmp.eq.s32.totalorder %s27, 1
      %p323 = por %p321, %p322
      %p324 = scmp.ne.s32.totalorder %s313, %s314
      %p325 = scmp.eq.s32.totalorder %s27, 0
      %p326 = por %p324, %p325
      %p327 = scmp.ne.s32.totalorder %s313, %s314
      %p328 = scmp.eq.s32.totalorder %s28, 1
      %p329 = por %p327, %p328
      %p331 = scmp.ne.s32.totalorder %s314, %s330
      %p332 = scmp.eq.s32.totalorder %s28, 0
      %p333 = por %p331, %p332
      %p334 = scmp.le.s32.totalorder 1, %s22
      %p335 = scmp.lt.s32.totalorder %s22, 3
      %p336 = pnand %p334, %p335
      %p337 = pneg %p336
      // Predicated region
      $region9: #{tpu_custom_call.1} parent=5 // pred_check
        _
      $region10: #{tpu_custom_call.1} parent=5 // pred_check_branch
        %339 = sbr.rel (%p336) target = $region12
      $region11: #{tpu_custom_call.1} parent=5 // pred_region
        %s340 = ssub.s32 %s22, 1
        // Predicated region
        $region13: #{tpu_custom_call.1} parent=11 // pred_check
          %p341 = pneg %p69
        $region14: #{tpu_custom_call.1} parent=11 // pred_check_branch
          %343 = sbr.rel (%p341) target = $region16
        $region15: #{tpu_custom_call.1} parent=11 // pred_region
          _
        $region16: #{tpu_custom_call.1} parent=11 // pred_fallthru
          _
        // Predicated region
        $region17: #{tpu_custom_call.1} parent=11 // pred_check
          %p344 = pneg %p90
        $region18: #{tpu_custom_call.1} parent=11 // pred_check_branch
          %346 = sbr.rel (%p344) target = $region20
        $region19: #{tpu_custom_call.1} parent=11 // pred_region
          _
        $region20: #{tpu_custom_call.1} parent=11 // pred_fallthru
          _
        // Predicated region
        $region21: #{tpu_custom_call.1} parent=11 // pred_check
          %p347 = pneg %p111
        $region22: #{tpu_custom_call.1} parent=11 // pred_check_branch
          %349 = sbr.rel (%p347) target = $region24
        $region23: #{tpu_custom_call.1} parent=11 // pred_region
          _
        $region24: #{tpu_custom_call.1} parent=11 // pred_fallthru
          _
        // Predicated region
        $region25: #{tpu_custom_call.1} parent=11 // pred_check
          %p350 = pneg %p132
        $region26: #{tpu_custom_call.1} parent=11 // pred_check_branch
          %352 = sbr.rel (%p350) target = $region28
        $region27: #{tpu_custom_call.1} parent=11 // pred_region
          _
        $region28: #{tpu_custom_call.1} parent=11 // pred_fallthru
          _
        // Predicated region
        $region29: #{tpu_custom_call.1} parent=11 // pred_check
          %p353 = pneg %p153
        $region30: #{tpu_custom_call.1} parent=11 // pred_check_branch
          %355 = sbr.rel (%p353) target = $region32
        $region31: #{tpu_custom_call.1} parent=11 // pred_region
          _
        $region32: #{tpu_custom_call.1} parent=11 // pred_fallthru
          _
        // Predicated region
        $region33: #{tpu_custom_call.1} parent=11 // pred_check
          %p356 = pneg %p174
        $region34: #{tpu_custom_call.1} parent=11 // pred_check_branch
          %358 = sbr.rel (%p356) target = $region36
        $region35: #{tpu_custom_call.1} parent=11 // pred_region
          _
        $region36: #{tpu_custom_call.1} parent=11 // pred_fallthru
          _
        // Predicated region
        $region37: #{tpu_custom_call.1} parent=11 // pred_check
          %p359 = pneg %p195
        $region38: #{tpu_custom_call.1} parent=11 // pred_check_branch
          %361 = sbr.rel (%p359) target = $region40
        $region39: #{tpu_custom_call.1} parent=11 // pred_region
          _
        $region40: #{tpu_custom_call.1} parent=11 // pred_fallthru
          _
        // Predicated region
        $region41: #{tpu_custom_call.1} parent=11 // pred_check
          %p362 = pneg %p216
        $region42: #{tpu_custom_call.1} parent=11 // pred_check_branch
          %364 = sbr.rel (%p362) target = $region44
        $region43: #{tpu_custom_call.1} parent=11 // pred_region
          _
        $region44: #{tpu_custom_call.1} parent=11 // pred_fallthru
          _
        // Predicated region
        $region45: #{tpu_custom_call.1} parent=11 // pred_check
          %p365 = pneg %p237
        $region46: #{tpu_custom_call.1} parent=11 // pred_check_branch
          %367 = sbr.rel (%p365) target = $region48
        $region47: #{tpu_custom_call.1} parent=11 // pred_region
          _
        $region48: #{tpu_custom_call.1} parent=11 // pred_fallthru
          _
        // Predicated region
        $region49: #{tpu_custom_call.1} parent=11 // pred_check
          %p368 = pneg %p258
        $region50: #{tpu_custom_call.1} parent=11 // pred_check_branch
          %370 = sbr.rel (%p368) target = $region52
        $region51: #{tpu_custom_call.1} parent=11 // pred_region
          _
        $region52: #{tpu_custom_call.1} parent=11 // pred_fallthru
          _
        // Predicated region
        $region53: #{tpu_custom_call.1} parent=11 // pred_check
          %p371 = pneg %p279
        $region54: #{tpu_custom_call.1} parent=11 // pred_check_branch
          %373 = sbr.rel (%p371) target = $region56
        $region55: #{tpu_custom_call.1} parent=11 // pred_region
          _
        $region56: #{tpu_custom_call.1} parent=11 // pred_fallthru
          _
        // Predicated region
        $region57: #{tpu_custom_call.1} parent=11 // pred_check
          %p374 = pneg %p300
        $region58: #{tpu_custom_call.1} parent=11 // pred_check_branch
          %376 = sbr.rel (%p374) target = $region60
        $region59: #{tpu_custom_call.1} parent=11 // pred_region
          _
        $region60: #{tpu_custom_call.1} parent=11 // pred_fallthru
          _
      $region12: #{tpu_custom_call.1} parent=5 // pred_fallthru
        _
      %p377 = scmp.lt.s32.totalorder %s22, 2
      // Predicated region
      $region61: #{tpu_custom_call.1} parent=5 // pred_check
        %p378 = pneg %p377
      $region62: #{tpu_custom_call.1} parent=5 // pred_check_branch
        %380 = sbr.rel (%p378) target = $region64
      $region63: #{tpu_custom_call.1} parent=5 // pred_region
        // Predicated region
        $region65: #{tpu_custom_call.1} parent=63 // pred_check
          %p381 = pneg %p42
        $region66: #{tpu_custom_call.1} parent=63 // pred_check_branch
          %383 = sbr.rel (%p381) target = $region68
        $region67: #{tpu_custom_call.1} parent=63 // pred_region
          %p384 = scmp.lt.s32.totalorder %s22, 1
          %s385 = scalar_select %p384, %s22, 1
          %s386 = smul.addr %s385, 2
          %s387 = smul.addr %s386, 8
          %s388 = scalar_lea.vmem %s0, %s387
        $region68: #{tpu_custom_call.1} parent=63 // pred_fallthru
          _
      $region64: #{tpu_custom_call.1} parent=5 // pred_fallthru
        _
      %p389 = scmp.le.s32.totalorder 1, %s22
      %p390 = scmp.lt.s32.totalorder %s22, 3
      %p391 = pnand %p389, %p390
      %p392 = pneg %p391
      // Predicated region
      $region69: #{tpu_custom_call.1} parent=5 // pred_check
        _
      $region70: #{tpu_custom_call.1} parent=5 // pred_check_branch
        %394 = sbr.rel (%p391) target = $region72
      $region71: #{tpu_custom_call.1} parent=5 // pred_region
        %s395 = ssub.s32 %s22, 1
        %p396 = scmp.lt.s32.totalorder %s27, 1
        %s397 = scalar_select %p396, %s27, 1
        %s398 = smul.addr %s397, 2
        %s399 = smul.addr %s398, 8
        %s400 = scalar_lea.vmem %s0, %s399
        %p401 = pneg %p48
        %p402 = pneg %p45
        %p403 = pneg %p69
        %p404 = pneg %p66
        %p405 = pneg %p90
        %p406 = pneg %p87
        %p407 = pneg %p111
        %p408 = pneg %p108
        %p409 = pneg %p132
        %p410 = pneg %p129
        %p411 = pneg %p153
        %p412 = pneg %p150
        %p413 = pneg %p174
        %p414 = pneg %p171
        %p415 = pneg %p195
        %p416 = pneg %p192
        %p417 = pneg %p216
        %p418 = pneg %p213
        %p419 = pneg %p237
        %p420 = pneg %p234
        %p421 = pneg %p258
        %p422 = pneg %p255
        %p423 = pneg %p279
        %p424 = pneg %p276
        %p425 = pneg %p300
        %p426 = pneg %p297
        %p427 = pneg %p326
        %p428 = pneg %p323
        %s429 = sand.u32 %s313, 1
        %s430 = scalar_lea.sflag [#allocation3], %s429
        %s431 = sand.u32 %s313, 1
        %s432 = smul.addr %s431, 32
        %s433 = scalar_lea.vmem [#allocation2], %s432
        %p434 = scmp.lt.s32.totalorder %s27, 1
        %s435 = scalar_select %p434, %s27, 1
        %s436 = smul.addr %s435, 2
        %s437 = smul.addr %s436, 8
        %s438 = scalar_lea.vmem %s0, %s437
        %v439 = vlaneseq
        %v440 = vand.u32 %v439, 127
        %vm441 = vcmp.lt.s32.totalorder %v440, 16
        %v442 = vsel %vm441, 1, 0
        %v443 = vcvt.s32.f32 %v442
        %v444 = vadd.s32 %v440, 1
        %vm445 = vcmp.ge.s32.totalorder %v444, 0
        %vm446 = vcmp.lt.s32.totalorder %v444, 16
        %vm447 = vmand %vm445, %vm446
        %v448 = vadd.s32 %v440, 3
        %vm449 = vcmp.ge.s32.totalorder %v448, 0
        %vm450 = vcmp.lt.s32.totalorder %v448, 16
        %vm451 = vmand %vm449, %vm450
        %v452 = vadd.s32 %v440, 9
        %vm453 = vcmp.ge.s32.totalorder %v452, 0
        %vm454 = vcmp.lt.s32.totalorder %v452, 16
        %vm455 = vmand %vm453, %vm454
        %v456 = vadd.s32 %v440, 4294967287
        %vm457 = vcmp.ge.s32.totalorder %v456, 0
        %vm458 = vcmp.lt.s32.totalorder %v456, 16
        %vm459 = vmand %vm457, %vm458
        %v460 = vadd.s32 %v440, 4294967293
        %vm461 = vcmp.ge.s32.totalorder %v460, 0
        %vm462 = vcmp.lt.s32.totalorder %v460, 16
        %vm463 = vmand %vm461, %vm462
        %v464 = vadd.s32 %v440, 4294967295
        %vm465 = vcmp.ge.s32.totalorder %v464, 0
        %vm466 = vcmp.lt.s32.totalorder %v464, 16
        %vm467 = vmand %vm465, %vm466
        %v468 = vld [vmem:[%s438] sm:$0xff]
        %v469 = vld [vmem:[%s438 + $0x8] sm:$0xff]
        %470 = vrot.lane.b32.xlu0 %v468, 1
        %v471 = vpop.permute.xlu0 %470
        %472 = vrot.lane.b32.xlu0 %v469, 1
        %v473 = vpop.permute.xlu0 %472
        %v474 = vsel %vm467, 1, 0
        %vm475 = vcmp.eq.s32.totalorder %v474, 1
        %v476 = vsel %vm475, %v471, 0.0
        %v477 = vsel %vm475, %v473, 0.0
        %478 = vrot.lane.b32.xlu0 %v468, 127
        %v479 = vpop.permute.xlu0 %478
        %480 = vrot.lane.b32.xlu0 %v469, 127
        %v481 = vpop.permute.xlu0 %480
        %v482 = vsel %vm447, 1, 0
        %vm483 = vcmp.eq.s32.totalorder %v482, 1
        %v484 = vsel %vm483, %v479, 0.0
        %v485 = vsel %vm483, %v481, 0.0
        %v486 = vld [vmem:[%s2] sm:$0xff]
        %v487 = vld [vmem:[%s2 + $0x8] sm:$0xff]
        %v488 = vld [vmem:[%s2 + $0x10] sm:$0xff]
        %v489 = vld [vmem:[%s2 + $0x18] sm:$0xff]
        %v490 = vld [vmem:[%s1] sm:$0xff]
        %v491 = vld [vmem:[%s1 + $0x8] sm:$0xff]
        %v492 = vld [vmem:[%s1 + $0x10] sm:$0xff]
        %v493 = vld [vmem:[%s1 + $0x18] sm:$0xff]
        %495 = vset.pattern.permute.xlu0 0
        %496 = vperm.xlu0 %495, %v486
        %v497 = vpop.permute.xlu0 %496
        %500 = vset.pattern.permute.xlu0 0
        %501 = vperm.xlu0 %500, %v487
        %v502 = vpop.permute.xlu0 %501
        %505 = vset.pattern.permute.xlu0 0
        %506 = vperm.xlu0 %505, %v488
        %v507 = vpop.permute.xlu0 %506
        %510 = vset.pattern.permute.xlu0 0
        %511 = vperm.xlu0 %510, %v489
        %v512 = vpop.permute.xlu0 %511
        %vm514 = vcmask 392192
        %v516 = vsel %vm514, %v490, 0
        %v519 = vsel %vm514, %v491, 0
        %v522 = vsel %vm514, %v492, 0
        %v525 = vsel %vm514, %v493, 0
        %527 = vmatpush.msra.mxu0 0.0
        %528 = vmatpush.msra.mxu0 0.0
        %529 = vmatpush.msra.mxu0 0.0
        %530 = vmatpush.msra.mxu0 0.0
        %531 = vmatpush.msra.mxu0 0.0
        %532 = vmatpush.msra.mxu0 0.0
        %533 = vmatpush.msra.mxu0 0.0
        %534 = vmatpush.msra.mxu0 0.0
        %535 = vmatpush.msra.mxu0 0.0
        %536 = vmatpush.msra.mxu0 0.0
        %537 = vmatpush.msra.mxu0 %v485
        %538 = vmatpush.msra.mxu0 %v484
        %539 = vmatpush.msra.mxu0 %v469
        %540 = vmatpush.msra.mxu0 %v468
        %541 = vmatpush.msra.mxu0 %v477
        %542 = vmatpush.msra.mxu0 %v476
        %543 = vmatmul.f32.gmra.mxu0 %v516
        %v544 = vpop.f32.mrf.mxu0
        %v545 = vadd.f32 %v497, %v544
        %546 = vmatmul.f32.gmra.mxu0 %v519
        %v547 = vpop.f32.mrf.mxu0
        %v548 = vadd.f32 %v502, %v547
        %549 = vmatmul.f32.gmra.mxu0 %v522
        %v550 = vpop.f32.mrf.mxu0
        %v551 = vadd.f32 %v507, %v550
        %552 = vmatmul.f32.gmra.mxu0 %v525
        %v553 = vpop.f32.mrf.mxu0
        %v554 = vadd.f32 %v512, %v553
        %555 = vdwg.mxu0
        %v556 = vld [vmem:[%s3] sm:$0xff]
        %v557 = vld [vmem:[%s3 + $0x8] sm:$0xff]
        %v558 = vld [vmem:[%s3 + $0x10] sm:$0xff]
        %v559 = vld [vmem:[%s3 + $0x18] sm:$0xff]
        %v560 = vld [vmem:[%s4] sm:$0xff]
        %v561 = vld [vmem:[%s4 + $0x8] sm:$0xff]
        %v562 = vld [vmem:[%s4 + $0x10] sm:$0xff]
        %v563 = vld [vmem:[%s4 + $0x18] sm:$0xff]
        %v564 = vadd.f32 %v545, %v548
        %v565 = vadd.f32 %v564, %v551
        %v566 = vadd.f32 %v565, %v554
        %v567 = vrot.slane %v566, 4
        %v568 = vadd.f32 %v566, %v567
        %v569 = vrot.slane %v568, 2
        %v570 = vadd.f32 %v568, %v569
        %v571 = vrot.slane %v570, 1
        %v572 = vadd.f32 %v570, %v571
        %v573 = vmul.f32 %v545, %v545
        %v574 = vmul.f32 %v548, %v548
        %v575 = vmul.f32 %v551, %v551
        %v576 = vmul.f32 %v554, %v554
        %v577 = vadd.f32 %v573, %v574
        %v578 = vadd.f32 %v577, %v575
        %v579 = vadd.f32 %v578, %v576
        %v580 = vrot.slane %v579, 4
        %v581 = vadd.f32 %v579, %v580
        %v582 = vrot.slane %v581, 2
        %v583 = vadd.f32 %v581, %v582
        %v584 = vrot.slane %v583, 1
        %v585 = vadd.f32 %v583, %v584
        %v586 = vmul.f32 %v572, %v443
        %vm587 = vcmask 1040384
        %v588 = vsel %vm587, %v586, 0.0
        %589 = vadd.xlane.f32.xlu0 %v588
        %v590 = vpop.xlane.xlu0 %589
        %v591 = vrot.slane %v590, 4
        %v592 = vadd.f32 %v590, %v591
        %v593 = vrot.slane %v592, 2
        %v594 = vadd.f32 %v592, %v593
        %v595 = vrot.slane %v594, 1
        %v596 = vadd.f32 %v594, %v595
        %s597 = vtos %v596
        %v598 = vmul.f32 %v585, %v443
        %v599 = vsel %vm587, %v598, 0.0
        %600 = vadd.xlane.f32.xlu0 %v599
        %v601 = vpop.xlane.xlu0 %600
        %v602 = vrot.slane %v601, 4
        %v603 = vadd.f32 %v601, %v602
        %v604 = vrot.slane %v603, 2
        %v605 = vadd.f32 %v603, %v604
        %v606 = vrot.slane %v605, 1
        %v607 = vadd.f32 %v605, %v606
        %s608 = vtos %v607
        %s609 = smul.f32 %s597, 0.001953125
        %s610 = smul.f32 %s608, 0.001953125
        %s611 = smul.f32 %s609, %s609
        %s612 = ssub.f32 %s610, %s611
        %s613 = smax.f32 %s612, 0.0
        %s614 = sadd.f32 %s613, 1e-05
        %v615 = vstv %s614
        %v616 = vrsqrt.pop %v615
        %v617 = vmul.f32 %v616, %v615
        %v618 = vmul.f32 %v617, %v616
        %v619 = vmul.f32 0.5, %v618
        %v620 = vsub.f32 1.5, %v619
        %v621 = vmul.f32 %v616, %v620
        %vm622 = vweird.f32 %v615
        %vm623 = vweird.f32 %v616
        %vm624 = vmor %vm622, %vm623
        %v625 = vsel %vm624, %v616, %v621
        %s626 = vtos %v625
        %v627 = vstv %s626
        %v628 = vmul.f32 %v556, %v627
        %v629 = vmul.f32 %v557, %v627
        %v630 = vmul.f32 %v558, %v627
        %v631 = vmul.f32 %v559, %v627
        %s632 = smul.f32 %s609, %s626
        %v633 = vstv %s632
        %v634 = vmul.f32 %v633, %v556
        %v635 = vmul.f32 %v633, %v557
        %v636 = vmul.f32 %v633, %v558
        %v637 = vmul.f32 %v633, %v559
        %v638 = vsub.f32 %v560, %v634
        %v639 = vsub.f32 %v561, %v635
        %v640 = vsub.f32 %v562, %v636
        %v641 = vsub.f32 %v563, %v637
        %643 = vset.pattern.permute.xlu0 0
        %644 = vperm.xlu0 %643, %v628
        %v645 = vpop.permute.xlu0 %644
        %648 = vset.pattern.permute.xlu0 0
        %649 = vperm.xlu0 %648, %v629
        %v650 = vpop.permute.xlu0 %649
        %653 = vset.pattern.permute.xlu0 0
        %654 = vperm.xlu0 %653, %v630
        %v655 = vpop.permute.xlu0 %654
        %658 = vset.pattern.permute.xlu0 0
        %659 = vperm.xlu0 %658, %v631
        %v660 = vpop.permute.xlu0 %659
        %v662 = vmul.f32 %v545, %v645
        %v663 = vmul.f32 %v548, %v650
        %v664 = vmul.f32 %v551, %v655
        %v665 = vmul.f32 %v554, %v660
        %667 = vset.pattern.permute.xlu0 0
        %668 = vperm.xlu0 %667, %v638
        %v669 = vpop.permute.xlu0 %668
        %672 = vset.pattern.permute.xlu0 0
        %673 = vperm.xlu0 %672, %v639
        %v674 = vpop.permute.xlu0 %673
        %677 = vset.pattern.permute.xlu0 0
        %678 = vperm.xlu0 %677, %v640
        %v679 = vpop.permute.xlu0 %678
        %682 = vset.pattern.permute.xlu0 0
        %683 = vperm.xlu0 %682, %v641
        %v684 = vpop.permute.xlu0 %683
        %v686 = vadd.f32 %v662, %v669
        %v687 = vadd.f32 %v663, %v674
        %v688 = vadd.f32 %v664, %v679
        %v689 = vadd.f32 %v665, %v684
        %v690 = vmax.f32 %v686, 0.0
        %v691 = vmax.f32 %v687, 0.0
        %v692 = vmax.f32 %v688, 0.0
        %v693 = vmax.f32 %v689, 0.0
        %694 = vrot.lane.b32.xlu0 %v690, 1
        %v695 = vpop.permute.xlu0 %694
        %696 = vrot.lane.b32.xlu0 %v691, 1
        %v697 = vpop.permute.xlu0 %696
        %698 = vrot.lane.b32.xlu0 %v692, 1
        %v699 = vpop.permute.xlu0 %698
        %700 = vrot.lane.b32.xlu0 %v693, 1
        %v701 = vpop.permute.xlu0 %700
        %v702 = vsel %vm475, %v695, 0.0
        %v703 = vsel %vm475, %v697, 0.0
        %v704 = vsel %vm475, %v699, 0.0
        %v705 = vsel %vm475, %v701, 0.0
        %706 = vrot.lane.b32.xlu0 %v690, 127
        %v707 = vpop.permute.xlu0 %706
        %708 = vrot.lane.b32.xlu0 %v691, 127
        %v709 = vpop.permute.xlu0 %708
        %710 = vrot.lane.b32.xlu0 %v692, 127
        %v711 = vpop.permute.xlu0 %710
        %712 = vrot.lane.b32.xlu0 %v693, 127
        %v713 = vpop.permute.xlu0 %712
        %v714 = vsel %vm483, %v707, 0.0
        %v715 = vsel %vm483, %v709, 0.0
        %v716 = vsel %vm483, %v711, 0.0
        %v717 = vsel %vm483, %v713, 0.0
        %v718 = vld [vmem:[%s6] sm:$0xff]
        %v719 = vld [vmem:[%s6 + $0x8] sm:$0xff]
        %v720 = vld [vmem:[%s6 + $0x10] sm:$0xff]
        %v721 = vld [vmem:[%s6 + $0x18] sm:$0xff]
        %v722 = vld [vmem:[%s5] sm:$0xff]
        %v723 = vld [vmem:[%s5 + $0x8] sm:$0xff]
        %v724 = vld [vmem:[%s5 + $0x10] sm:$0xff]
        %v725 = vld [vmem:[%s5 + $0x18] sm:$0xff]
        %727 = vset.pattern.permute.xlu0 0
        %728 = vperm.xlu0 %727, %v718
        %v729 = vpop.permute.xlu0 %728
        %732 = vset.pattern.permute.xlu0 0
        %733 = vperm.xlu0 %732, %v719
        %v734 = vpop.permute.xlu0 %733
        %737 = vset.pattern.permute.xlu0 0
        %738 = vperm.xlu0 %737, %v720
        %v739 = vpop.permute.xlu0 %738
        %742 = vset.pattern.permute.xlu0 0
        %743 = vperm.xlu0 %742, %v721
        %v744 = vpop.permute.xlu0 %743
        %vm746 = vcmask 785408
        %v748 = vsel %vm746, %v722, 0
        %v751 = vsel %vm746, %v723, 0
        %v754 = vsel %vm746, %v724, 0
        %v757 = vsel %vm746, %v725, 0
        %759 = vmatpush.msra.mxu0 0.0
        %760 = vmatpush.msra.mxu0 0.0
        %761 = vmatpush.msra.mxu0 0.0
        %762 = vmatpush.msra.mxu0 0.0
        %763 = vmatpush.msra.mxu0 %v717
        %764 = vmatpush.msra.mxu0 %v716
        %765 = vmatpush.msra.mxu0 %v715
        %766 = vmatpush.msra.mxu0 %v714
        %767 = vmatpush.msra.mxu0 %v693
        %768 = vmatpush.msra.mxu0 %v692
        %769 = vmatpush.msra.mxu0 %v691
        %770 = vmatpush.msra.mxu0 %v690
        %771 = vmatpush.msra.mxu0 %v705
        %772 = vmatpush.msra.mxu0 %v704
        %773 = vmatpush.msra.mxu0 %v703
        %774 = vmatpush.msra.mxu0 %v702
        %775 = vmatmul.f32.gmra.mxu0 %v748
        %v776 = vpop.f32.mrf.mxu0
        %v777 = vadd.f32 %v729, %v776
        %778 = vmatmul.f32.gmra.mxu0 %v751
        %v779 = vpop.f32.mrf.mxu0
        %v780 = vadd.f32 %v734, %v779
        %781 = vmatmul.f32.gmra.mxu0 %v754
        %v782 = vpop.f32.mrf.mxu0
        %v783 = vadd.f32 %v739, %v782
        %784 = vmatmul.f32.gmra.mxu0 %v757
        %v785 = vpop.f32.mrf.mxu0
        %v786 = vadd.f32 %v744, %v785
        %787 = vdwg.mxu0
        %v788 = vld [vmem:[%s7] sm:$0xff]
        %v789 = vld [vmem:[%s7 + $0x8] sm:$0xff]
        %v790 = vld [vmem:[%s7 + $0x10] sm:$0xff]
        %v791 = vld [vmem:[%s7 + $0x18] sm:$0xff]
        %v792 = vld [vmem:[%s8] sm:$0xff]
        %v793 = vld [vmem:[%s8 + $0x8] sm:$0xff]
        %v794 = vld [vmem:[%s8 + $0x10] sm:$0xff]
        %v795 = vld [vmem:[%s8 + $0x18] sm:$0xff]
        %v796 = vadd.f32 %v777, %v780
        %v797 = vadd.f32 %v796, %v783
        %v798 = vadd.f32 %v797, %v786
        %v799 = vrot.slane %v798, 4
        %v800 = vadd.f32 %v798, %v799
        %v801 = vrot.slane %v800, 2
        %v802 = vadd.f32 %v800, %v801
        %v803 = vrot.slane %v802, 1
        %v804 = vadd.f32 %v802, %v803
        %v805 = vmul.f32 %v777, %v777
        %v806 = vmul.f32 %v780, %v780
        %v807 = vmul.f32 %v783, %v783
        %v808 = vmul.f32 %v786, %v786
        %v809 = vadd.f32 %v805, %v806
        %v810 = vadd.f32 %v809, %v807
        %v811 = vadd.f32 %v810, %v808
        %v812 = vrot.slane %v811, 4
        %v813 = vadd.f32 %v811, %v812
        %v814 = vrot.slane %v813, 2
        %v815 = vadd.f32 %v813, %v814
        %v816 = vrot.slane %v815, 1
        %v817 = vadd.f32 %v815, %v816
        %v818 = vmul.f32 %v804, %v443
        %v819 = vsel %vm587, %v818, 0.0
        %820 = vadd.xlane.f32.xlu0 %v819
        %v821 = vpop.xlane.xlu0 %820
        %v822 = vrot.slane %v821, 4
        %v823 = vadd.f32 %v821, %v822
        %v824 = vrot.slane %v823, 2
        %v825 = vadd.f32 %v823, %v824
        %v826 = vrot.slane %v825, 1
        %v827 = vadd.f32 %v825, %v826
        %s828 = vtos %v827
        %v829 = vmul.f32 %v817, %v443
        %v830 = vsel %vm587, %v829, 0.0
        %831 = vadd.xlane.f32.xlu0 %v830
        %v832 = vpop.xlane.xlu0 %831
        %v833 = vrot.slane %v832, 4
        %v834 = vadd.f32 %v832, %v833
        %v835 = vrot.slane %v834, 2
        %v836 = vadd.f32 %v834, %v835
        %v837 = vrot.slane %v836, 1
        %v838 = vadd.f32 %v836, %v837
        %s839 = vtos %v838
        %s840 = smul.f32 %s828, 0.001953125
        %s841 = smul.f32 %s839, 0.001953125
        %s842 = smul.f32 %s840, %s840
        %s843 = ssub.f32 %s841, %s842
        %s844 = smax.f32 %s843, 0.0
        %s845 = sadd.f32 %s844, 1e-05
        %v846 = vstv %s845
        %v847 = vrsqrt.pop %v846
        %v848 = vmul.f32 %v847, %v846
        %v849 = vmul.f32 %v848, %v847
        %v850 = vmul.f32 0.5, %v849
        %v851 = vsub.f32 1.5, %v850
        %v852 = vmul.f32 %v847, %v851
        %vm853 = vweird.f32 %v846
        %vm854 = vweird.f32 %v847
        %vm855 = vmor %vm853, %vm854
        %v856 = vsel %vm855, %v847, %v852
        %s857 = vtos %v856
        %v858 = vstv %s857
        %v859 = vmul.f32 %v788, %v858
        %v860 = vmul.f32 %v789, %v858
        %v861 = vmul.f32 %v790, %v858
        %v862 = vmul.f32 %v791, %v858
        %s863 = smul.f32 %s840, %s857
        %v864 = vstv %s863
        %v865 = vmul.f32 %v864, %v788
        %v866 = vmul.f32 %v864, %v789
        %v867 = vmul.f32 %v864, %v790
        %v868 = vmul.f32 %v864, %v791
        %v869 = vsub.f32 %v792, %v865
        %v870 = vsub.f32 %v793, %v866
        %v871 = vsub.f32 %v794, %v867
        %v872 = vsub.f32 %v795, %v868
        %874 = vset.pattern.permute.xlu0 0
        %875 = vperm.xlu0 %874, %v859
        %v876 = vpop.permute.xlu0 %875
        %879 = vset.pattern.permute.xlu0 0
        %880 = vperm.xlu0 %879, %v860
        %v881 = vpop.permute.xlu0 %880
        %884 = vset.pattern.permute.xlu0 0
        %885 = vperm.xlu0 %884, %v861
        %v886 = vpop.permute.xlu0 %885
        %889 = vset.pattern.permute.xlu0 0
        %890 = vperm.xlu0 %889, %v862
        %v891 = vpop.permute.xlu0 %890
        %v893 = vmul.f32 %v777, %v876
        %v894 = vmul.f32 %v780, %v881
        %v895 = vmul.f32 %v783, %v886
        %v896 = vmul.f32 %v786, %v891
        %898 = vset.pattern.permute.xlu0 0
        %899 = vperm.xlu0 %898, %v869
        %v900 = vpop.permute.xlu0 %899
        %903 = vset.pattern.permute.xlu0 0
        %904 = vperm.xlu0 %903, %v870
        %v905 = vpop.permute.xlu0 %904
        %908 = vset.pattern.permute.xlu0 0
        %909 = vperm.xlu0 %908, %v871
        %v910 = vpop.permute.xlu0 %909
        %913 = vset.pattern.permute.xlu0 0
        %914 = vperm.xlu0 %913, %v872
        %v915 = vpop.permute.xlu0 %914
        %v917 = vadd.f32 %v893, %v900
        %v918 = vadd.f32 %v894, %v905
        %v919 = vadd.f32 %v895, %v910
        %v920 = vadd.f32 %v896, %v915
        %v921 = vmax.f32 %v917, 0.0
        %v922 = vmax.f32 %v918, 0.0
        %v923 = vmax.f32 %v919, 0.0
        %v924 = vmax.f32 %v920, 0.0
        %925 = vrot.lane.b32.xlu0 %v921, 1
        %v926 = vpop.permute.xlu0 %925
        %927 = vrot.lane.b32.xlu0 %v922, 1
        %v928 = vpop.permute.xlu0 %927
        %929 = vrot.lane.b32.xlu0 %v923, 1
        %v930 = vpop.permute.xlu0 %929
        %931 = vrot.lane.b32.xlu0 %v924, 1
        %v932 = vpop.permute.xlu0 %931
        %v933 = vsel %vm475, %v926, 0.0
        %v934 = vsel %vm475, %v928, 0.0
        %v935 = vsel %vm475, %v930, 0.0
        %v936 = vsel %vm475, %v932, 0.0
        %937 = vrot.lane.b32.xlu0 %v921, 127
        %v938 = vpop.permute.xlu0 %937
        %939 = vrot.lane.b32.xlu0 %v922, 127
        %v940 = vpop.permute.xlu0 %939
        %941 = vrot.lane.b32.xlu0 %v923, 127
        %v942 = vpop.permute.xlu0 %941
        %943 = vrot.lane.b32.xlu0 %v924, 127
        %v944 = vpop.permute.xlu0 %943
        %v945 = vsel %vm483, %v938, 0.0
        %v946 = vsel %vm483, %v940, 0.0
        %v947 = vsel %vm483, %v942, 0.0
        %v948 = vsel %vm483, %v944, 0.0
        %v949 = vld [vmem:[%s10] sm:$0xff]
        %v950 = vld [vmem:[%s10 + $0x8] sm:$0xff]
        %v951 = vld [vmem:[%s10 + $0x10] sm:$0xff]
        %v952 = vld [vmem:[%s10 + $0x18] sm:$0xff]
        %v953 = vld [vmem:[%s9] sm:$0xff]
        %v954 = vld [vmem:[%s9 + $0x8] sm:$0xff]
        %v955 = vld [vmem:[%s9 + $0x10] sm:$0xff]
        %v956 = vld [vmem:[%s9 + $0x18] sm:$0xff]
        %958 = vset.pattern.permute.xlu0 0
        %959 = vperm.xlu0 %958, %v949
        %v960 = vpop.permute.xlu0 %959
        %963 = vset.pattern.permute.xlu0 0
        %964 = vperm.xlu0 %963, %v950
        %v965 = vpop.permute.xlu0 %964
        %968 = vset.pattern.permute.xlu0 0
        %969 = vperm.xlu0 %968, %v951
        %v970 = vpop.permute.xlu0 %969
        %973 = vset.pattern.permute.xlu0 0
        %974 = vperm.xlu0 %973, %v952
        %v975 = vpop.permute.xlu0 %974
        %v978 = vsel %vm746, %v953, 0
        %v981 = vsel %vm746, %v954, 0
        %v984 = vsel %vm746, %v955, 0
        %v987 = vsel %vm746, %v956, 0
        %989 = vmatpush.msra.mxu0 0.0
        %990 = vmatpush.msra.mxu0 0.0
        %991 = vmatpush.msra.mxu0 0.0
        %992 = vmatpush.msra.mxu0 0.0
        %993 = vmatpush.msra.mxu0 %v948
        %994 = vmatpush.msra.mxu0 %v947
        %995 = vmatpush.msra.mxu0 %v946
        %996 = vmatpush.msra.mxu0 %v945
        %997 = vmatpush.msra.mxu0 %v924
        %998 = vmatpush.msra.mxu0 %v923
        %999 = vmatpush.msra.mxu0 %v922
        %1000 = vmatpush.msra.mxu0 %v921
        %1001 = vmatpush.msra.mxu0 %v936
        %1002 = vmatpush.msra.mxu0 %v935
        %1003 = vmatpush.msra.mxu0 %v934
        %1004 = vmatpush.msra.mxu0 %v933
        %1005 = vmatmul.f32.gmra.mxu0 %v978
        %v1006 = vpop.f32.mrf.mxu0
        %v1007 = vadd.f32 %v960, %v1006
        %1008 = vmatmul.f32.gmra.mxu0 %v981
        %v1009 = vpop.f32.mrf.mxu0
        %v1010 = vadd.f32 %v965, %v1009
        %1011 = vmatmul.f32.gmra.mxu0 %v984
        %v1012 = vpop.f32.mrf.mxu0
        %v1013 = vadd.f32 %v970, %v1012
        %1014 = vmatmul.f32.gmra.mxu0 %v987
        %v1015 = vpop.f32.mrf.mxu0
        %v1016 = vadd.f32 %v975, %v1015
        %1017 = vdwg.mxu0
        %v1018 = vld [vmem:[%s11] sm:$0xff]
        %v1019 = vld [vmem:[%s11 + $0x8] sm:$0xff]
        %v1020 = vld [vmem:[%s11 + $0x10] sm:$0xff]
        %v1021 = vld [vmem:[%s11 + $0x18] sm:$0xff]
        %v1022 = vld [vmem:[%s12] sm:$0xff]
        %v1023 = vld [vmem:[%s12 + $0x8] sm:$0xff]
        %v1024 = vld [vmem:[%s12 + $0x10] sm:$0xff]
        %v1025 = vld [vmem:[%s12 + $0x18] sm:$0xff]
        %v1026 = vadd.f32 %v1007, %v1010
        %v1027 = vadd.f32 %v1026, %v1013
        %v1028 = vadd.f32 %v1027, %v1016
        %v1029 = vrot.slane %v1028, 4
        %v1030 = vadd.f32 %v1028, %v1029
        %v1031 = vrot.slane %v1030, 2
        %v1032 = vadd.f32 %v1030, %v1031
        %v1033 = vrot.slane %v1032, 1
        %v1034 = vadd.f32 %v1032, %v1033
        %v1035 = vmul.f32 %v1007, %v1007
        %v1036 = vmul.f32 %v1010, %v1010
        %v1037 = vmul.f32 %v1013, %v1013
        %v1038 = vmul.f32 %v1016, %v1016
        %v1039 = vadd.f32 %v1035, %v1036
        %v1040 = vadd.f32 %v1039, %v1037
        %v1041 = vadd.f32 %v1040, %v1038
        %v1042 = vrot.slane %v1041, 4
        %v1043 = vadd.f32 %v1041, %v1042
        %v1044 = vrot.slane %v1043, 2
        %v1045 = vadd.f32 %v1043, %v1044
        %v1046 = vrot.slane %v1045, 1
        %v1047 = vadd.f32 %v1045, %v1046
        %v1048 = vmul.f32 %v1034, %v443
        %v1049 = vsel %vm587, %v1048, 0.0
        %1050 = vadd.xlane.f32.xlu0 %v1049
        %v1051 = vpop.xlane.xlu0 %1050
        %v1052 = vrot.slane %v1051, 4
        %v1053 = vadd.f32 %v1051, %v1052
        %v1054 = vrot.slane %v1053, 2
        %v1055 = vadd.f32 %v1053, %v1054
        %v1056 = vrot.slane %v1055, 1
        %v1057 = vadd.f32 %v1055, %v1056
        %s1058 = vtos %v1057
        %v1059 = vmul.f32 %v1047, %v443
        %v1060 = vsel %vm587, %v1059, 0.0
        %1061 = vadd.xlane.f32.xlu0 %v1060
        %v1062 = vpop.xlane.xlu0 %1061
        %v1063 = vrot.slane %v1062, 4
        %v1064 = vadd.f32 %v1062, %v1063
        %v1065 = vrot.slane %v1064, 2
        %v1066 = vadd.f32 %v1064, %v1065
        %v1067 = vrot.slane %v1066, 1
        %v1068 = vadd.f32 %v1066, %v1067
        %s1069 = vtos %v1068
        %s1070 = smul.f32 %s1058, 0.001953125
        %s1071 = smul.f32 %s1069, 0.001953125
        %s1072 = smul.f32 %s1070, %s1070
        %s1073 = ssub.f32 %s1071, %s1072
        %s1074 = smax.f32 %s1073, 0.0
        %s1075 = sadd.f32 %s1074, 1e-05
        %v1076 = vstv %s1075
        %v1077 = vrsqrt.pop %v1076
        %v1078 = vmul.f32 %v1077, %v1076
        %v1079 = vmul.f32 %v1078, %v1077
        %v1080 = vmul.f32 0.5, %v1079
        %v1081 = vsub.f32 1.5, %v1080
        %v1082 = vmul.f32 %v1077, %v1081
        %vm1083 = vweird.f32 %v1076
        %vm1084 = vweird.f32 %v1077
        %vm1085 = vmor %vm1083, %vm1084
        %v1086 = vsel %vm1085, %v1077, %v1082
        %s1087 = vtos %v1086
        %v1088 = vstv %s1087
        %v1089 = vmul.f32 %v1018, %v1088
        %v1090 = vmul.f32 %v1019, %v1088
        %v1091 = vmul.f32 %v1020, %v1088
        %v1092 = vmul.f32 %v1021, %v1088
        %s1093 = smul.f32 %s1070, %s1087
        %v1094 = vstv %s1093
        %v1095 = vmul.f32 %v1094, %v1018
        %v1096 = vmul.f32 %v1094, %v1019
        %v1097 = vmul.f32 %v1094, %v1020
        %v1098 = vmul.f32 %v1094, %v1021
        %v1099 = vsub.f32 %v1022, %v1095
        %v1100 = vsub.f32 %v1023, %v1096
        %v1101 = vsub.f32 %v1024, %v1097
        %v1102 = vsub.f32 %v1025, %v1098
        %1104 = vset.pattern.permute.xlu0 0
        %1105 = vperm.xlu0 %1104, %v1089
        %v1106 = vpop.permute.xlu0 %1105
        %1109 = vset.pattern.permute.xlu0 0
        %1110 = vperm.xlu0 %1109, %v1090
        %v1111 = vpop.permute.xlu0 %1110
        %1114 = vset.pattern.permute.xlu0 0
        %1115 = vperm.xlu0 %1114, %v1091
        %v1116 = vpop.permute.xlu0 %1115
        %1119 = vset.pattern.permute.xlu0 0
        %1120 = vperm.xlu0 %1119, %v1092
        %v1121 = vpop.permute.xlu0 %1120
        %v1123 = vmul.f32 %v1007, %v1106
        %v1124 = vmul.f32 %v1010, %v1111
        %v1125 = vmul.f32 %v1013, %v1116
        %v1126 = vmul.f32 %v1016, %v1121
        %1128 = vset.pattern.permute.xlu0 0
        %1129 = vperm.xlu0 %1128, %v1099
        %v1130 = vpop.permute.xlu0 %1129
        %1133 = vset.pattern.permute.xlu0 0
        %1134 = vperm.xlu0 %1133, %v1100
        %v1135 = vpop.permute.xlu0 %1134
        %1138 = vset.pattern.permute.xlu0 0
        %1139 = vperm.xlu0 %1138, %v1101
        %v1140 = vpop.permute.xlu0 %1139
        %1143 = vset.pattern.permute.xlu0 0
        %1144 = vperm.xlu0 %1143, %v1102
        %v1145 = vpop.permute.xlu0 %1144
        %v1147 = vadd.f32 %v1123, %v1130
        %v1148 = vadd.f32 %v1124, %v1135
        %v1149 = vadd.f32 %v1125, %v1140
        %v1150 = vadd.f32 %v1126, %v1145
        %v1151 = vadd.f32 %v1147, %v690
        %v1152 = vadd.f32 %v1148, %v691
        %v1153 = vadd.f32 %v1149, %v692
        %v1154 = vadd.f32 %v1150, %v693
        %v1155 = vmax.f32 %v1151, 0.0
        %v1156 = vmax.f32 %v1152, 0.0
        %v1157 = vmax.f32 %v1153, 0.0
        %v1158 = vmax.f32 %v1154, 0.0
        %1159 = vrot.lane.b32.xlu0 %v1155, 3
        %v1160 = vpop.permute.xlu0 %1159
        %1161 = vrot.lane.b32.xlu0 %v1156, 3
        %v1162 = vpop.permute.xlu0 %1161
        %1163 = vrot.lane.b32.xlu0 %v1157, 3
        %v1164 = vpop.permute.xlu0 %1163
        %1165 = vrot.lane.b32.xlu0 %v1158, 3
        %v1166 = vpop.permute.xlu0 %1165
        %v1167 = vsel %vm463, 1, 0
        %vm1168 = vcmp.eq.s32.totalorder %v1167, 1
        %v1169 = vsel %vm1168, %v1160, 0.0
        %v1170 = vsel %vm1168, %v1162, 0.0
        %v1171 = vsel %vm1168, %v1164, 0.0
        %v1172 = vsel %vm1168, %v1166, 0.0
        %1173 = vrot.lane.b32.xlu0 %v1155, 125
        %v1174 = vpop.permute.xlu0 %1173
        %1175 = vrot.lane.b32.xlu0 %v1156, 125
        %v1176 = vpop.permute.xlu0 %1175
        %1177 = vrot.lane.b32.xlu0 %v1157, 125
        %v1178 = vpop.permute.xlu0 %1177
        %1179 = vrot.lane.b32.xlu0 %v1158, 125
        %v1180 = vpop.permute.xlu0 %1179
        %v1181 = vsel %vm451, 1, 0
        %vm1182 = vcmp.eq.s32.totalorder %v1181, 1
        %v1183 = vsel %vm1182, %v1174, 0.0
        %v1184 = vsel %vm1182, %v1176, 0.0
        %v1185 = vsel %vm1182, %v1178, 0.0
        %v1186 = vsel %vm1182, %v1180, 0.0
        %s1187 = scalar_lea.vmem %s6, 32
        %v1188 = vld [vmem:[%s1187] sm:$0xff]
        %v1189 = vld [vmem:[%s1187 + $0x8] sm:$0xff]
        %v1190 = vld [vmem:[%s1187 + $0x10] sm:$0xff]
        %v1191 = vld [vmem:[%s1187 + $0x18] sm:$0xff]
        %s1192 = scalar_lea.vmem %s5, 32
        %v1193 = vld [vmem:[%s1192] sm:$0xff]
        %v1194 = vld [vmem:[%s1192 + $0x8] sm:$0xff]
        %v1195 = vld [vmem:[%s1192 + $0x10] sm:$0xff]
        %v1196 = vld [vmem:[%s1192 + $0x18] sm:$0xff]
        %1198 = vset.pattern.permute.xlu0 0
        %1199 = vperm.xlu0 %1198, %v1188
        %v1200 = vpop.permute.xlu0 %1199
        %1203 = vset.pattern.permute.xlu0 0
        %1204 = vperm.xlu0 %1203, %v1189
        %v1205 = vpop.permute.xlu0 %1204
        %1208 = vset.pattern.permute.xlu0 0
        %1209 = vperm.xlu0 %1208, %v1190
        %v1210 = vpop.permute.xlu0 %1209
        %1213 = vset.pattern.permute.xlu0 0
        %1214 = vperm.xlu0 %1213, %v1191
        %v1215 = vpop.permute.xlu0 %1214
        %v1218 = vsel %vm746, %v1193, 0
        %v1221 = vsel %vm746, %v1194, 0
        %v1224 = vsel %vm746, %v1195, 0
        %v1227 = vsel %vm746, %v1196, 0
        %1229 = vmatpush.msra.mxu0 0.0
        %1230 = vmatpush.msra.mxu0 0.0
        %1231 = vmatpush.msra.mxu0 0.0
        %1232 = vmatpush.msra.mxu0 0.0
        %1233 = vmatpush.msra.mxu0 %v1186
        %1234 = vmatpush.msra.mxu0 %v1185
        %1235 = vmatpush.msra.mxu0 %v1184
        %1236 = vmatpush.msra.mxu0 %v1183
        %1237 = vmatpush.msra.mxu0 %v1158
        %1238 = vmatpush.msra.mxu0 %v1157
        %1239 = vmatpush.msra.mxu0 %v1156
        %1240 = vmatpush.msra.mxu0 %v1155
        %1241 = vmatpush.msra.mxu0 %v1172
        %1242 = vmatpush.msra.mxu0 %v1171
        %1243 = vmatpush.msra.mxu0 %v1170
        %1244 = vmatpush.msra.mxu0 %v1169
        %1245 = vmatmul.f32.gmra.mxu0 %v1218
        %v1246 = vpop.f32.mrf.mxu0
        %v1247 = vadd.f32 %v1200, %v1246
        %1248 = vmatmul.f32.gmra.mxu0 %v1221
        %v1249 = vpop.f32.mrf.mxu0
        %v1250 = vadd.f32 %v1205, %v1249
        %1251 = vmatmul.f32.gmra.mxu0 %v1224
        %v1252 = vpop.f32.mrf.mxu0
        %v1253 = vadd.f32 %v1210, %v1252
        %1254 = vmatmul.f32.gmra.mxu0 %v1227
        %v1255 = vpop.f32.mrf.mxu0
        %v1256 = vadd.f32 %v1215, %v1255
        %1257 = vdwg.mxu0
        %s1258 = scalar_lea.vmem %s7, 32
        %v1259 = vld [vmem:[%s1258] sm:$0xff]
        %v1260 = vld [vmem:[%s1258 + $0x8] sm:$0xff]
        %v1261 = vld [vmem:[%s1258 + $0x10] sm:$0xff]
        %v1262 = vld [vmem:[%s1258 + $0x18] sm:$0xff]
        %s1263 = scalar_lea.vmem %s8, 32
        %v1264 = vld [vmem:[%s1263] sm:$0xff]
        %v1265 = vld [vmem:[%s1263 + $0x8] sm:$0xff]
        %v1266 = vld [vmem:[%s1263 + $0x10] sm:$0xff]
        %v1267 = vld [vmem:[%s1263 + $0x18] sm:$0xff]
        %v1268 = vadd.f32 %v1247, %v1250
        %v1269 = vadd.f32 %v1268, %v1253
        %v1270 = vadd.f32 %v1269, %v1256
        %v1271 = vrot.slane %v1270, 4
        %v1272 = vadd.f32 %v1270, %v1271
        %v1273 = vrot.slane %v1272, 2
        %v1274 = vadd.f32 %v1272, %v1273
        %v1275 = vrot.slane %v1274, 1
        %v1276 = vadd.f32 %v1274, %v1275
        %v1277 = vmul.f32 %v1247, %v1247
        %v1278 = vmul.f32 %v1250, %v1250
        %v1279 = vmul.f32 %v1253, %v1253
        %v1280 = vmul.f32 %v1256, %v1256
        %v1281 = vadd.f32 %v1277, %v1278
        %v1282 = vadd.f32 %v1281, %v1279
        %v1283 = vadd.f32 %v1282, %v1280
        %v1284 = vrot.slane %v1283, 4
        %v1285 = vadd.f32 %v1283, %v1284
        %v1286 = vrot.slane %v1285, 2
        %v1287 = vadd.f32 %v1285, %v1286
        %v1288 = vrot.slane %v1287, 1
        %v1289 = vadd.f32 %v1287, %v1288
        %v1290 = vmul.f32 %v1276, %v443
        %v1291 = vsel %vm587, %v1290, 0.0
        %1292 = vadd.xlane.f32.xlu0 %v1291
        %v1293 = vpop.xlane.xlu0 %1292
        %v1294 = vrot.slane %v1293, 4
        %v1295 = vadd.f32 %v1293, %v1294
        %v1296 = vrot.slane %v1295, 2
        %v1297 = vadd.f32 %v1295, %v1296
        %v1298 = vrot.slane %v1297, 1
        %v1299 = vadd.f32 %v1297, %v1298
        %s1300 = vtos %v1299
        %v1301 = vmul.f32 %v1289, %v443
        %v1302 = vsel %vm587, %v1301, 0.0
        %1303 = vadd.xlane.f32.xlu0 %v1302
        %v1304 = vpop.xlane.xlu0 %1303
        %v1305 = vrot.slane %v1304, 4
        %v1306 = vadd.f32 %v1304, %v1305
        %v1307 = vrot.slane %v1306, 2
        %v1308 = vadd.f32 %v1306, %v1307
        %v1309 = vrot.slane %v1308, 1
        %v1310 = vadd.f32 %v1308, %v1309
        %s1311 = vtos %v1310
        %s1312 = smul.f32 %s1300, 0.001953125
        %s1313 = smul.f32 %s1311, 0.001953125
        %s1314 = smul.f32 %s1312, %s1312
        %s1315 = ssub.f32 %s1313, %s1314
        %s1316 = smax.f32 %s1315, 0.0
        %s1317 = sadd.f32 %s1316, 1e-05
        %v1318 = vstv %s1317
        %v1319 = vrsqrt.pop %v1318
        %v1320 = vmul.f32 %v1319, %v1318
        %v1321 = vmul.f32 %v1320, %v1319
        %v1322 = vmul.f32 0.5, %v1321
        %v1323 = vsub.f32 1.5, %v1322
        %v1324 = vmul.f32 %v1319, %v1323
        %vm1325 = vweird.f32 %v1318
        %vm1326 = vweird.f32 %v1319
        %vm1327 = vmor %vm1325, %vm1326
        %v1328 = vsel %vm1327, %v1319, %v1324
        %s1329 = vtos %v1328
        %v1330 = vstv %s1329
        %v1331 = vmul.f32 %v1259, %v1330
        %v1332 = vmul.f32 %v1260, %v1330
        %v1333 = vmul.f32 %v1261, %v1330
        %v1334 = vmul.f32 %v1262, %v1330
        %s1335 = smul.f32 %s1312, %s1329
        %v1336 = vstv %s1335
        %v1337 = vmul.f32 %v1336, %v1259
        %v1338 = vmul.f32 %v1336, %v1260
        %v1339 = vmul.f32 %v1336, %v1261
        %v1340 = vmul.f32 %v1336, %v1262
        %v1341 = vsub.f32 %v1264, %v1337
        %v1342 = vsub.f32 %v1265, %v1338
        %v1343 = vsub.f32 %v1266, %v1339
        %v1344 = vsub.f32 %v1267, %v1340
        %1346 = vset.pattern.permute.xlu0 0
        %1347 = vperm.xlu0 %1346, %v1331
        %v1348 = vpop.permute.xlu0 %1347
        %1351 = vset.pattern.permute.xlu0 0
        %1352 = vperm.xlu0 %1351, %v1332
        %v1353 = vpop.permute.xlu0 %1352
        %1356 = vset.pattern.permute.xlu0 0
        %1357 = vperm.xlu0 %1356, %v1333
        %v1358 = vpop.permute.xlu0 %1357
        %1361 = vset.pattern.permute.xlu0 0
        %1362 = vperm.xlu0 %1361, %v1334
        %v1363 = vpop.permute.xlu0 %1362
        %v1365 = vmul.f32 %v1247, %v1348
        %v1366 = vmul.f32 %v1250, %v1353
        %v1367 = vmul.f32 %v1253, %v1358
        %v1368 = vmul.f32 %v1256, %v1363
        %1370 = vset.pattern.permute.xlu0 0
        %1371 = vperm.xlu0 %1370, %v1341
        %v1372 = vpop.permute.xlu0 %1371
        %1375 = vset.pattern.permute.xlu0 0
        %1376 = vperm.xlu0 %1375, %v1342
        %v1377 = vpop.permute.xlu0 %1376
        %1380 = vset.pattern.permute.xlu0 0
        %1381 = vperm.xlu0 %1380, %v1343
        %v1382 = vpop.permute.xlu0 %1381
        %1385 = vset.pattern.permute.xlu0 0
        %1386 = vperm.xlu0 %1385, %v1344
        %v1387 = vpop.permute.xlu0 %1386
        %v1389 = vadd.f32 %v1365, %v1372
        %v1390 = vadd.f32 %v1366, %v1377
        %v1391 = vadd.f32 %v1367, %v1382
        %v1392 = vadd.f32 %v1368, %v1387
        %v1393 = vmax.f32 %v1389, 0.0
        %v1394 = vmax.f32 %v1390, 0.0
        %v1395 = vmax.f32 %v1391, 0.0
        %v1396 = vmax.f32 %v1392, 0.0
        %1397 = vrot.lane.b32.xlu0 %v1393, 1
        %v1398 = vpop.permute.xlu0 %1397
        %1399 = vrot.lane.b32.xlu0 %v1394, 1
        %v1400 = vpop.permute.xlu0 %1399
        %1401 = vrot.lane.b32.xlu0 %v1395, 1
        %v1402 = vpop.permute.xlu0 %1401
        %1403 = vrot.lane.b32.xlu0 %v1396, 1
        %v1404 = vpop.permute.xlu0 %1403
        %v1405 = vsel %vm475, %v1398, 0.0
        %v1406 = vsel %vm475, %v1400, 0.0
        %v1407 = vsel %vm475, %v1402, 0.0
        %v1408 = vsel %vm475, %v1404, 0.0
        %1409 = vrot.lane.b32.xlu0 %v1393, 127
        %v1410 = vpop.permute.xlu0 %1409
        %1411 = vrot.lane.b32.xlu0 %v1394, 127
        %v1412 = vpop.permute.xlu0 %1411
        %1413 = vrot.lane.b32.xlu0 %v1395, 127
        %v1414 = vpop.permute.xlu0 %1413
        %1415 = vrot.lane.b32.xlu0 %v1396, 127
        %v1416 = vpop.permute.xlu0 %1415
        %v1417 = vsel %vm483, %v1410, 0.0
        %v1418 = vsel %vm483, %v1412, 0.0
        %v1419 = vsel %vm483, %v1414, 0.0
        %v1420 = vsel %vm483, %v1416, 0.0
        %s1421 = scalar_lea.vmem %s10, 32
        %v1422 = vld [vmem:[%s1421] sm:$0xff]
        %v1423 = vld [vmem:[%s1421 + $0x8] sm:$0xff]
        %v1424 = vld [vmem:[%s1421 + $0x10] sm:$0xff]
        %v1425 = vld [vmem:[%s1421 + $0x18] sm:$0xff]
        %s1426 = scalar_lea.vmem %s9, 32
        %v1427 = vld [vmem:[%s1426] sm:$0xff]
        %v1428 = vld [vmem:[%s1426 + $0x8] sm:$0xff]
        %v1429 = vld [vmem:[%s1426 + $0x10] sm:$0xff]
        %v1430 = vld [vmem:[%s1426 + $0x18] sm:$0xff]
        %1432 = vset.pattern.permute.xlu0 0
        %1433 = vperm.xlu0 %1432, %v1422
        %v1434 = vpop.permute.xlu0 %1433
        %1437 = vset.pattern.permute.xlu0 0
        %1438 = vperm.xlu0 %1437, %v1423
        %v1439 = vpop.permute.xlu0 %1438
        %1442 = vset.pattern.permute.xlu0 0
        %1443 = vperm.xlu0 %1442, %v1424
        %v1444 = vpop.permute.xlu0 %1443
        %1447 = vset.pattern.permute.xlu0 0
        %1448 = vperm.xlu0 %1447, %v1425
        %v1449 = vpop.permute.xlu0 %1448
        %v1452 = vsel %vm746, %v1427, 0
        %v1455 = vsel %vm746, %v1428, 0
        %v1458 = vsel %vm746, %v1429, 0
        %v1461 = vsel %vm746, %v1430, 0
        %1463 = vmatpush.msra.mxu0 0.0
        %1464 = vmatpush.msra.mxu0 0.0
        %1465 = vmatpush.msra.mxu0 0.0
        %1466 = vmatpush.msra.mxu0 0.0
        %1467 = vmatpush.msra.mxu0 %v1420
        %1468 = vmatpush.msra.mxu0 %v1419
        %1469 = vmatpush.msra.mxu0 %v1418
        %1470 = vmatpush.msra.mxu0 %v1417
        %1471 = vmatpush.msra.mxu0 %v1396
        %1472 = vmatpush.msra.mxu0 %v1395
        %1473 = vmatpush.msra.mxu0 %v1394
        %1474 = vmatpush.msra.mxu0 %v1393
        %1475 = vmatpush.msra.mxu0 %v1408
        %1476 = vmatpush.msra.mxu0 %v1407
        %1477 = vmatpush.msra.mxu0 %v1406
        %1478 = vmatpush.msra.mxu0 %v1405
        %1479 = vmatmul.f32.gmra.mxu0 %v1452
        %v1480 = vpop.f32.mrf.mxu0
        %v1481 = vadd.f32 %v1434, %v1480
        %1482 = vmatmul.f32.gmra.mxu0 %v1455
        %v1483 = vpop.f32.mrf.mxu0
        %v1484 = vadd.f32 %v1439, %v1483
        %1485 = vmatmul.f32.gmra.mxu0 %v1458
        %v1486 = vpop.f32.mrf.mxu0
        %v1487 = vadd.f32 %v1444, %v1486
        %1488 = vmatmul.f32.gmra.mxu0 %v1461
        %v1489 = vpop.f32.mrf.mxu0
        %v1490 = vadd.f32 %v1449, %v1489
        %1491 = vdwg.mxu0
        %s1492 = scalar_lea.vmem %s11, 32
        %v1493 = vld [vmem:[%s1492] sm:$0xff]
        %v1494 = vld [vmem:[%s1492 + $0x8] sm:$0xff]
        %v1495 = vld [vmem:[%s1492 + $0x10] sm:$0xff]
        %v1496 = vld [vmem:[%s1492 + $0x18] sm:$0xff]
        %s1497 = scalar_lea.vmem %s12, 32
        %v1498 = vld [vmem:[%s1497] sm:$0xff]
        %v1499 = vld [vmem:[%s1497 + $0x8] sm:$0xff]
        %v1500 = vld [vmem:[%s1497 + $0x10] sm:$0xff]
        %v1501 = vld [vmem:[%s1497 + $0x18] sm:$0xff]
        %v1502 = vadd.f32 %v1481, %v1484
        %v1503 = vadd.f32 %v1502, %v1487
        %v1504 = vadd.f32 %v1503, %v1490
        %v1505 = vrot.slane %v1504, 4
        %v1506 = vadd.f32 %v1504, %v1505
        %v1507 = vrot.slane %v1506, 2
        %v1508 = vadd.f32 %v1506, %v1507
        %v1509 = vrot.slane %v1508, 1
        %v1510 = vadd.f32 %v1508, %v1509
        %v1511 = vmul.f32 %v1481, %v1481
        %v1512 = vmul.f32 %v1484, %v1484
        %v1513 = vmul.f32 %v1487, %v1487
        %v1514 = vmul.f32 %v1490, %v1490
        %v1515 = vadd.f32 %v1511, %v1512
        %v1516 = vadd.f32 %v1515, %v1513
        %v1517 = vadd.f32 %v1516, %v1514
        %v1518 = vrot.slane %v1517, 4
        %v1519 = vadd.f32 %v1517, %v1518
        %v1520 = vrot.slane %v1519, 2
        %v1521 = vadd.f32 %v1519, %v1520
        %v1522 = vrot.slane %v1521, 1
        %v1523 = vadd.f32 %v1521, %v1522
        %v1524 = vmul.f32 %v1510, %v443
        %v1525 = vsel %vm587, %v1524, 0.0
        %1526 = vadd.xlane.f32.xlu0 %v1525
        %v1527 = vpop.xlane.xlu0 %1526
        %v1528 = vrot.slane %v1527, 4
        %v1529 = vadd.f32 %v1527, %v1528
        %v1530 = vrot.slane %v1529, 2
        %v1531 = vadd.f32 %v1529, %v1530
        %v1532 = vrot.slane %v1531, 1
        %v1533 = vadd.f32 %v1531, %v1532
        %s1534 = vtos %v1533
        %v1535 = vmul.f32 %v1523, %v443
        %v1536 = vsel %vm587, %v1535, 0.0
        %1537 = vadd.xlane.f32.xlu0 %v1536
        %v1538 = vpop.xlane.xlu0 %1537
        %v1539 = vrot.slane %v1538, 4
        %v1540 = vadd.f32 %v1538, %v1539
        %v1541 = vrot.slane %v1540, 2
        %v1542 = vadd.f32 %v1540, %v1541
        %v1543 = vrot.slane %v1542, 1
        %v1544 = vadd.f32 %v1542, %v1543
        %s1545 = vtos %v1544
        %s1546 = smul.f32 %s1534, 0.001953125
        %s1547 = smul.f32 %s1545, 0.001953125
        %s1548 = smul.f32 %s1546, %s1546
        %s1549 = ssub.f32 %s1547, %s1548
        %s1550 = smax.f32 %s1549, 0.0
        %s1551 = sadd.f32 %s1550, 1e-05
        %v1552 = vstv %s1551
        %v1553 = vrsqrt.pop %v1552
        %v1554 = vmul.f32 %v1553, %v1552
        %v1555 = vmul.f32 %v1554, %v1553
        %v1556 = vmul.f32 0.5, %v1555
        %v1557 = vsub.f32 1.5, %v1556
        %v1558 = vmul.f32 %v1553, %v1557
        %vm1559 = vweird.f32 %v1552
        %vm1560 = vweird.f32 %v1553
        %vm1561 = vmor %vm1559, %vm1560
        %v1562 = vsel %vm1561, %v1553, %v1558
        %s1563 = vtos %v1562
        %v1564 = vstv %s1563
        %v1565 = vmul.f32 %v1493, %v1564
        %v1566 = vmul.f32 %v1494, %v1564
        %v1567 = vmul.f32 %v1495, %v1564
        %v1568 = vmul.f32 %v1496, %v1564
        %s1569 = smul.f32 %s1546, %s1563
        %v1570 = vstv %s1569
        %v1571 = vmul.f32 %v1570, %v1493
        %v1572 = vmul.f32 %v1570, %v1494
        %v1573 = vmul.f32 %v1570, %v1495
        %v1574 = vmul.f32 %v1570, %v1496
        %v1575 = vsub.f32 %v1498, %v1571
        %v1576 = vsub.f32 %v1499, %v1572
        %v1577 = vsub.f32 %v1500, %v1573
        %v1578 = vsub.f32 %v1501, %v1574
        %1580 = vset.pattern.permute.xlu0 0
        %1581 = vperm.xlu0 %1580, %v1565
        %v1582 = vpop.permute.xlu0 %1581
        %1585 = vset.pattern.permute.xlu0 0
        %1586 = vperm.xlu0 %1585, %v1566
        %v1587 = vpop.permute.xlu0 %1586
        %1590 = vset.pattern.permute.xlu0 0
        %1591 = vperm.xlu0 %1590, %v1567
        %v1592 = vpop.permute.xlu0 %1591
        %1595 = vset.pattern.permute.xlu0 0
        %1596 = vperm.xlu0 %1595, %v1568
        %v1597 = vpop.permute.xlu0 %1596
        %v1599 = vmul.f32 %v1481, %v1582
        %v1600 = vmul.f32 %v1484, %v1587
        %v1601 = vmul.f32 %v1487, %v1592
        %v1602 = vmul.f32 %v1490, %v1597
        %1604 = vset.pattern.permute.xlu0 0
        %1605 = vperm.xlu0 %1604, %v1575
        %v1606 = vpop.permute.xlu0 %1605
        %1609 = vset.pattern.permute.xlu0 0
        %1610 = vperm.xlu0 %1609, %v1576
        %v1611 = vpop.permute.xlu0 %1610
        %1614 = vset.pattern.permute.xlu0 0
        %1615 = vperm.xlu0 %1614, %v1577
        %v1616 = vpop.permute.xlu0 %1615
        %1619 = vset.pattern.permute.xlu0 0
        %1620 = vperm.xlu0 %1619, %v1578
        %v1621 = vpop.permute.xlu0 %1620
        %v1623 = vadd.f32 %v1599, %v1606
        %v1624 = vadd.f32 %v1600, %v1611
        %v1625 = vadd.f32 %v1601, %v1616
        %v1626 = vadd.f32 %v1602, %v1621
        %v1627 = vadd.f32 %v1623, %v1155
        %v1628 = vadd.f32 %v1624, %v1156
        %v1629 = vadd.f32 %v1625, %v1157
        %v1630 = vadd.f32 %v1626, %v1158
        %v1631 = vmax.f32 %v1627, 0.0
        %v1632 = vmax.f32 %v1628, 0.0
        %v1633 = vmax.f32 %v1629, 0.0
        %v1634 = vmax.f32 %v1630, 0.0
        %1635 = vrot.lane.b32.xlu0 %v1631, 9
        %v1636 = vpop.permute.xlu0 %1635
        %1637 = vrot.lane.b32.xlu0 %v1632, 9
        %v1638 = vpop.permute.xlu0 %1637
        %1639 = vrot.lane.b32.xlu0 %v1633, 9
        %v1640 = vpop.permute.xlu0 %1639
        %1641 = vrot.lane.b32.xlu0 %v1634, 9
        %v1642 = vpop.permute.xlu0 %1641
        %v1643 = vsel %vm459, 1, 0
        %vm1644 = vcmp.eq.s32.totalorder %v1643, 1
        %v1645 = vsel %vm1644, %v1636, 0.0
        %v1646 = vsel %vm1644, %v1638, 0.0
        %v1647 = vsel %vm1644, %v1640, 0.0
        %v1648 = vsel %vm1644, %v1642, 0.0
        %1649 = vrot.lane.b32.xlu0 %v1631, 119
        %v1650 = vpop.permute.xlu0 %1649
        %1651 = vrot.lane.b32.xlu0 %v1632, 119
        %v1652 = vpop.permute.xlu0 %1651
        %1653 = vrot.lane.b32.xlu0 %v1633, 119
        %v1654 = vpop.permute.xlu0 %1653
        %1655 = vrot.lane.b32.xlu0 %v1634, 119
        %v1656 = vpop.permute.xlu0 %1655
        %v1657 = vsel %vm455, 1, 0
        %vm1658 = vcmp.eq.s32.totalorder %v1657, 1
        %v1659 = vsel %vm1658, %v1650, 0.0
        %v1660 = vsel %vm1658, %v1652, 0.0
        %v1661 = vsel %vm1658, %v1654, 0.0
        %v1662 = vsel %vm1658, %v1656, 0.0
        %s1663 = scalar_lea.vmem %s6, 64
        %v1664 = vld [vmem:[%s1663] sm:$0xff]
        %v1665 = vld [vmem:[%s1663 + $0x8] sm:$0xff]
        %v1666 = vld [vmem:[%s1663 + $0x10] sm:$0xff]
        %v1667 = vld [vmem:[%s1663 + $0x18] sm:$0xff]
        %s1668 = scalar_lea.vmem %s5, 64
        %v1669 = vld [vmem:[%s1668] sm:$0xff]
        %v1670 = vld [vmem:[%s1668 + $0x8] sm:$0xff]
        %v1671 = vld [vmem:[%s1668 + $0x10] sm:$0xff]
        %v1672 = vld [vmem:[%s1668 + $0x18] sm:$0xff]
        %1674 = vset.pattern.permute.xlu0 0
        %1675 = vperm.xlu0 %1674, %v1664
        %v1676 = vpop.permute.xlu0 %1675
        %1679 = vset.pattern.permute.xlu0 0
        %1680 = vperm.xlu0 %1679, %v1665
        %v1681 = vpop.permute.xlu0 %1680
        %1684 = vset.pattern.permute.xlu0 0
        %1685 = vperm.xlu0 %1684, %v1666
        %v1686 = vpop.permute.xlu0 %1685
        %1689 = vset.pattern.permute.xlu0 0
        %1690 = vperm.xlu0 %1689, %v1667
        %v1691 = vpop.permute.xlu0 %1690
        %v1694 = vsel %vm746, %v1669, 0
        %v1697 = vsel %vm746, %v1670, 0
        %v1700 = vsel %vm746, %v1671, 0
        %v1703 = vsel %vm746, %v1672, 0
        %1705 = vmatpush.msra.mxu0 0.0
        %1706 = vmatpush.msra.mxu0 0.0
        %1707 = vmatpush.msra.mxu0 0.0
        %1708 = vmatpush.msra.mxu0 0.0
        %1709 = vmatpush.msra.mxu0 %v1662
        %1710 = vmatpush.msra.mxu0 %v1661
        %1711 = vmatpush.msra.mxu0 %v1660
        %1712 = vmatpush.msra.mxu0 %v1659
        %1713 = vmatpush.msra.mxu0 %v1634
        %1714 = vmatpush.msra.mxu0 %v1633
        %1715 = vmatpush.msra.mxu0 %v1632
        %1716 = vmatpush.msra.mxu0 %v1631
        %1717 = vmatpush.msra.mxu0 %v1648
        %1718 = vmatpush.msra.mxu0 %v1647
        %1719 = vmatpush.msra.mxu0 %v1646
        %1720 = vmatpush.msra.mxu0 %v1645
        %1721 = vmatmul.f32.gmra.mxu0 %v1694
        %v1722 = vpop.f32.mrf.mxu0
        %v1723 = vadd.f32 %v1676, %v1722
        %1724 = vmatmul.f32.gmra.mxu0 %v1697
        %v1725 = vpop.f32.mrf.mxu0
        %v1726 = vadd.f32 %v1681, %v1725
        %1727 = vmatmul.f32.gmra.mxu0 %v1700
        %v1728 = vpop.f32.mrf.mxu0
        %v1729 = vadd.f32 %v1686, %v1728
        %1730 = vmatmul.f32.gmra.mxu0 %v1703
        %v1731 = vpop.f32.mrf.mxu0
        %v1732 = vadd.f32 %v1691, %v1731
        %1733 = vdwg.mxu0
        %s1734 = scalar_lea.vmem %s7, 64
        %v1735 = vld [vmem:[%s1734] sm:$0xff]
        %v1736 = vld [vmem:[%s1734 + $0x8] sm:$0xff]
        %v1737 = vld [vmem:[%s1734 + $0x10] sm:$0xff]
        %v1738 = vld [vmem:[%s1734 + $0x18] sm:$0xff]
        %s1739 = scalar_lea.vmem %s8, 64
        %v1740 = vld [vmem:[%s1739] sm:$0xff]
        %v1741 = vld [vmem:[%s1739 + $0x8] sm:$0xff]
        %v1742 = vld [vmem:[%s1739 + $0x10] sm:$0xff]
        %v1743 = vld [vmem:[%s1739 + $0x18] sm:$0xff]
        %v1744 = vadd.f32 %v1723, %v1726
        %v1745 = vadd.f32 %v1744, %v1729
        %v1746 = vadd.f32 %v1745, %v1732
        %v1747 = vrot.slane %v1746, 4
        %v1748 = vadd.f32 %v1746, %v1747
        %v1749 = vrot.slane %v1748, 2
        %v1750 = vadd.f32 %v1748, %v1749
        %v1751 = vrot.slane %v1750, 1
        %v1752 = vadd.f32 %v1750, %v1751
        %v1753 = vmul.f32 %v1723, %v1723
        %v1754 = vmul.f32 %v1726, %v1726
        %v1755 = vmul.f32 %v1729, %v1729
        %v1756 = vmul.f32 %v1732, %v1732
        %v1757 = vadd.f32 %v1753, %v1754
        %v1758 = vadd.f32 %v1757, %v1755
        %v1759 = vadd.f32 %v1758, %v1756
        %v1760 = vrot.slane %v1759, 4
        %v1761 = vadd.f32 %v1759, %v1760
        %v1762 = vrot.slane %v1761, 2
        %v1763 = vadd.f32 %v1761, %v1762
        %v1764 = vrot.slane %v1763, 1
        %v1765 = vadd.f32 %v1763, %v1764
        %v1766 = vmul.f32 %v1752, %v443
        %v1767 = vsel %vm587, %v1766, 0.0
        %1768 = vadd.xlane.f32.xlu0 %v1767
        %v1769 = vpop.xlane.xlu0 %1768
        %v1770 = vrot.slane %v1769, 4
        %v1771 = vadd.f32 %v1769, %v1770
        %v1772 = vrot.slane %v1771, 2
        %v1773 = vadd.f32 %v1771, %v1772
        %v1774 = vrot.slane %v1773, 1
        %v1775 = vadd.f32 %v1773, %v1774
        %s1776 = vtos %v1775
        %v1777 = vmul.f32 %v1765, %v443
        %v1778 = vsel %vm587, %v1777, 0.0
        %1779 = vadd.xlane.f32.xlu0 %v1778
        %v1780 = vpop.xlane.xlu0 %1779
        %v1781 = vrot.slane %v1780, 4
        %v1782 = vadd.f32 %v1780, %v1781
        %v1783 = vrot.slane %v1782, 2
        %v1784 = vadd.f32 %v1782, %v1783
        %v1785 = vrot.slane %v1784, 1
        %v1786 = vadd.f32 %v1784, %v1785
        %s1787 = vtos %v1786
        %s1788 = smul.f32 %s1776, 0.001953125
        %s1789 = smul.f32 %s1787, 0.001953125
        %s1790 = smul.f32 %s1788, %s1788
        %s1791 = ssub.f32 %s1789, %s1790
        %s1792 = smax.f32 %s1791, 0.0
        %s1793 = sadd.f32 %s1792, 1e-05
        %v1794 = vstv %s1793
        %v1795 = vrsqrt.pop %v1794
        %v1796 = vmul.f32 %v1795, %v1794
        %v1797 = vmul.f32 %v1796, %v1795
        %v1798 = vmul.f32 0.5, %v1797
        %v1799 = vsub.f32 1.5, %v1798
        %v1800 = vmul.f32 %v1795, %v1799
        %vm1801 = vweird.f32 %v1794
        %vm1802 = vweird.f32 %v1795
        %vm1803 = vmor %vm1801, %vm1802
        %v1804 = vsel %vm1803, %v1795, %v1800
        %s1805 = vtos %v1804
        %v1806 = vstv %s1805
        %v1807 = vmul.f32 %v1735, %v1806
        %v1808 = vmul.f32 %v1736, %v1806
        %v1809 = vmul.f32 %v1737, %v1806
        %v1810 = vmul.f32 %v1738, %v1806
        %s1811 = smul.f32 %s1788, %s1805
        %v1812 = vstv %s1811
        %v1813 = vmul.f32 %v1812, %v1735
        %v1814 = vmul.f32 %v1812, %v1736
        %v1815 = vmul.f32 %v1812, %v1737
        %v1816 = vmul.f32 %v1812, %v1738
        %v1817 = vsub.f32 %v1740, %v1813
        %v1818 = vsub.f32 %v1741, %v1814
        %v1819 = vsub.f32 %v1742, %v1815
        %v1820 = vsub.f32 %v1743, %v1816
        %1822 = vset.pattern.permute.xlu0 0
        %1823 = vperm.xlu0 %1822, %v1807
        %v1824 = vpop.permute.xlu0 %1823
        %1827 = vset.pattern.permute.xlu0 0
        %1828 = vperm.xlu0 %1827, %v1808
        %v1829 = vpop.permute.xlu0 %1828
        %1832 = vset.pattern.permute.xlu0 0
        %1833 = vperm.xlu0 %1832, %v1809
        %v1834 = vpop.permute.xlu0 %1833
        %1837 = vset.pattern.permute.xlu0 0
        %1838 = vperm.xlu0 %1837, %v1810
        %v1839 = vpop.permute.xlu0 %1838
        %v1841 = vmul.f32 %v1723, %v1824
        %v1842 = vmul.f32 %v1726, %v1829
        %v1843 = vmul.f32 %v1729, %v1834
        %v1844 = vmul.f32 %v1732, %v1839
        %1846 = vset.pattern.permute.xlu0 0
        %1847 = vperm.xlu0 %1846, %v1817
        %v1848 = vpop.permute.xlu0 %1847
        %1851 = vset.pattern.permute.xlu0 0
        %1852 = vperm.xlu0 %1851, %v1818
        %v1853 = vpop.permute.xlu0 %1852
        %1856 = vset.pattern.permute.xlu0 0
        %1857 = vperm.xlu0 %1856, %v1819
        %v1858 = vpop.permute.xlu0 %1857
        %1861 = vset.pattern.permute.xlu0 0
        %1862 = vperm.xlu0 %1861, %v1820
        %v1863 = vpop.permute.xlu0 %1862
        %v1865 = vadd.f32 %v1841, %v1848
        %v1866 = vadd.f32 %v1842, %v1853
        %v1867 = vadd.f32 %v1843, %v1858
        %v1868 = vadd.f32 %v1844, %v1863
        %v1869 = vmax.f32 %v1865, 0.0
        %v1870 = vmax.f32 %v1866, 0.0
        %v1871 = vmax.f32 %v1867, 0.0
        %v1872 = vmax.f32 %v1868, 0.0
        %1873 = vrot.lane.b32.xlu0 %v1869, 1
        %v1874 = vpop.permute.xlu0 %1873
        %1875 = vrot.lane.b32.xlu0 %v1870, 1
        %v1876 = vpop.permute.xlu0 %1875
        %1877 = vrot.lane.b32.xlu0 %v1871, 1
        %v1878 = vpop.permute.xlu0 %1877
        %1879 = vrot.lane.b32.xlu0 %v1872, 1
        %v1880 = vpop.permute.xlu0 %1879
        %v1881 = vsel %vm475, %v1874, 0.0
        %v1882 = vsel %vm475, %v1876, 0.0
        %v1883 = vsel %vm475, %v1878, 0.0
        %v1884 = vsel %vm475, %v1880, 0.0
        %1885 = vrot.lane.b32.xlu0 %v1869, 127
        %v1886 = vpop.permute.xlu0 %1885
        %1887 = vrot.lane.b32.xlu0 %v1870, 127
        %v1888 = vpop.permute.xlu0 %1887
        %1889 = vrot.lane.b32.xlu0 %v1871, 127
        %v1890 = vpop.permute.xlu0 %1889
        %1891 = vrot.lane.b32.xlu0 %v1872, 127
        %v1892 = vpop.permute.xlu0 %1891
        %v1893 = vsel %vm483, %v1886, 0.0
        %v1894 = vsel %vm483, %v1888, 0.0
        %v1895 = vsel %vm483, %v1890, 0.0
        %v1896 = vsel %vm483, %v1892, 0.0
        %s1897 = scalar_lea.vmem %s10, 64
        %v1898 = vld [vmem:[%s1897] sm:$0xff]
        %v1899 = vld [vmem:[%s1897 + $0x8] sm:$0xff]
        %v1900 = vld [vmem:[%s1897 + $0x10] sm:$0xff]
        %v1901 = vld [vmem:[%s1897 + $0x18] sm:$0xff]
        %s1902 = scalar_lea.vmem %s9, 64
        %v1903 = vld [vmem:[%s1902] sm:$0xff]
        %v1904 = vld [vmem:[%s1902 + $0x8] sm:$0xff]
        %v1905 = vld [vmem:[%s1902 + $0x10] sm:$0xff]
        %v1906 = vld [vmem:[%s1902 + $0x18] sm:$0xff]
        %1908 = vset.pattern.permute.xlu0 0
        %1909 = vperm.xlu0 %1908, %v1898
        %v1910 = vpop.permute.xlu0 %1909
        %1913 = vset.pattern.permute.xlu0 0
        %1914 = vperm.xlu0 %1913, %v1899
        %v1915 = vpop.permute.xlu0 %1914
        %1918 = vset.pattern.permute.xlu0 0
        %1919 = vperm.xlu0 %1918, %v1900
        %v1920 = vpop.permute.xlu0 %1919
        %1923 = vset.pattern.permute.xlu0 0
        %1924 = vperm.xlu0 %1923, %v1901
        %v1925 = vpop.permute.xlu0 %1924
        %v1928 = vsel %vm746, %v1903, 0
        %v1931 = vsel %vm746, %v1904, 0
        %v1934 = vsel %vm746, %v1905, 0
        %v1937 = vsel %vm746, %v1906, 0
        %1939 = vmatpush.msra.mxu0 0.0
        %1940 = vmatpush.msra.mxu0 0.0
        %1941 = vmatpush.msra.mxu0 0.0
        %1942 = vmatpush.msra.mxu0 0.0
        %1943 = vmatpush.msra.mxu0 %v1896
        %1944 = vmatpush.msra.mxu0 %v1895
        %1945 = vmatpush.msra.mxu0 %v1894
        %1946 = vmatpush.msra.mxu0 %v1893
        %1947 = vmatpush.msra.mxu0 %v1872
        %1948 = vmatpush.msra.mxu0 %v1871
        %1949 = vmatpush.msra.mxu0 %v1870
        %1950 = vmatpush.msra.mxu0 %v1869
        %1951 = vmatpush.msra.mxu0 %v1884
        %1952 = vmatpush.msra.mxu0 %v1883
        %1953 = vmatpush.msra.mxu0 %v1882
        %1954 = vmatpush.msra.mxu0 %v1881
        %1955 = vmatmul.f32.gmra.mxu0 %v1928
        %v1956 = vpop.f32.mrf.mxu0
        %v1957 = vadd.f32 %v1910, %v1956
        %1958 = vmatmul.f32.gmra.mxu0 %v1931
        %v1959 = vpop.f32.mrf.mxu0
        %v1960 = vadd.f32 %v1915, %v1959
        %1961 = vmatmul.f32.gmra.mxu0 %v1934
        %v1962 = vpop.f32.mrf.mxu0
        %v1963 = vadd.f32 %v1920, %v1962
        %1964 = vmatmul.f32.gmra.mxu0 %v1937
        %v1965 = vpop.f32.mrf.mxu0
        %v1966 = vadd.f32 %v1925, %v1965
        %1967 = vdwg.mxu0
        %s1968 = scalar_lea.vmem %s11, 64
        %v1969 = vld [vmem:[%s1968] sm:$0xff]
        %v1970 = vld [vmem:[%s1968 + $0x8] sm:$0xff]
        %v1971 = vld [vmem:[%s1968 + $0x10] sm:$0xff]
        %v1972 = vld [vmem:[%s1968 + $0x18] sm:$0xff]
        %s1973 = scalar_lea.vmem %s12, 64
        %v1974 = vld [vmem:[%s1973] sm:$0xff]
        %v1975 = vld [vmem:[%s1973 + $0x8] sm:$0xff]
        %v1976 = vld [vmem:[%s1973 + $0x10] sm:$0xff]
        %v1977 = vld [vmem:[%s1973 + $0x18] sm:$0xff]
        %v1978 = vadd.f32 %v1957, %v1960
        %v1979 = vadd.f32 %v1978, %v1963
        %v1980 = vadd.f32 %v1979, %v1966
        %v1981 = vrot.slane %v1980, 4
        %v1982 = vadd.f32 %v1980, %v1981
        %v1983 = vrot.slane %v1982, 2
        %v1984 = vadd.f32 %v1982, %v1983
        %v1985 = vrot.slane %v1984, 1
        %v1986 = vadd.f32 %v1984, %v1985
        %v1987 = vmul.f32 %v1957, %v1957
        %v1988 = vmul.f32 %v1960, %v1960
        %v1989 = vmul.f32 %v1963, %v1963
        %v1990 = vmul.f32 %v1966, %v1966
        %v1991 = vadd.f32 %v1987, %v1988
        %v1992 = vadd.f32 %v1991, %v1989
        %v1993 = vadd.f32 %v1992, %v1990
        %v1994 = vrot.slane %v1993, 4
        %v1995 = vadd.f32 %v1993, %v1994
        %v1996 = vrot.slane %v1995, 2
        %v1997 = vadd.f32 %v1995, %v1996
        %v1998 = vrot.slane %v1997, 1
        %v1999 = vadd.f32 %v1997, %v1998
        %v2000 = vmul.f32 %v1986, %v443
        %v2001 = vsel %vm587, %v2000, 0.0
        %2002 = vadd.xlane.f32.xlu0 %v2001
        %v2003 = vpop.xlane.xlu0 %2002
        %v2004 = vrot.slane %v2003, 4
        %v2005 = vadd.f32 %v2003, %v2004
        %v2006 = vrot.slane %v2005, 2
        %v2007 = vadd.f32 %v2005, %v2006
        %v2008 = vrot.slane %v2007, 1
        %v2009 = vadd.f32 %v2007, %v2008
        %s2010 = vtos %v2009
        %v2011 = vmul.f32 %v1999, %v443
        %v2012 = vsel %vm587, %v2011, 0.0
        %2013 = vadd.xlane.f32.xlu0 %v2012
        %v2014 = vpop.xlane.xlu0 %2013
        %v2015 = vrot.slane %v2014, 4
        %v2016 = vadd.f32 %v2014, %v2015
        %v2017 = vrot.slane %v2016, 2
        %v2018 = vadd.f32 %v2016, %v2017
        %v2019 = vrot.slane %v2018, 1
        %v2020 = vadd.f32 %v2018, %v2019
        %s2021 = vtos %v2020
        %s2022 = smul.f32 %s2010, 0.001953125
        %s2023 = smul.f32 %s2021, 0.001953125
        %s2024 = smul.f32 %s2022, %s2022
        %s2025 = ssub.f32 %s2023, %s2024
        %s2026 = smax.f32 %s2025, 0.0
        %s2027 = sadd.f32 %s2026, 1e-05
        %v2028 = vstv %s2027
        %v2029 = vrsqrt.pop %v2028
        %v2030 = vmul.f32 %v2029, %v2028
        %v2031 = vmul.f32 %v2030, %v2029
        %v2032 = vmul.f32 0.5, %v2031
        %v2033 = vsub.f32 1.5, %v2032
        %v2034 = vmul.f32 %v2029, %v2033
        %vm2035 = vweird.f32 %v2028
        %vm2036 = vweird.f32 %v2029
        %vm2037 = vmor %vm2035, %vm2036
        %v2038 = vsel %vm2037, %v2029, %v2034
        %s2039 = vtos %v2038
        %v2040 = vstv %s2039
        %v2041 = vmul.f32 %v1969, %v2040
        %v2042 = vmul.f32 %v1970, %v2040
        %v2043 = vmul.f32 %v1971, %v2040
        %v2044 = vmul.f32 %v1972, %v2040
        %s2045 = smul.f32 %s2022, %s2039
        %v2046 = vstv %s2045
        %v2047 = vmul.f32 %v2046, %v1969
        %v2048 = vmul.f32 %v2046, %v1970
        %v2049 = vmul.f32 %v2046, %v1971
        %v2050 = vmul.f32 %v2046, %v1972
        %v2051 = vsub.f32 %v1974, %v2047
        %v2052 = vsub.f32 %v1975, %v2048
        %v2053 = vsub.f32 %v1976, %v2049
        %v2054 = vsub.f32 %v1977, %v2050
        %2056 = vset.pattern.permute.xlu0 0
        %2057 = vperm.xlu0 %2056, %v2041
        %v2058 = vpop.permute.xlu0 %2057
        %2061 = vset.pattern.permute.xlu0 0
        %2062 = vperm.xlu0 %2061, %v2042
        %v2063 = vpop.permute.xlu0 %2062
        %2066 = vset.pattern.permute.xlu0 0
        %2067 = vperm.xlu0 %2066, %v2043
        %v2068 = vpop.permute.xlu0 %2067
        %2071 = vset.pattern.permute.xlu0 0
        %2072 = vperm.xlu0 %2071, %v2044
        %v2073 = vpop.permute.xlu0 %2072
        %v2075 = vmul.f32 %v1957, %v2058
        %v2076 = vmul.f32 %v1960, %v2063
        %v2077 = vmul.f32 %v1963, %v2068
        %v2078 = vmul.f32 %v1966, %v2073
        %2080 = vset.pattern.permute.xlu0 0
        %2081 = vperm.xlu0 %2080, %v2051
        %v2082 = vpop.permute.xlu0 %2081
        %2085 = vset.pattern.permute.xlu0 0
        %2086 = vperm.xlu0 %2085, %v2052
        %v2087 = vpop.permute.xlu0 %2086
        %2090 = vset.pattern.permute.xlu0 0
        %2091 = vperm.xlu0 %2090, %v2053
        %v2092 = vpop.permute.xlu0 %2091
        %2095 = vset.pattern.permute.xlu0 0
        %2096 = vperm.xlu0 %2095, %v2054
        %v2097 = vpop.permute.xlu0 %2096
        %v2099 = vadd.f32 %v2075, %v2082
        %v2100 = vadd.f32 %v2076, %v2087
        %v2101 = vadd.f32 %v2077, %v2092
        %v2102 = vadd.f32 %v2078, %v2097
        %v2103 = vadd.f32 %v2099, %v1631
        %v2104 = vadd.f32 %v2100, %v1632
        %v2105 = vadd.f32 %v2101, %v1633
        %v2106 = vadd.f32 %v2102, %v1634
        %v2107 = vmax.f32 %v2103, 0.0
        %v2108 = vmax.f32 %v2104, 0.0
        %v2109 = vmax.f32 %v2105, 0.0
        %v2110 = vmax.f32 %v2106, 0.0
        %2111 = vst [vmem:[%s433] sm:$0xff] %v2107
        %2112 = vst [vmem:[%s433 + $0x8] sm:$0xff] %v2108
        %2113 = vst [vmem:[%s433 + $0x10] sm:$0xff] %v2109
        %2114 = vst [vmem:[%s433 + $0x18] sm:$0xff] %v2110
        %s2115 = sand.u32 %s313, 1
        %s2116 = scalar_lea.sflag [#allocation3], %s2115
        %s2117 = sand.u32 %s313, 1
        %s2118 = smul.addr %s2117, 32
        %s2119 = scalar_lea.vmem [#allocation2], %s2118
        // Predicated region
        $region73: #{tpu_custom_call.1} parent=71 // pred_check
          %p2120 = pneg %p323
        $region74: #{tpu_custom_call.1} parent=71 // pred_check_branch
          %2122 = sbr.rel (%p2120) target = $region76
        $region75: #{tpu_custom_call.1} parent=71 // pred_region
          %2124 = vsyncadd %s2116, 0
          %s2125 = smul.addr %s27, 4
          %s2126 = smul.addr %s2125, 8
          %s2127 = scalar_lea.hbm %s13, %s2126
          %s2128 = sshll.u32 %s2119, 4
          %s2129 = int_to_ptr.vmem [resolvable:$true] %s2128
          %s2130 = sshll.u32 %s2127, 4
          %s2131 = int_to_ptr.hbm [resolvable:$true] %s2130
          %2136 = dma.vmem_to_hbm [thread:$0]  %s2129, 512, %s2131, %s2116, 128, 128, 8
        $region76: #{tpu_custom_call.1} parent=71 // pred_fallthru
          _
      $region72: #{tpu_custom_call.1} parent=5 // pred_fallthru
        _
      %p2137 = scmp.le.s32.totalorder 2, %s22
      // Predicated region
      $region77: #{tpu_custom_call.1} parent=5 // pred_check
        %p2138 = pneg %p2137
      $region78: #{tpu_custom_call.1} parent=5 // pred_check_branch
        %2140 = sbr.rel (%p2138) target = $region80
      $region79: #{tpu_custom_call.1} parent=5 // pred_region
        %s2141 = ssub.s32 %s22, 2
        // Predicated region
        $region81: #{tpu_custom_call.1} parent=79 // pred_check
          %p2142 = pneg %p329
        $region82: #{tpu_custom_call.1} parent=79 // pred_check_branch
          %2144 = sbr.rel (%p2142) target = $region84
        $region83: #{tpu_custom_call.1} parent=79 // pred_region
          %s2145 = sand.u32 %s314, 1
          %s2146 = scalar_lea.sflag [#allocation3], %s2145
          %s2147 = sand.u32 %s314, 1
          %s2148 = smul.addr %s2147, 32
          %s2149 = scalar_lea.vmem [#allocation2], %s2148
          %2151 = dma.done %s2146, 512
        $region84: #{tpu_custom_call.1} parent=79 // pred_fallthru
          _
      $region80: #{tpu_custom_call.1} parent=5 // pred_fallthru
        _
    $region6: #{tpu_custom_call.1} parent=1 // loop_footer
      %s26 = sadd.s32 1, %s22
    $region7: #{tpu_custom_call.1} parent=1 // loop_footer_branch
      %21 = sbr.rel target = $region3
    $region8: #{tpu_custom_call.1} parent=1 // loop_exit
      _
    %2152 = vsyncpa [#allocation3], 1
    %s2153 = scalar_lea.sflag [#allocation3], 1
    %2154 = vsyncpa %s2153, 1

</llo_original>
